<compile_context>
chip_gen: v6e
topology: v6e:2x2x1
jax: 0.10.0
libtpu: 0.0.40
codegen_flags: <defaults>
</compile_context>

<pallas_src>
import functools
import math

import jax
import jax.numpy as jnp
from jax.experimental import pallas as pl
from jax.experimental.pallas import tpu as pltpu

HIDDEN = 768                 # self.hidden_size
HALF = HIDDEN // 2           # 384
QKV = 3 * HALF               # 1152 (fused key/query/value projection width)
ALPHA = 5.0                  # self.alpha
TPOW = (ALPHA + 1.0) / 2.0   # Student-t exponent (== 3.0 for alpha = 5)
LANE = 128                   # lane width used to pad narrow outputs


@functools.lru_cache(maxsize=1)
def _multi_tensorcore():
    """True on chips with >1 TensorCore per chip (v7x) where the fused clustering epilogue
    would otherwise pin the whole forward to a single core."""
    try:
        kind = jax.devices()[0].device_kind.lower()
    except Exception:
        return False
    return "v7" in kind


# ---------------------------------------------------------------------------
# VMEM budgeting / batch-block selection
# ---------------------------------------------------------------------------
def _block_vmem_bytes(Nt, TB):
    """Per-block VMEM footprint: double-buffered bf16 h block + in-kernel temporaries
    (f32 qkv, bf16 key/qry copies for the score matmul, f32 score matrix, f32 accumulators)."""
    per_item = (Nt * HIDDEN * 2 * 2      # h block, bf16, double buffered
                + Nt * QKV * 4           # qkv, f32
                + Nt * QKV * 2           # bf16 key/qry/val copies
                + Nt * Nt * 4            # score matrix g
                + Nt * HALF * 4)         # val*attn / ztd accumulator
    return TB * per_item


def _pick_tb(B, Nt, *, force_split=True, sublane_align=False,
             target_rows=1024, block_budget=12 << 20):
    """Batch block so the MXU M dim (TB*Nt) is ~target_rows while the block + temps fit VMEM."""
    cap = max(1, block_budget // _block_vmem_bytes(Nt, 1))
    want = max(1, -(-target_rows // Nt))          # ceil(target_rows / Nt)
    tb = int(min(max(B, 1), want, cap))
    if force_split and B >= 2:
        tb = min(tb, -(-B // 2))                  # >= 2 blocks so megacore (v7x) gets both TCs
    if sublane_align and tb < B:
        tb = -(-tb // 8) * 8                      # aligned dynamic stores into the Ztd scratch
    return max(tb, 1)


def _vmem_limit(block_bytes):
    # TODO(synk): very long Nt needs flash-style score tiling instead of raising the limit.
    return int(min(max(32 << 20, block_bytes + (8 << 20)), 112 << 20))


# ---------------------------------------------------------------------------
# Shared per-block body: cross_attention + fc_value + weighted sum over the sequence.
# h: (TB, Nt, HIDDEN) bf16, w_qkv: (HIDDEN, QKV) bf16, b_qkv: (1, QKV) f32 -> (TB, HALF) f32
# ---------------------------------------------------------------------------
def _ztd_block(h, w_qkv, b_qkv):
    tb, nt, ed = h.shape
    h2 = h.reshape(tb * nt, ed)                               # bf16, M = TB*Nt rows for the MXU
    qkv = jnp.dot(h2, w_qkv, preferred_element_type=jnp.float32) + b_qkv
    qkv = qkv.reshape(tb, nt, QKV)
    key = qkv[:, :, 0 * HALF:1 * HALF]    # fc_key(h / sqrt(E))  (scale folded into the weight)
    qry = qkv[:, :, 1 * HALF:2 * HALF]    # fc_query(h)
    val = qkv[:, :, 2 * HALF:3 * HALF]    # fc_value(h)
    # g = bmm(key, qry^T): batched contraction over the feature dim, no transpose materialized.
    g = jnp.einsum("bqd,bkd->bqk",
                   key.astype(jnp.bfloat16), qry.astype(jnp.bfloat16),
                   preferred_element_type=jnp.float32)        # (tb, nt, nt)
    m = jnp.max(g, axis=-1, keepdims=True)                    # max_pool2d over last dim -> (tb, nt, 1)
    m = m - jnp.max(m, axis=1, keepdims=True)                 # softmax over the sequence dim
    p = jnp.exp(m)
    # approx reciprocal: ~1e-3 rel. error vs the f32 PyTorch softmax (tolerance, not bit, match).
    attn = p * pl.reciprocal(jnp.sum(p, axis=1, keepdims=True), approx=True)
    return jnp.sum(val * attn, axis=1)                        # Ztd block, (tb, HALF) f32


# ---------------------------------------------------------------------------
# Shared clustering epilogue math (cluster_layer + get_cluster_prob + target_distribution
# + ct + MLPs head). z: (B, HALF) f32. Returns (packed (B, 3*LANE) f32, Center (K, HALF) f32).
# ---------------------------------------------------------------------------
def _cluster_epilogue_math(z, cen, wc, bc, a, wm, bm):
    # cluster_layer: Linear (bf16 operands, f32 acc) + PReLU (slope a from SMEM).
    center = jnp.dot(cen.astype(jnp.bfloat16), wc,
                     preferred_element_type=jnp.float32) + bc              # (K, HALF)
    center = jnp.where(center >= 0.0, center, center * a)

    # get_cluster_prob: ||z - c||^2 = ||z||^2 + ||c||^2 - 2 z.c  (MXU form, no (B,K,384) temp).
    zc = jax.lax.dot_general(z, center, (((1,), (1,)), ((), ())),
                             preferred_element_type=jnp.float32)           # (B, K)
    z_sq = jnp.sum(z * z, axis=-1, keepdims=True)                          # (B, 1)
    # ||c||^2 as a (1, K) row via a ones-row matmul — kept (vs. reduce+transpose) because it
    # lowers unconditionally; it is one tiny MXU op in a once-per-forward epilogue.
    c_sq = jax.lax.dot_general(jnp.ones((1, HALF), jnp.float32), center * center,
                               (((1,), (1,)), ((), ())),
                               preferred_element_type=jnp.float32)         # (1, K)
    ns = jnp.maximum(z_sq + c_sq - 2.0 * zc, 0.0)
    num = 1.0 / (1.0 + ns / ALPHA)
    num = num * num * num if TPOW == 3.0 else num ** TPOW                  # (alpha+1)/2 power
    phi = num / jnp.sum(num, axis=1, keepdims=True)                        # (B, K), exact f32

    # target_distribution (the +1e-9 epsilon matches the PyTorch reference).
    weight = (phi * phi) / (jnp.sum(phi, axis=0, keepdims=True) + 1e-9)
    tgt = weight / jnp.sum(weight, axis=1, keepdims=True)

    # ct = sum_k Center[k] * phi[:, k] == phi @ Center ; Yt = sigmoid(MLPs(ct))
    ct = jnp.dot(phi, center, preferred_element_type=jnp.float32)          # (B, HALF)
    yt = jax.nn.sigmoid(jnp.dot(ct.astype(jnp.bfloat16), wm,
                                preferred_element_type=jnp.float32) + bm)  # (B, LANE)

    # Pack the narrow outputs into one lane-dense (B, 3*LANE) slab: [Yt | phi | tgt].
    k = phi.shape[1]
    zpad = jnp.zeros((phi.shape[0], LANE - k), jnp.float32)
    packed = jnp.concatenate([yt, phi, zpad, tgt, zpad], axis=-1)
    return packed, center


# ---------------------------------------------------------------------------
# Kernels
# ---------------------------------------------------------------------------
def _base_kernel(h_ref, wqkv_ref, bqkv_ref, wm_ref, bm_ref, out_ref):
    """train_base branch: Yt = sigmoid(MLPs(Ztd)), fully parallel over batch blocks."""
    ztd = _ztd_block(h_ref[...], wqkv_ref[...], bqkv_ref[...])             # (TB, HALF) f32
    logits = jnp.dot(ztd.astype(jnp.bfloat16), wm_ref[...],
                     preferred_element_type=jnp.float32) + bm_ref[...]
    out_ref[0] = jax.nn.sigmoid(logits)                                    # lane-dense (TB, LANE)


def _ztd_kernel(h_ref, wqkv_ref, bqkv_ref, ztd_ref):
    """Clustering branch, split path (v7x): batch-parallel Ztd producer."""
    ztd_ref[0] = _ztd_block(h_ref[...], wqkv_ref[...], bqkv_ref[...])


def _cluster_epi_kernel(z_ref, cen_ref, wc_ref, bc_ref, a_ref, wm_ref, bm_ref,
                        small_ref, cen_out_ref):
    """Clustering branch, split path (v7x): tiny single-step epilogue kernel."""
    packed, center = _cluster_epilogue_math(
        z_ref[...], cen_ref[...], wc_ref[...], bc_ref[...], a_ref[0],
        wm_ref[...], bm_ref[...])
    small_ref[...] = packed
    cen_out_ref[...] = center


def _cluster_fused_kernel(h_ref, wqkv_ref, bqkv_ref, cen_ref, wc_ref, bc_ref, a_ref,
                          wm_ref, bm_ref, small_ref, cen_out_ref, ztd_scr):
    """Clustering branch, fused path (v5e/v6e): Ztd accumulated in VMEM scratch; the whole
    cluster epilogue runs under pl.when on the last grid step (single launch)."""
    b = pl.program_id(0)
    tb = h_ref.shape[0]
    ztd = _ztd_block(h_ref[...], wqkv_ref[...], bqkv_ref[...])             # (TB, HALF)
    start = pl.multiple_of(b * tb, tb)
    ztd_scr[pl.ds(start, tb), :] = ztd

    @pl.when(b == pl.num_programs(0) - 1)
    def _epilogue():
        # Outputs use a constant index map ("arbitrary" axis) -> resident, single end-of-grid
        # writeback. Drop padded rows (B_pad >= B) before the batch-coupled epilogue math.
        B = small_ref.shape[0]
        z = ztd_scr[...][:B]
        packed, center = _cluster_epilogue_math(
            z, cen_ref[...], wc_ref[...], bc_ref[...], a_ref[0],
            wm_ref[...], bm_ref[...])
        small_ref[...] = packed
        cen_out_ref[...] = center


# ---------------------------------------------------------------------------
# Wrappers
# ---------------------------------------------------------------------------
def _prepare(params):
    scale = 1.0 / math.sqrt(HIDDEN)
    w_qkv = jnp.concatenate([params["wk"] * scale, params["wq"], params["wv"]],
                            axis=1).astype(jnp.bfloat16)                   # (768, 1152) bf16
    b_qkv = jnp.concatenate([params["bk"], params["bq"], params["bv"]], axis=1)  # (1, 1152) f32
    C = params["wm"].shape[1]
    wm_pad = jnp.zeros((HALF, LANE), jnp.float32).at[:, :C].set(
        params["wm"]).astype(jnp.bfloat16)                                 # lane-padded, bf16
    bm_pad = jnp.zeros((1, LANE), jnp.float32).at[:, :C].set(params["bm"])
    wc_bf = params["wc"].astype(jnp.bfloat16)
    return w_qkv, b_qkv, wm_pad, bm_pad, wc_bf, C


def _pad_batch(h, TB):
    B = h.shape[0]
    nb = -(-B // TB)
    B_pad = nb * TB
    if B_pad != B:
        h = jnp.pad(h, ((0, B_pad - B), (0, 0), (0, 0)))
    return h, nb, B_pad


def _base_call(h, w_qkv, b_qkv, wm_pad, bm_pad, C):
    B, Nt, E = h.shape
    TB = _pick_tb(B, Nt)
    h, nb, B_pad = _pad_batch(h, TB)
    out = pl.pallas_call(
        _base_kernel,
        out_shape=jax.ShapeDtypeStruct((nb, TB, LANE), jnp.float32),
        grid=(nb,),
        in_specs=[
            pl.BlockSpec((TB, Nt, E), lambda b: (b, 0, 0)),
            pl.BlockSpec((E, QKV), lambda b: (0, 0)),
            pl.BlockSpec((1, QKV), lambda b: (0, 0)),
            pl.BlockSpec((HALF, LANE), lambda b: (0, 0)),
            pl.BlockSpec((1, LANE), lambda b: (0, 0)),
        ],
        out_specs=pl.BlockSpec((1, TB, LANE), lambda b: (b, 0, 0)),
        compiler_params=pltpu.CompilerParams(
            dimension_semantics=("parallel",),
            vmem_limit_bytes=_vmem_limit(_block_vmem_bytes(Nt, TB))),
    )(h, w_qkv, b_qkv, wm_pad, bm_pad)
    return out.reshape(B_pad, LANE)[:B, :C]


def _cluster_call_split(h, w_qkv, b_qkv, center, wc, bc, prelu_a, wm_pad, bm_pad, C):
    """v7x path: batch-parallel Ztd kernel + tiny epilogue kernel (keeps both TCs busy)."""
    B, Nt, E = h.shape
    K = center.shape[0]
    TB = _pick_tb(B, Nt)
    h, nb, B_pad = _pad_batch(h, TB)

    ztd = pl.pallas_call(
        _ztd_kernel,
        out_shape=jax.ShapeDtypeStruct((nb, TB, HALF), jnp.float32),
        grid=(nb,),
        in_specs=[
            pl.BlockSpec((TB, Nt, E), lambda b: (b, 0, 0)),
            pl.BlockSpec((E, QKV), lambda b: (0, 0)),
            pl.BlockSpec((1, QKV), lambda b: (0, 0)),
        ],
        out_specs=pl.BlockSpec((1, TB, HALF), lambda b: (b, 0, 0)),
        compiler_params=pltpu.CompilerParams(
            dimension_semantics=("parallel",),
            vmem_limit_bytes=_vmem_limit(_block_vmem_bytes(Nt, TB))),
    )(h, w_qkv, b_qkv)
    ztd = ztd.reshape(B_pad, HALF)[:B]          # drop padded rows before the batch-coupled epilogue

    epi_limit = int(min(max(32 << 20, 6 * B * HALF * 4 + (8 << 20)), 112 << 20))
    small, center_out = pl.pallas_call(
        _cluster_epi_kernel,
        out_shape=(jax.ShapeDtypeStruct((B, 3 * LANE), jnp.float32),   # packed [Yt | phi | tgt]
                   jax.ShapeDtypeStruct((K, HALF), jnp.float32)),      # transformed Center
        grid=(1,),
        in_specs=[
            pl.BlockSpec((B, HALF), lambda i: (0, 0)),
            pl.BlockSpec((K, HALF), lambda i: (0, 0)),
            pl.BlockSpec((HALF, HALF), lambda i: (0, 0)),
            pl.BlockSpec((1, HALF), lambda i: (0, 0)),
            pl.BlockSpec(memory_space=pltpu.MemorySpace.SMEM),         # PReLU slope, (1,) scalar
            pl.BlockSpec((HALF, LANE), lambda i: (0, 0)),
            pl.BlockSpec((1, LANE), lambda i: (0, 0)),
        ],
        out_specs=(pl.BlockSpec((B, 3 * LANE), lambda i: (0, 0)),
                   pl.BlockSpec((K, HALF), lambda i: (0, 0))),
        compiler_params=pltpu.CompilerParams(
            dimension_semantics=("arbitrary",),
            vmem_limit_bytes=epi_limit),
    )(ztd, center, wc, bc, prelu_a, wm_pad, bm_pad)

    yt = small[:, :C]
    phi = small[:, LANE:LANE + K]
    tgt = small[:, 2 * LANE:2 * LANE + K]
    return yt, center_out, phi, tgt


def _cluster_call_fused(h, w_qkv, b_qkv, center, wc, bc, prelu_a, wm_pad, bm_pad, C):
    """v5e/v6e path (single TC): one launch — Ztd in VMEM scratch + epilogue under pl.when."""
    B, Nt, E = h.shape
    K = center.shape[0]
    TB = _pick_tb(B, Nt, force_split=False, sublane_align=True)
    h, nb, B_pad = _pad_batch(h, TB)

    extra = B_pad * HALF * 4 + 4 * B * 3 * LANE * 4            # Ztd scratch + packed output
    limit = _vmem_limit(_block_vmem_bytes(Nt, TB) + extra)
    small, center_out = pl.pallas_call(
        _cluster_fused_kernel,
        out_shape=(jax.ShapeDtypeStruct((B, 3 * LANE), jnp.float32),
                   jax.ShapeDtypeStruct((K, HALF), jnp.float32)),
        grid=(nb,),
        in_specs=[
            pl.BlockSpec((TB, Nt, E), lambda b: (b, 0, 0)),
            pl.BlockSpec((E, QKV), lambda b: (0, 0)),
            pl.BlockSpec((1, QKV), lambda b: (0, 0)),
            pl.BlockSpec((K, HALF), lambda b: (0, 0)),
            pl.BlockSpec((HALF, HALF), lambda b: (0, 0)),
            pl.BlockSpec((1, HALF), lambda b: (0, 0)),
            pl.BlockSpec(memory_space=pltpu.MemorySpace.SMEM),
            pl.BlockSpec((HALF, LANE), lambda b: (0, 0)),
            pl.BlockSpec((1, LANE), lambda b: (0, 0)),
        ],
        out_specs=(pl.BlockSpec((B, 3 * LANE), lambda b: (0, 0)),
                   pl.BlockSpec((K, HALF), lambda b: (0, 0))),
        scratch_shapes=[pltpu.VMEM((B_pad, HALF), jnp.float32)],   # Ztd accumulator
        compiler_params=pltpu.CompilerParams(
            # "arbitrary": the epilogue needs the full-batch Ztd scratch + resident outputs.
            dimension_semantics=("arbitrary",),
            vmem_limit_bytes=limit),
    )(h, w_qkv, b_qkv, center, wc, bc, prelu_a, wm_pad, bm_pad)

    yt = small[:, :C]
    phi = small[:, LANE:LANE + K]
    tgt = small[:, 2 * LANE:2 * LANE + K]
    return yt, center_out, phi, tgt


# ---------------------------------------------------------------------------
# Module glue
# ---------------------------------------------------------------------------
def init_params(key, class_3=True):
    C = 3 if class_3 else 25
    ks = jax.random.split(key, 10)

    def w(k, shape):
        return (jax.random.normal(k, shape, jnp.float32) * 0.02).astype(jnp.float32)

    return dict(
        wk=w(ks[0], (HIDDEN, HALF)), bk=w(ks[1], (1, HALF)),   # fc_key
        wq=w(ks[2], (HIDDEN, HALF)), bq=w(ks[3], (1, HALF)),   # fc_query
        wv=w(ks[4], (HIDDEN, HALF)), bv=w(ks[5], (1, HALF)),   # fc_value
        wc=w(ks[6], (HALF, HALF)),   bc=w(ks[7], (1, HALF)),   # cluster_layer Linear
        prelu_a=jnp.full((1,), 0.25, jnp.float32),             # nn.PReLU() default slope
        wm=w(ks[8], (HALF, C)),      bm=w(ks[9], (1, C)),      # MLPs Linear
    )


@functools.partial(jax.jit, static_argnames=("self_att", "train_base", "cluster_mode"))
def mllt_forward(hidden_states, center, params, *, self_att="self_att",
                 train_base=False, cluster_mode="auto"):
    # hidden_states plays the role of encoder(**Ot).last_hidden_state (see TODO at top).
    assert self_att == "self_att"
    w_qkv, b_qkv, wm_pad, bm_pad, wc_bf, C = _prepare(params)
    h = hidden_states.astype(jnp.bfloat16)      # halve the dominant HBM stream; f32 MXU accum
    if train_base:
        return _base_call(h, w_qkv, b_qkv, wm_pad, bm_pad, C)
    if cluster_mode == "auto":
        cluster_mode = "split" if _multi_tensorcore() else "fused"
    call = _cluster_call_split if cluster_mode == "split" else _cluster_call_fused
    return call(h, w_qkv, b_qkv, center, wc_bf, params["bc"], params["prelu_a"],
                wm_pad, bm_pad, C)


if __name__ == "__main__":
    key = jax.random.PRNGKey(0)
    kp, kh, kc = jax.random.split(key, 3)

    B, Nt, K = 3, 8, 4                        # odd batch exercises the padded/ragged grid path
    params = init_params(kp, class_3=True)    # 3-class head
    hidden_states = jax.random.normal(kh, (B, Nt, HIDDEN), jnp.float32)
    center = jax.random.normal(kc, (K, HALF), jnp.float32)

    # train_base=True branch (single fused kernel: attention + head, batch-parallel)
    yt_base = mllt_forward(hidden_states, center, params, train_base=True)
    # train_base=False branch — exercise both clustering implementations
    # (auto picks "fused" on single-TC chips, "split" on v7x).
    out_fused = mllt_forward(hidden_states, center, params, train_base=False,
                             cluster_mode="fused")
    out_split = mllt_forward(hidden_states, center, params, train_base=False,
                             cluster_mode="split")

    jax.block_until_ready((yt_base, out_fused, out_split))
    print("KERNEL_OK")
</pallas_src>

<mosaic_0001>
module attributes {stable_mosaic.version = 11 : i64} {
  func.func @_base_kernel(%arg0: i32, %arg1: memref<2x8x768xbf16, #tpu.memory_space<vmem>>, %arg2: memref<768x1152xbf16, #tpu.memory_space<vmem>>, %arg3: memref<1x1152xf32, #tpu.memory_space<vmem>>, %arg4: memref<384x128xbf16, #tpu.memory_space<vmem>>, %arg5: memref<1x128xf32, #tpu.memory_space<vmem>>, %arg6: memref<1x2x128xf32, #tpu.memory_space<vmem>>) attributes {dimension_semantics = [#tpu.dimension_semantics<parallel>], iteration_bounds = array<i64: 2>, scalar_prefetch = 0 : i64, scratch_operands = 0 : i64, tpu.core_type = #tpu.core_type<tc>, window_params = [{transform_indices = @transform_0, window_bounds = array<i64: 2, 8, 768>}, {pipeline_mode = #tpu.pipeline_mode<synchronous>, transform_indices = @transform_1, window_bounds = array<i64: 768, 1152>}, {pipeline_mode = #tpu.pipeline_mode<synchronous>, transform_indices = @transform_2, window_bounds = array<i64: 1, 1152>}, {pipeline_mode = #tpu.pipeline_mode<synchronous>, transform_indices = @transform_3, window_bounds = array<i64: 384, 128>}, {pipeline_mode = #tpu.pipeline_mode<synchronous>, transform_indices = @transform_4, window_bounds = array<i64: 1, 128>}, {transform_indices = @transform_5, window_bounds = array<i64: 1, 2, 128>}]} {
    %c0 = arith.constant 0 : index
    %c0_0 = arith.constant 0 : index
    %c0_1 = arith.constant 0 : index
    %0 = vector.load %arg1[%c0, %c0_0, %c0_1] : memref<2x8x768xbf16, #tpu.memory_space<vmem>>, vector<2x8x768xbf16>
    %c0_2 = arith.constant 0 : index
    %c0_3 = arith.constant 0 : index
    %1 = vector.load %arg2[%c0_2, %c0_3] : memref<768x1152xbf16, #tpu.memory_space<vmem>>, vector<768x1152xbf16>
    %c0_4 = arith.constant 0 : index
    %c0_5 = arith.constant 0 : index
    %2 = vector.load %arg3[%c0_4, %c0_5] : memref<1x1152xf32, #tpu.memory_space<vmem>>, vector<1x1152xf32>
    %3 = vector.shape_cast %0 : vector<2x8x768xbf16> to vector<16x768xbf16>
    %cst = arith.constant dense<0.000000e+00> : vector<16x1152xf32>
    %4 = tpu.matmul %3, %1, %cst {dimension_numbers = #tpu.dot_dimension_numbers<[1], [0], [0], [1], [0, 0, 1, 1], [], []>} : vector<16x768xbf16>, vector<768x1152xbf16>, vector<16x1152xf32> -> vector<16x1152xf32>
    %5 = vector.broadcast %2 : vector<1x1152xf32> to vector<16x1152xf32>
    %6 = arith.addf %4, %5 : vector<16x1152xf32>
    %7 = vector.shape_cast %6 : vector<16x1152xf32> to vector<2x8x1152xf32>
    %8 = vector.extract_strided_slice %7 {offsets = [0, 0, 0], sizes = [2, 8, 384], strides = [1, 1, 1]} : vector<2x8x1152xf32> to vector<2x8x384xf32>
    %9 = vector.extract_strided_slice %7 {offsets = [0, 0, 384], sizes = [2, 8, 384], strides = [1, 1, 1]} : vector<2x8x1152xf32> to vector<2x8x384xf32>
    %10 = vector.extract_strided_slice %7 {offsets = [0, 0, 768], sizes = [2, 8, 384], strides = [1, 1, 1]} : vector<2x8x1152xf32> to vector<2x8x384xf32>
    %11 = arith.truncf %8 : vector<2x8x384xf32> to vector<2x8x384xbf16>
    %12 = arith.truncf %9 : vector<2x8x384xf32> to vector<2x8x384xbf16>
    "tpu.trace_start"() <{level = 10 : i32, message = "bqd,bkd->bqk"}> : () -> ()
    %cst_6 = arith.constant dense<0.000000e+00> : vector<2x8x8xf32>
    %13 = tpu.matmul %11, %12, %cst_6 {dimension_numbers = #tpu.dot_dimension_numbers<[2], [2], [1], [1], [0, 0, 0, 1, 1, 1], [0], [0]>} : vector<2x8x384xbf16>, vector<2x8x384xbf16>, vector<2x8x8xf32> -> vector<2x8x8xf32>
    "tpu.trace_stop"() : () -> ()
    %cst_7 = arith.constant dense<0xFF800000> : vector<2x8xf32>
    %14 = vector.multi_reduction <maximumf>, %13, %cst_7 [2] : vector<2x8x8xf32> to vector<2x8xf32>
    %15 = vector.shape_cast %14 : vector<2x8xf32> to vector<2x8x1xf32>
    %cst_8 = arith.constant dense<0xFF800000> : vector<2x1xf32>
    %16 = vector.multi_reduction <maximumf>, %15, %cst_8 [1] : vector<2x8x1xf32> to vector<2x1xf32>
    %17 = vector.shape_cast %16 : vector<2x1xf32> to vector<2x1x1xf32>
    %18 = vector.broadcast %17 : vector<2x1x1xf32> to vector<2x8x1xf32>
    %19 = arith.subf %15, %18 : vector<2x8x1xf32>
    %20 = math.exp %19 : vector<2x8x1xf32>
    %cst_9 = arith.constant dense<0.000000e+00> : vector<2x1xf32>
    %21 = vector.multi_reduction <add>, %20, %cst_9 [1] : vector<2x8x1xf32> to vector<2x1xf32>
    %22 = vector.shape_cast %21 : vector<2x1xf32> to vector<2x1x1xf32>
    %23 = tpu.reciprocal %22 {approx = true} : vector<2x1x1xf32> -> vector<2x1x1xf32>
    %24 = vector.broadcast %23 : vector<2x1x1xf32> to vector<2x8x1xf32>
    %25 = arith.mulf %20, %24 : vector<2x8x1xf32>
    %26 = vector.broadcast %25 : vector<2x8x1xf32> to vector<2x8x384xf32>
    %27 = arith.mulf %10, %26 : vector<2x8x384xf32>
    %cst_10 = arith.constant dense<0.000000e+00> : vector<2x384xf32>
    %28 = vector.multi_reduction <add>, %27, %cst_10 [1] : vector<2x8x384xf32> to vector<2x384xf32>
    %29 = arith.truncf %28 : vector<2x384xf32> to vector<2x384xbf16>
    %c0_11 = arith.constant 0 : index
    %c0_12 = arith.constant 0 : index
    %30 = vector.load %arg4[%c0_11, %c0_12] : memref<384x128xbf16, #tpu.memory_space<vmem>>, vector<384x128xbf16>
    %cst_13 = arith.constant dense<0.000000e+00> : vector<2x128xf32>
    %31 = tpu.matmul %29, %30, %cst_13 {dimension_numbers = #tpu.dot_dimension_numbers<[1], [0], [0], [1], [0, 0, 1, 1], [], []>} : vector<2x384xbf16>, vector<384x128xbf16>, vector<2x128xf32> -> vector<2x128xf32>
    %c0_14 = arith.constant 0 : index
    %c0_15 = arith.constant 0 : index
    %32 = vector.load %arg5[%c0_14, %c0_15] : memref<1x128xf32, #tpu.memory_space<vmem>>, vector<1x128xf32>
    %33 = vector.broadcast %32 : vector<1x128xf32> to vector<2x128xf32>
    %34 = arith.addf %31, %33 : vector<2x128xf32>
    %35 = arith.negf %34 : vector<2x128xf32>
    %36 = math.exp %35 : vector<2x128xf32>
    %cst_16 = arith.constant 1.000000e+00 : f32
    %37 = vector.broadcast %cst_16 : f32 to vector<2x128xf32>
    %38 = arith.addf %37, %36 : vector<2x128xf32>
    %39 = arith.divf %37, %38 : vector<2x128xf32>
    %c0_17 = arith.constant 0 : index
    %c0_18 = arith.constant 0 : index
    %c0_19 = arith.constant 0 : index
    %40 = vector.load %arg6[%c0_17, %c0_18, %c0_19] : memref<1x2x128xf32, #tpu.memory_space<vmem>>, vector<1x2x128xf32>
    %41 = vector.shape_cast %40 : vector<1x2x128xf32> to vector<2x128xf32>
    %42 = vector.shape_cast %39 : vector<2x128xf32> to vector<1x2x128xf32>
    tpu.vector_store %arg6[%c0_17, %c0_18, %c0_19], %42 {strides = array<i32>} : memref<1x2x128xf32, #tpu.memory_space<vmem>>, vector<1x2x128xf32>,
    return
  }
  func.func @transform_0(%arg0: i32) -> (i32, i32, i32) {
    %c0_i32 = arith.constant 0 : i32
    %c0_i32_0 = arith.constant 0 : i32
    %c0_i32_1 = arith.constant 0 : i32
    return %arg0, %c0_i32, %c0_i32_0 : i32, i32, i32
  }
  func.func @transform_1(%arg0: i32) -> (i32, i32) {
    %c0_i32 = arith.constant 0 : i32
    %c0_i32_0 = arith.constant 0 : i32
    %c0_i32_1 = arith.constant 0 : i32
    return %c0_i32, %c0_i32_0 : i32, i32
  }
  func.func @transform_2(%arg0: i32) -> (i32, i32) {
    %c0_i32 = arith.constant 0 : i32
    %c0_i32_0 = arith.constant 0 : i32
    %c0_i32_1 = arith.constant 0 : i32
    return %c0_i32, %c0_i32_0 : i32, i32
  }
  func.func @transform_3(%arg0: i32) -> (i32, i32) {
    %c0_i32 = arith.constant 0 : i32
    %c0_i32_0 = arith.constant 0 : i32
    %c0_i32_1 = arith.constant 0 : i32
    return %c0_i32, %c0_i32_0 : i32, i32
  }
  func.func @transform_4(%arg0: i32) -> (i32, i32) {
    %c0_i32 = arith.constant 0 : i32
    %c0_i32_0 = arith.constant 0 : i32
    %c0_i32_1 = arith.constant 0 : i32
    return %c0_i32, %c0_i32_0 : i32, i32
  }
  func.func @transform_5(%arg0: i32) -> (i32, i32, i32) {
    %c0_i32 = arith.constant 0 : i32
    %c0_i32_0 = arith.constant 0 : i32
    %c0_i32_1 = arith.constant 0 : i32
    return %arg0, %c0_i32, %c0_i32_0 : i32, i32, i32
  }
}

</mosaic_0001>

<llo_original>
// kernel: mllt_forward.1
$region0: #{mllt_forward.1}
  #allocation0 [shape = 'u32[]', space=smem, size = 0x4, offset = 0x4, fixed_abs, tag = 'smem constant byte address 0x4 - core index']
  #allocation1 [shape = 'u32[144,128]{1,0:T(1,128)}', space=vmem, size = 0x12000, scoped, tag = 'internal scratch']
  %s0 = inlined_call_operand.vmem [shape: bf16[4,8,768], index: 0, kind: input, shape index: {}]
  %s1 = inlined_call_operand.vmem [shape: bf16[768,1152], index: 1, kind: input, shape index: {}]
  %s2 = inlined_call_operand.vmem [shape: f32[1,1152], index: 2, kind: input, shape index: {}]
  %s3 = inlined_call_operand.vmem [shape: bf16[384,128], index: 3, kind: input, shape index: {}]
  %s4 = inlined_call_operand.vmem [shape: f32[1,128], index: 4, kind: input, shape index: {}]
  %s5 = inlined_call_operand.hbm [shape: f32[2,2,128], index: 5, kind: output, shape index: {}]
  %s6 = sld [smem:[#allocation0]]
  $region53: #{mllt_forward.1} parent=0
    _
  %s8 = ssub.s32 1, %s6
  %s9 = scalar_select 0, %s8, %s6
  $region1: #{mllt_forward.1} parent=0
    #allocation2 [shape = 'u8[2048]{0}', space=vmem, size = 0x800, scoped, tag = 'output window, operand 0']
    #allocation3 [shape = 's32[2]{0}', space=sflag, size = 0x8, scoped, tag = 'scoped memory for mllt_forward.1']
    %10 = vsyncpa [#allocation3], 0
    %s11 = scalar_lea.sflag [#allocation3], 1
    %12 = vsyncpa %s11, 0
    loop: start=0, step=1, limit=4
    $region2: #{mllt_forward.1} parent=1 // loop_pre_header
      _
    $region3: #{mllt_forward.1} parent=1 // loop_header
      %s14 = sphi 0, %s18
      %p15 = scmp.ge.s32.totalorder %s14, 4
      %s24 = sphi 0, %s26
      %s27 = sphi 0, %s24
      %s28 = sphi 0, %s27
      %s44 = sphi 0, %s28
      %s48 = sphi 0, %s48
      %s50 = sphi 0, %s48
      %s51 = sphi 0, %s50
      %s65 = sphi 0, %s51
      %s69 = sphi 0, %s69
      %s71 = sphi 0, %s69
      %s72 = sphi 0, %s71
      %s86 = sphi 0, %s72
      %s90 = sphi 0, %s90
      %s92 = sphi 0, %s90
      %s93 = sphi 0, %s92
      %s107 = sphi 0, %s93
      %s111 = sphi 0, %s111
      %s113 = sphi 0, %s111
      %s114 = sphi 0, %s113
      %s128 = sphi 0, %s114
      %s134 = sphi 0, %s136
      %s137 = sphi 0, %s134
      %s138 = sphi 0, %s137
      %s154 = sphi 0, %s138
    $region4: #{mllt_forward.1} parent=1 // loop_header_branch
      %17 = sbr.rel (%p15) target = $region8
    $region5: #{mllt_forward.1} parent=1 // loop_body
      %s19 = ssub.s32 %s14, 1
      %s20 = ssub.s32 %s14, 2
      %s21 = sadd.s32 %s14, 1
      %s22 = ssub.s32 %s14, %s21
      %p23 = scmp.eq.s32.totalorder %s22, 0
      %s25 = sadd.s32 %s24, 1
      %s26 = scalar_select %p23, %s24, %s25
      %p29 = pneg %p23
      %p30 = scmp.eq.s32.totalorder %s14, 1
      %p31 = por %p29, %p30
      %p32 = scmp.ne.s32.totalorder %s24, %s27
      %p33 = scmp.eq.s32.totalorder %s14, 0
      %p34 = por %p32, %p33
      %p35 = scmp.ne.s32.totalorder %s24, %s27
      %p36 = scmp.eq.s32.totalorder %s19, 1
      %p37 = por %p35, %p36
      %p38 = scmp.ne.s32.totalorder %s27, %s28
      %p39 = scmp.eq.s32.totalorder %s19, 0
      %p40 = por %p38, %p39
      %p41 = scmp.ne.s32.totalorder %s27, %s28
      %p42 = scmp.eq.s32.totalorder %s20, 1
      %p43 = por %p41, %p42
      %p45 = scmp.ne.s32.totalorder %s28, %s44
      %p46 = scmp.eq.s32.totalorder %s20, 0
      %p47 = por %p45, %p46
      %s49 = sadd.s32 %s48, 1
      %p52 = scmp.eq.s32.totalorder %s14, 1
      %p53 = scmp.ne.s32.totalorder %s48, %s50
      %p54 = scmp.eq.s32.totalorder %s14, 0
      %p55 = por %p53, %p54
      %p56 = scmp.ne.s32.totalorder %s48, %s50
      %p57 = scmp.eq.s32.totalorder %s19, 1
      %p58 = por %p56, %p57
      %p59 = scmp.ne.s32.totalorder %s50, %s51
      %p60 = scmp.eq.s32.totalorder %s19, 0
      %p61 = por %p59, %p60
      %p62 = scmp.ne.s32.totalorder %s50, %s51
      %p63 = scmp.eq.s32.totalorder %s20, 1
      %p64 = por %p62, %p63
      %p66 = scmp.ne.s32.totalorder %s51, %s65
      %p67 = scmp.eq.s32.totalorder %s20, 0
      %p68 = por %p66, %p67
      %s70 = sadd.s32 %s69, 1
      %p73 = scmp.eq.s32.totalorder %s14, 1
      %p74 = scmp.ne.s32.totalorder %s69, %s71
      %p75 = scmp.eq.s32.totalorder %s14, 0
      %p76 = por %p74, %p75
      %p77 = scmp.ne.s32.totalorder %s69, %s71
      %p78 = scmp.eq.s32.totalorder %s19, 1
      %p79 = por %p77, %p78
      %p80 = scmp.ne.s32.totalorder %s71, %s72
      %p81 = scmp.eq.s32.totalorder %s19, 0
      %p82 = por %p80, %p81
      %p83 = scmp.ne.s32.totalorder %s71, %s72
      %p84 = scmp.eq.s32.totalorder %s20, 1
      %p85 = por %p83, %p84
      %p87 = scmp.ne.s32.totalorder %s72, %s86
      %p88 = scmp.eq.s32.totalorder %s20, 0
      %p89 = por %p87, %p88
      %s91 = sadd.s32 %s90, 1
      %p94 = scmp.eq.s32.totalorder %s14, 1
      %p95 = scmp.ne.s32.totalorder %s90, %s92
      %p96 = scmp.eq.s32.totalorder %s14, 0
      %p97 = por %p95, %p96
      %p98 = scmp.ne.s32.totalorder %s90, %s92
      %p99 = scmp.eq.s32.totalorder %s19, 1
      %p100 = por %p98, %p99
      %p101 = scmp.ne.s32.totalorder %s92, %s93
      %p102 = scmp.eq.s32.totalorder %s19, 0
      %p103 = por %p101, %p102
      %p104 = scmp.ne.s32.totalorder %s92, %s93
      %p105 = scmp.eq.s32.totalorder %s20, 1
      %p106 = por %p104, %p105
      %p108 = scmp.ne.s32.totalorder %s93, %s107
      %p109 = scmp.eq.s32.totalorder %s20, 0
      %p110 = por %p108, %p109
      %s112 = sadd.s32 %s111, 1
      %p115 = scmp.eq.s32.totalorder %s14, 1
      %p116 = scmp.ne.s32.totalorder %s111, %s113
      %p117 = scmp.eq.s32.totalorder %s14, 0
      %p118 = por %p116, %p117
      %p119 = scmp.ne.s32.totalorder %s111, %s113
      %p120 = scmp.eq.s32.totalorder %s19, 1
      %p121 = por %p119, %p120
      %p122 = scmp.ne.s32.totalorder %s113, %s114
      %p123 = scmp.eq.s32.totalorder %s19, 0
      %p124 = por %p122, %p123
      %p125 = scmp.ne.s32.totalorder %s113, %s114
      %p126 = scmp.eq.s32.totalorder %s20, 1
      %p127 = por %p125, %p126
      %p129 = scmp.ne.s32.totalorder %s114, %s128
      %p130 = scmp.eq.s32.totalorder %s20, 0
      %p131 = por %p129, %p130
      %s132 = ssub.s32 %s14, %s21
      %p133 = scmp.eq.s32.totalorder %s132, 0
      %s135 = sadd.s32 %s134, 1
      %s136 = scalar_select %p133, %s134, %s135
      %p139 = pneg %p133
      %p140 = scmp.eq.s32.totalorder %s14, 1
      %p141 = por %p139, %p140
      %p142 = scmp.ne.s32.totalorder %s134, %s137
      %p143 = scmp.eq.s32.totalorder %s14, 0
      %p144 = por %p142, %p143
      %p145 = scmp.ne.s32.totalorder %s134, %s137
      %p146 = scmp.eq.s32.totalorder %s19, 1
      %p147 = por %p145, %p146
      %p148 = scmp.ne.s32.totalorder %s137, %s138
      %p149 = scmp.eq.s32.totalorder %s19, 0
      %p150 = por %p148, %p149
      %p151 = scmp.ne.s32.totalorder %s137, %s138
      %p152 = scmp.eq.s32.totalorder %s20, 1
      %p153 = por %p151, %p152
      %p155 = scmp.ne.s32.totalorder %s138, %s154
      %p156 = scmp.eq.s32.totalorder %s20, 0
      %p157 = por %p155, %p156
      %p158 = scmp.le.s32.totalorder 1, %s14
      %p159 = scmp.lt.s32.totalorder %s14, 3
      %p160 = pnand %p158, %p159
      %p161 = pneg %p160
      // Predicated region
      $region9: #{mllt_forward.1} parent=5 // pred_check
        _
      $region10: #{mllt_forward.1} parent=5 // pred_check_branch
        %163 = sbr.rel (%p160) target = $region12
      $region11: #{mllt_forward.1} parent=5 // pred_region
        %s164 = ssub.s32 %s14, 1
        // Predicated region
        $region13: #{mllt_forward.1} parent=11 // pred_check
          %p165 = pneg %p61
        $region14: #{mllt_forward.1} parent=11 // pred_check_branch
          %167 = sbr.rel (%p165) target = $region16
        $region15: #{mllt_forward.1} parent=11 // pred_region
          _
        $region16: #{mllt_forward.1} parent=11 // pred_fallthru
          _
        // Predicated region
        $region17: #{mllt_forward.1} parent=11 // pred_check
          %p168 = pneg %p82
        $region18: #{mllt_forward.1} parent=11 // pred_check_branch
          %170 = sbr.rel (%p168) target = $region20
        $region19: #{mllt_forward.1} parent=11 // pred_region
          _
        $region20: #{mllt_forward.1} parent=11 // pred_fallthru
          _
        // Predicated region
        $region21: #{mllt_forward.1} parent=11 // pred_check
          %p171 = pneg %p103
        $region22: #{mllt_forward.1} parent=11 // pred_check_branch
          %173 = sbr.rel (%p171) target = $region24
        $region23: #{mllt_forward.1} parent=11 // pred_region
          _
        $region24: #{mllt_forward.1} parent=11 // pred_fallthru
          _
        // Predicated region
        $region25: #{mllt_forward.1} parent=11 // pred_check
          %p174 = pneg %p124
        $region26: #{mllt_forward.1} parent=11 // pred_check_branch
          %176 = sbr.rel (%p174) target = $region28
        $region27: #{mllt_forward.1} parent=11 // pred_region
          _
        $region28: #{mllt_forward.1} parent=11 // pred_fallthru
          _
      $region12: #{mllt_forward.1} parent=5 // pred_fallthru
        _
      %p177 = scmp.lt.s32.totalorder %s14, 2
      // Predicated region
      $region29: #{mllt_forward.1} parent=5 // pred_check
        %p178 = pneg %p177
      $region30: #{mllt_forward.1} parent=5 // pred_check_branch
        %180 = sbr.rel (%p178) target = $region32
      $region31: #{mllt_forward.1} parent=5 // pred_region
        // Predicated region
        $region33: #{mllt_forward.1} parent=31 // pred_check
          %p181 = pneg %p34
        $region34: #{mllt_forward.1} parent=31 // pred_check_branch
          %183 = sbr.rel (%p181) target = $region36
        $region35: #{mllt_forward.1} parent=31 // pred_region
          %s184 = smul.u32 2, %s14
          %p185 = scmp.lt.s32.totalorder %s184, 3
          %s186 = scalar_select %p185, %s184, 3
          %s187 = smul.addr %s186, 6
          %s188 = smul.addr %s187, 4
          %s189 = scalar_lea.vmem %s0, %s188
          %s190 = smul.u32 2, %s14
        $region36: #{mllt_forward.1} parent=31 // pred_fallthru
          _
      $region32: #{mllt_forward.1} parent=5 // pred_fallthru
        _
      %p191 = scmp.le.s32.totalorder 1, %s14
      %p192 = scmp.lt.s32.totalorder %s14, 3
      %p193 = pnand %p191, %p192
      %p194 = pneg %p193
      // Predicated region
      $region37: #{mllt_forward.1} parent=5 // pred_check
        _
      $region38: #{mllt_forward.1} parent=5 // pred_check_branch
        %196 = sbr.rel (%p193) target = $region40
      $region39: #{mllt_forward.1} parent=5 // pred_region
        %s197 = ssub.s32 %s14, 1
        %s198 = smul.u32 2, %s19
        %p199 = scmp.lt.s32.totalorder %s198, 3
        %s200 = scalar_select %p199, %s198, 3
        %s201 = smul.addr %s200, 6
        %s202 = smul.addr %s201, 4
        %s203 = scalar_lea.vmem %s0, %s202
        %p204 = pneg %p40
        %p205 = pneg %p37
        %p206 = pneg %p61
        %p207 = pneg %p58
        %p208 = pneg %p82
        %p209 = pneg %p79
        %p210 = pneg %p103
        %p211 = pneg %p100
        %p212 = pneg %p124
        %p213 = pneg %p121
        %p214 = pneg %p150
        %p215 = pneg %p147
        %s216 = sand.u32 %s137, 1
        %s217 = scalar_lea.sflag [#allocation3], %s216
        %s218 = sand.u32 %s137, 1
        %s219 = smul.addr %s218, 2
        %s220 = scalar_lea.vmem [#allocation2], %s219
        %s221 = smul.u32 2, %s19
        %p222 = scmp.lt.s32.totalorder %s221, 3
        %s223 = scalar_select %p222, %s221, 3
        %s224 = smul.addr %s223, 6
        %s225 = smul.addr %s224, 4
        %s226 = scalar_lea.vmem %s0, %s225
        %s227 = smul.u32 2, %s19
        %v229 = vld [vmem:[%s226] sm:$0xff]
        %v230 = vld [vmem:[%s226 + $0x8] sm:$0xff]
        %v231 = vld [vmem:[%s226 + $0x10] sm:$0xff]
        %v232 = vld [vmem:[%s226 + $0x18] sm:$0xff]
        %v233 = vld [vmem:[%s226 + $0x20] sm:$0xff]
        %v234 = vld [vmem:[%s226 + $0x28] sm:$0xff]
        %v235 = vld [vmem:[%s1] sm:$0xff]
        %v236 = vld [vmem:[%s1 + $0x8] sm:$0xff]
        %v237 = vld [vmem:[%s1 + $0x10] sm:$0xff]
        %v238 = vld [vmem:[%s1 + $0x18] sm:$0xff]
        %v239 = vld [vmem:[%s1 + $0x20] sm:$0xf]
        %v240 = vld [vmem:[%s1 + $0x24] sm:$0xff]
        %v241 = vld [vmem:[%s1 + $0x2c] sm:$0xff]
        %v242 = vld [vmem:[%s1 + $0x34] sm:$0xff]
        %v243 = vld [vmem:[%s1 + $0x3c] sm:$0xff]
        %v244 = vld [vmem:[%s1 + $0x44] sm:$0xf]
        %v245 = vld [vmem:[%s1 + $0x48] sm:$0xff]
        %v246 = vld [vmem:[%s1 + $0x50] sm:$0xff]
        %v247 = vld [vmem:[%s1 + $0x58] sm:$0xff]
        %v248 = vld [vmem:[%s1 + $0x60] sm:$0xff]
        %v249 = vld [vmem:[%s1 + $0x68] sm:$0xf]
        %v250 = vld [vmem:[%s1 + $0x6c] sm:$0xff]
        %v251 = vld [vmem:[%s1 + $0x74] sm:$0xff]
        %v252 = vld [vmem:[%s1 + $0x7c] sm:$0xff]
        %v253 = vld [vmem:[%s1 + $0x84] sm:$0xff]
        %v254 = vld [vmem:[%s1 + $0x8c] sm:$0xf]
        %v255 = vld [vmem:[%s1 + $0x90] sm:$0xff]
        %v256 = vld [vmem:[%s1 + $0x98] sm:$0xff]
        %v257 = vld [vmem:[%s1 + $0xa0] sm:$0xff]
        %v258 = vld [vmem:[%s1 + $0xa8] sm:$0xff]
        %v259 = vld [vmem:[%s1 + $0xb0] sm:$0xf]
        %v260 = vld [vmem:[%s1 + $0xb4] sm:$0xff]
        %v261 = vld [vmem:[%s1 + $0xbc] sm:$0xff]
        %v262 = vld [vmem:[%s1 + $0xc4] sm:$0xff]
        %v263 = vld [vmem:[%s1 + $0xcc] sm:$0xff]
        %v264 = vld [vmem:[%s1 + $0xd4] sm:$0xf]
        %v265 = vld [vmem:[%s1 + $0xd8] sm:$0xff]
        %v266 = vld [vmem:[%s1 + $0xe0] sm:$0xff]
        %v267 = vld [vmem:[%s1 + $0xe8] sm:$0xff]
        %v268 = vld [vmem:[%s1 + $0xf0] sm:$0xff]
        %v269 = vld [vmem:[%s1 + $0xf8] sm:$0xf]
        %v270 = vld [vmem:[%s1 + $0xfc] sm:$0xff]
        %v271 = vld [vmem:[%s1 + $0x104] sm:$0xff]
        %v272 = vld [vmem:[%s1 + $0x10c] sm:$0xff]
        %v273 = vld [vmem:[%s1 + $0x114] sm:$0xff]
        %v274 = vld [vmem:[%s1 + $0x11c] sm:$0xf]
        %v275 = vld [vmem:[%s1 + $0x120] sm:$0xff]
        %v276 = vld [vmem:[%s1 + $0x128] sm:$0xff]
        %v277 = vld [vmem:[%s1 + $0x130] sm:$0xff]
        %v278 = vld [vmem:[%s1 + $0x138] sm:$0xff]
        %v279 = vld [vmem:[%s1 + $0x140] sm:$0xf]
        %v280 = vld [vmem:[%s1 + $0x144] sm:$0xff]
        %v281 = vld [vmem:[%s1 + $0x14c] sm:$0xff]
        %v282 = vld [vmem:[%s1 + $0x154] sm:$0xff]
        %v283 = vld [vmem:[%s1 + $0x15c] sm:$0xff]
        %v284 = vld [vmem:[%s1 + $0x164] sm:$0xf]
        %v285 = vld [vmem:[%s1 + $0x168] sm:$0xff]
        %v286 = vld [vmem:[%s1 + $0x170] sm:$0xff]
        %v287 = vld [vmem:[%s1 + $0x178] sm:$0xff]
        %v288 = vld [vmem:[%s1 + $0x180] sm:$0xff]
        %v289 = vld [vmem:[%s1 + $0x188] sm:$0xf]
        %v290 = vld [vmem:[%s1 + $0x18c] sm:$0xff]
        %v291 = vld [vmem:[%s1 + $0x194] sm:$0xff]
        %v292 = vld [vmem:[%s1 + $0x19c] sm:$0xff]
        %v293 = vld [vmem:[%s1 + $0x1a4] sm:$0xff]
        %v294 = vld [vmem:[%s1 + $0x1ac] sm:$0xf]
        %v295 = vld [vmem:[%s1 + $0x1b0] sm:$0xff]
        %v296 = vld [vmem:[%s1 + $0x1b8] sm:$0xff]
        %v297 = vld [vmem:[%s1 + $0x1c0] sm:$0xff]
        %v298 = vld [vmem:[%s1 + $0x1c8] sm:$0xff]
        %v299 = vld [vmem:[%s1 + $0x1d0] sm:$0xf]
        %v300 = vld [vmem:[%s1 + $0x1d4] sm:$0xff]
        %v301 = vld [vmem:[%s1 + $0x1dc] sm:$0xff]
        %v302 = vld [vmem:[%s1 + $0x1e4] sm:$0xff]
        %v303 = vld [vmem:[%s1 + $0x1ec] sm:$0xff]
        %v304 = vld [vmem:[%s1 + $0x1f4] sm:$0xf]
        %v305 = vld [vmem:[%s1 + $0x1f8] sm:$0xff]
        %v306 = vld [vmem:[%s1 + $0x200] sm:$0xff]
        %v307 = vld [vmem:[%s1 + $0x208] sm:$0xff]
        %v308 = vld [vmem:[%s1 + $0x210] sm:$0xff]
        %v309 = vld [vmem:[%s1 + $0x218] sm:$0xf]
        %v310 = vld [vmem:[%s1 + $0x21c] sm:$0xff]
        %v311 = vld [vmem:[%s1 + $0x224] sm:$0xff]
        %v312 = vld [vmem:[%s1 + $0x22c] sm:$0xff]
        %v313 = vld [vmem:[%s1 + $0x234] sm:$0xff]
        %v314 = vld [vmem:[%s1 + $0x23c] sm:$0xf]
        %v315 = vld [vmem:[%s1 + $0x240] sm:$0xff]
        %v316 = vld [vmem:[%s1 + $0x248] sm:$0xff]
        %v317 = vld [vmem:[%s1 + $0x250] sm:$0xff]
        %v318 = vld [vmem:[%s1 + $0x258] sm:$0xff]
        %v319 = vld [vmem:[%s1 + $0x260] sm:$0xf]
        %v320 = vld [vmem:[%s1 + $0x264] sm:$0xff]
        %v321 = vld [vmem:[%s1 + $0x26c] sm:$0xff]
        %v322 = vld [vmem:[%s1 + $0x274] sm:$0xff]
        %v323 = vld [vmem:[%s1 + $0x27c] sm:$0xff]
        %v324 = vld [vmem:[%s1 + $0x284] sm:$0xf]
        %v325 = vld [vmem:[%s1 + $0x288] sm:$0xff]
        %v326 = vld [vmem:[%s1 + $0x290] sm:$0xff]
        %v327 = vld [vmem:[%s1 + $0x298] sm:$0xff]
        %v328 = vld [vmem:[%s1 + $0x2a0] sm:$0xff]
        %v329 = vld [vmem:[%s1 + $0x2a8] sm:$0xf]
        %v330 = vld [vmem:[%s1 + $0x2ac] sm:$0xff]
        %v331 = vld [vmem:[%s1 + $0x2b4] sm:$0xff]
        %v332 = vld [vmem:[%s1 + $0x2bc] sm:$0xff]
        %v333 = vld [vmem:[%s1 + $0x2c4] sm:$0xff]
        %v334 = vld [vmem:[%s1 + $0x2cc] sm:$0xf]
        %v335 = vld [vmem:[%s1 + $0x2d0] sm:$0xff]
        %v336 = vld [vmem:[%s1 + $0x2d8] sm:$0xff]
        %v337 = vld [vmem:[%s1 + $0x2e0] sm:$0xff]
        %v338 = vld [vmem:[%s1 + $0x2e8] sm:$0xff]
        %v339 = vld [vmem:[%s1 + $0x2f0] sm:$0xf]
        %v340 = vld [vmem:[%s1 + $0x2f4] sm:$0xff]
        %v341 = vld [vmem:[%s1 + $0x2fc] sm:$0xff]
        %v342 = vld [vmem:[%s1 + $0x304] sm:$0xff]
        %v343 = vld [vmem:[%s1 + $0x30c] sm:$0xff]
        %v344 = vld [vmem:[%s1 + $0x314] sm:$0xf]
        %v345 = vld [vmem:[%s1 + $0x318] sm:$0xff]
        %v346 = vld [vmem:[%s1 + $0x320] sm:$0xff]
        %v347 = vld [vmem:[%s1 + $0x328] sm:$0xff]
        %v348 = vld [vmem:[%s1 + $0x330] sm:$0xff]
        %v349 = vld [vmem:[%s1 + $0x338] sm:$0xf]
        %v350 = vld [vmem:[%s1 + $0x33c] sm:$0xff]
        %v351 = vld [vmem:[%s1 + $0x344] sm:$0xff]
        %v352 = vld [vmem:[%s1 + $0x34c] sm:$0xff]
        %v353 = vld [vmem:[%s1 + $0x354] sm:$0xff]
        %v354 = vld [vmem:[%s1 + $0x35c] sm:$0xf]
        %v355 = vld [vmem:[%s1 + $0x360] sm:$0xff]
        %v356 = vld [vmem:[%s1 + $0x368] sm:$0xff]
        %v357 = vld [vmem:[%s1 + $0x370] sm:$0xff]
        %v358 = vld [vmem:[%s1 + $0x378] sm:$0xff]
        %v359 = vld [vmem:[%s1 + $0x380] sm:$0xf]
        %v360 = vld [vmem:[%s1 + $0x384] sm:$0xff]
        %v361 = vld [vmem:[%s1 + $0x38c] sm:$0xff]
        %v362 = vld [vmem:[%s1 + $0x394] sm:$0xff]
        %v363 = vld [vmem:[%s1 + $0x39c] sm:$0xff]
        %v364 = vld [vmem:[%s1 + $0x3a4] sm:$0xf]
        %v365 = vld [vmem:[%s1 + $0x3a8] sm:$0xff]
        %v366 = vld [vmem:[%s1 + $0x3b0] sm:$0xff]
        %v367 = vld [vmem:[%s1 + $0x3b8] sm:$0xff]
        %v368 = vld [vmem:[%s1 + $0x3c0] sm:$0xff]
        %v369 = vld [vmem:[%s1 + $0x3c8] sm:$0xf]
        %v370 = vld [vmem:[%s1 + $0x3cc] sm:$0xff]
        %v371 = vld [vmem:[%s1 + $0x3d4] sm:$0xff]
        %v372 = vld [vmem:[%s1 + $0x3dc] sm:$0xff]
        %v373 = vld [vmem:[%s1 + $0x3e4] sm:$0xff]
        %v374 = vld [vmem:[%s1 + $0x3ec] sm:$0xf]
        %v375 = vld [vmem:[%s1 + $0x3f0] sm:$0xff]
        %v376 = vld [vmem:[%s1 + $0x3f8] sm:$0xff]
        %v377 = vld [vmem:[%s1 + $0x400] sm:$0xff]
        %v378 = vld [vmem:[%s1 + $0x408] sm:$0xff]
        %v379 = vld [vmem:[%s1 + $0x410] sm:$0xf]
        %v380 = vld [vmem:[%s1 + $0x414] sm:$0xff]
        %v381 = vld [vmem:[%s1 + $0x41c] sm:$0xff]
        %v382 = vld [vmem:[%s1 + $0x424] sm:$0xff]
        %v383 = vld [vmem:[%s1 + $0x42c] sm:$0xff]
        %v384 = vld [vmem:[%s1 + $0x434] sm:$0xf]
        %v385 = vld [vmem:[%s1 + $0x438] sm:$0xff]
        %v386 = vld [vmem:[%s1 + $0x440] sm:$0xff]
        %v387 = vld [vmem:[%s1 + $0x448] sm:$0xff]
        %v388 = vld [vmem:[%s1 + $0x450] sm:$0xff]
        %v389 = vld [vmem:[%s1 + $0x458] sm:$0xf]
        %v390 = vld [vmem:[%s1 + $0x45c] sm:$0xff]
        %v391 = vld [vmem:[%s1 + $0x464] sm:$0xff]
        %v392 = vld [vmem:[%s1 + $0x46c] sm:$0xff]
        %v393 = vld [vmem:[%s1 + $0x474] sm:$0xff]
        %v394 = vld [vmem:[%s1 + $0x47c] sm:$0xf]
        %v395 = vld [vmem:[%s1 + $0x480] sm:$0xff]
        %v396 = vld [vmem:[%s1 + $0x488] sm:$0xff]
        %v397 = vld [vmem:[%s1 + $0x490] sm:$0xff]
        %v398 = vld [vmem:[%s1 + $0x498] sm:$0xff]
        %v399 = vld [vmem:[%s1 + $0x4a0] sm:$0xf]
        %v400 = vld [vmem:[%s1 + $0x4a4] sm:$0xff]
        %v401 = vld [vmem:[%s1 + $0x4ac] sm:$0xff]
        %v402 = vld [vmem:[%s1 + $0x4b4] sm:$0xff]
        %v403 = vld [vmem:[%s1 + $0x4bc] sm:$0xff]
        %v404 = vld [vmem:[%s1 + $0x4c4] sm:$0xf]
        %v405 = vld [vmem:[%s1 + $0x4c8] sm:$0xff]
        %v406 = vld [vmem:[%s1 + $0x4d0] sm:$0xff]
        %v407 = vld [vmem:[%s1 + $0x4d8] sm:$0xff]
        %v408 = vld [vmem:[%s1 + $0x4e0] sm:$0xff]
        %v409 = vld [vmem:[%s1 + $0x4e8] sm:$0xf]
        %v410 = vld [vmem:[%s1 + $0x4ec] sm:$0xff]
        %v411 = vld [vmem:[%s1 + $0x4f4] sm:$0xff]
        %v412 = vld [vmem:[%s1 + $0x4fc] sm:$0xff]
        %v413 = vld [vmem:[%s1 + $0x504] sm:$0xff]
        %v414 = vld [vmem:[%s1 + $0x50c] sm:$0xf]
        %v415 = vld [vmem:[%s1 + $0x510] sm:$0xff]
        %v416 = vld [vmem:[%s1 + $0x518] sm:$0xff]
        %v417 = vld [vmem:[%s1 + $0x520] sm:$0xff]
        %v418 = vld [vmem:[%s1 + $0x528] sm:$0xff]
        %v419 = vld [vmem:[%s1 + $0x530] sm:$0xf]
        %v420 = vld [vmem:[%s1 + $0x534] sm:$0xff]
        %v421 = vld [vmem:[%s1 + $0x53c] sm:$0xff]
        %v422 = vld [vmem:[%s1 + $0x544] sm:$0xff]
        %v423 = vld [vmem:[%s1 + $0x54c] sm:$0xff]
        %v424 = vld [vmem:[%s1 + $0x554] sm:$0xf]
        %v425 = vld [vmem:[%s1 + $0x558] sm:$0xff]
        %v426 = vld [vmem:[%s1 + $0x560] sm:$0xff]
        %v427 = vld [vmem:[%s1 + $0x568] sm:$0xff]
        %v428 = vld [vmem:[%s1 + $0x570] sm:$0xff]
        %v429 = vld [vmem:[%s1 + $0x578] sm:$0xf]
        %v430 = vld [vmem:[%s1 + $0x57c] sm:$0xff]
        %v431 = vld [vmem:[%s1 + $0x584] sm:$0xff]
        %v432 = vld [vmem:[%s1 + $0x58c] sm:$0xff]
        %v433 = vld [vmem:[%s1 + $0x594] sm:$0xff]
        %v434 = vld [vmem:[%s1 + $0x59c] sm:$0xf]
        %v435 = vld [vmem:[%s1 + $0x5a0] sm:$0xff]
        %v436 = vld [vmem:[%s1 + $0x5a8] sm:$0xff]
        %v437 = vld [vmem:[%s1 + $0x5b0] sm:$0xff]
        %v438 = vld [vmem:[%s1 + $0x5b8] sm:$0xff]
        %v439 = vld [vmem:[%s1 + $0x5c0] sm:$0xf]
        %v440 = vld [vmem:[%s1 + $0x5c4] sm:$0xff]
        %v441 = vld [vmem:[%s1 + $0x5cc] sm:$0xff]
        %v442 = vld [vmem:[%s1 + $0x5d4] sm:$0xff]
        %v443 = vld [vmem:[%s1 + $0x5dc] sm:$0xff]
        %v444 = vld [vmem:[%s1 + $0x5e4] sm:$0xf]
        %v445 = vld [vmem:[%s1 + $0x5e8] sm:$0xff]
        %v446 = vld [vmem:[%s1 + $0x5f0] sm:$0xff]
        %v447 = vld [vmem:[%s1 + $0x5f8] sm:$0xff]
        %v448 = vld [vmem:[%s1 + $0x600] sm:$0xff]
        %v449 = vld [vmem:[%s1 + $0x608] sm:$0xf]
        %v450 = vld [vmem:[%s1 + $0x60c] sm:$0xff]
        %v451 = vld [vmem:[%s1 + $0x614] sm:$0xff]
        %v452 = vld [vmem:[%s1 + $0x61c] sm:$0xff]
        %v453 = vld [vmem:[%s1 + $0x624] sm:$0xff]
        %v454 = vld [vmem:[%s1 + $0x62c] sm:$0xf]
        %v455 = vld [vmem:[%s1 + $0x630] sm:$0xff]
        %v456 = vld [vmem:[%s1 + $0x638] sm:$0xff]
        %v457 = vld [vmem:[%s1 + $0x640] sm:$0xff]
        %v458 = vld [vmem:[%s1 + $0x648] sm:$0xff]
        %v459 = vld [vmem:[%s1 + $0x650] sm:$0xf]
        %v460 = vld [vmem:[%s1 + $0x654] sm:$0xff]
        %v461 = vld [vmem:[%s1 + $0x65c] sm:$0xff]
        %v462 = vld [vmem:[%s1 + $0x664] sm:$0xff]
        %v463 = vld [vmem:[%s1 + $0x66c] sm:$0xff]
        %v464 = vld [vmem:[%s1 + $0x674] sm:$0xf]
        %v465 = vld [vmem:[%s1 + $0x678] sm:$0xff]
        %v466 = vld [vmem:[%s1 + $0x680] sm:$0xff]
        %v467 = vld [vmem:[%s1 + $0x688] sm:$0xff]
        %v468 = vld [vmem:[%s1 + $0x690] sm:$0xff]
        %v469 = vld [vmem:[%s1 + $0x698] sm:$0xf]
        %v470 = vld [vmem:[%s1 + $0x69c] sm:$0xff]
        %v471 = vld [vmem:[%s1 + $0x6a4] sm:$0xff]
        %v472 = vld [vmem:[%s1 + $0x6ac] sm:$0xff]
        %v473 = vld [vmem:[%s1 + $0x6b4] sm:$0xff]
        %v474 = vld [vmem:[%s1 + $0x6bc] sm:$0xf]
        %v475 = vld [vmem:[%s1 + $0x6c0] sm:$0xff]
        %v476 = vld [vmem:[%s1 + $0x6c8] sm:$0xff]
        %v477 = vld [vmem:[%s1 + $0x6d0] sm:$0xff]
        %v478 = vld [vmem:[%s1 + $0x6d8] sm:$0xff]
        %v479 = vld [vmem:[%s1 + $0x6e0] sm:$0xf]
        %v480 = vld [vmem:[%s1 + $0x6e4] sm:$0xff]
        %v481 = vld [vmem:[%s1 + $0x6ec] sm:$0xff]
        %v482 = vld [vmem:[%s1 + $0x6f4] sm:$0xff]
        %v483 = vld [vmem:[%s1 + $0x6fc] sm:$0xff]
        %v484 = vld [vmem:[%s1 + $0x704] sm:$0xf]
        %v485 = vld [vmem:[%s1 + $0x708] sm:$0xff]
        %v486 = vld [vmem:[%s1 + $0x710] sm:$0xff]
        %v487 = vld [vmem:[%s1 + $0x718] sm:$0xff]
        %v488 = vld [vmem:[%s1 + $0x720] sm:$0xff]
        %v489 = vld [vmem:[%s1 + $0x728] sm:$0xf]
        %v490 = vld [vmem:[%s1 + $0x72c] sm:$0xff]
        %v491 = vld [vmem:[%s1 + $0x734] sm:$0xff]
        %v492 = vld [vmem:[%s1 + $0x73c] sm:$0xff]
        %v493 = vld [vmem:[%s1 + $0x744] sm:$0xff]
        %v494 = vld [vmem:[%s1 + $0x74c] sm:$0xf]
        %v495 = vld [vmem:[%s1 + $0x750] sm:$0xff]
        %v496 = vld [vmem:[%s1 + $0x758] sm:$0xff]
        %v497 = vld [vmem:[%s1 + $0x760] sm:$0xff]
        %v498 = vld [vmem:[%s1 + $0x768] sm:$0xff]
        %v499 = vld [vmem:[%s1 + $0x770] sm:$0xf]
        %v500 = vld [vmem:[%s1 + $0x774] sm:$0xff]
        %v501 = vld [vmem:[%s1 + $0x77c] sm:$0xff]
        %v502 = vld [vmem:[%s1 + $0x784] sm:$0xff]
        %v503 = vld [vmem:[%s1 + $0x78c] sm:$0xff]
        %v504 = vld [vmem:[%s1 + $0x794] sm:$0xf]
        %v505 = vld [vmem:[%s1 + $0x798] sm:$0xff]
        %v506 = vld [vmem:[%s1 + $0x7a0] sm:$0xff]
        %v507 = vld [vmem:[%s1 + $0x7a8] sm:$0xff]
        %v508 = vld [vmem:[%s1 + $0x7b0] sm:$0xff]
        %v509 = vld [vmem:[%s1 + $0x7b8] sm:$0xf]
        %v510 = vld [vmem:[%s1 + $0x7bc] sm:$0xff]
        %v511 = vld [vmem:[%s1 + $0x7c4] sm:$0xff]
        %v512 = vld [vmem:[%s1 + $0x7cc] sm:$0xff]
        %v513 = vld [vmem:[%s1 + $0x7d4] sm:$0xff]
        %v514 = vld [vmem:[%s1 + $0x7dc] sm:$0xf]
        %v515 = vld [vmem:[%s1 + $0x7e0] sm:$0xff]
        %v516 = vld [vmem:[%s1 + $0x7e8] sm:$0xff]
        %v517 = vld [vmem:[%s1 + $0x7f0] sm:$0xff]
        %v518 = vld [vmem:[%s1 + $0x7f8] sm:$0xff]
        %v519 = vld [vmem:[%s1 + $0x800] sm:$0xf]
        %v520 = vld [vmem:[%s1 + $0x804] sm:$0xff]
        %v521 = vld [vmem:[%s1 + $0x80c] sm:$0xff]
        %v522 = vld [vmem:[%s1 + $0x814] sm:$0xff]
        %v523 = vld [vmem:[%s1 + $0x81c] sm:$0xff]
        %v524 = vld [vmem:[%s1 + $0x824] sm:$0xf]
        %v525 = vld [vmem:[%s1 + $0x828] sm:$0xff]
        %v526 = vld [vmem:[%s1 + $0x830] sm:$0xff]
        %v527 = vld [vmem:[%s1 + $0x838] sm:$0xff]
        %v528 = vld [vmem:[%s1 + $0x840] sm:$0xff]
        %v529 = vld [vmem:[%s1 + $0x848] sm:$0xf]
        %v530 = vld [vmem:[%s1 + $0x84c] sm:$0xff]
        %v531 = vld [vmem:[%s1 + $0x854] sm:$0xff]
        %v532 = vld [vmem:[%s1 + $0x85c] sm:$0xff]
        %v533 = vld [vmem:[%s1 + $0x864] sm:$0xff]
        %v534 = vld [vmem:[%s1 + $0x86c] sm:$0xf]
        %v535 = vld [vmem:[%s1 + $0x870] sm:$0xff]
        %v536 = vld [vmem:[%s1 + $0x878] sm:$0xff]
        %v537 = vld [vmem:[%s1 + $0x880] sm:$0xff]
        %v538 = vld [vmem:[%s1 + $0x888] sm:$0xff]
        %v539 = vld [vmem:[%s1 + $0x890] sm:$0xf]
        %v540 = vld [vmem:[%s1 + $0x894] sm:$0xff]
        %v541 = vld [vmem:[%s1 + $0x89c] sm:$0xff]
        %v542 = vld [vmem:[%s1 + $0x8a4] sm:$0xff]
        %v543 = vld [vmem:[%s1 + $0x8ac] sm:$0xff]
        %v544 = vld [vmem:[%s1 + $0x8b4] sm:$0xf]
        %v545 = vld [vmem:[%s1 + $0x8b8] sm:$0xff]
        %v546 = vld [vmem:[%s1 + $0x8c0] sm:$0xff]
        %v547 = vld [vmem:[%s1 + $0x8c8] sm:$0xff]
        %v548 = vld [vmem:[%s1 + $0x8d0] sm:$0xff]
        %v549 = vld [vmem:[%s1 + $0x8d8] sm:$0xf]
        %v550 = vld [vmem:[%s1 + $0x8dc] sm:$0xff]
        %v551 = vld [vmem:[%s1 + $0x8e4] sm:$0xff]
        %v552 = vld [vmem:[%s1 + $0x8ec] sm:$0xff]
        %v553 = vld [vmem:[%s1 + $0x8f4] sm:$0xff]
        %v554 = vld [vmem:[%s1 + $0x8fc] sm:$0xf]
        %v555 = vld [vmem:[%s1 + $0x900] sm:$0xff]
        %v556 = vld [vmem:[%s1 + $0x908] sm:$0xff]
        %v557 = vld [vmem:[%s1 + $0x910] sm:$0xff]
        %v558 = vld [vmem:[%s1 + $0x918] sm:$0xff]
        %v559 = vld [vmem:[%s1 + $0x920] sm:$0xf]
        %v560 = vld [vmem:[%s1 + $0x924] sm:$0xff]
        %v561 = vld [vmem:[%s1 + $0x92c] sm:$0xff]
        %v562 = vld [vmem:[%s1 + $0x934] sm:$0xff]
        %v563 = vld [vmem:[%s1 + $0x93c] sm:$0xff]
        %v564 = vld [vmem:[%s1 + $0x944] sm:$0xf]
        %v565 = vld [vmem:[%s1 + $0x948] sm:$0xff]
        %v566 = vld [vmem:[%s1 + $0x950] sm:$0xff]
        %v567 = vld [vmem:[%s1 + $0x958] sm:$0xff]
        %v568 = vld [vmem:[%s1 + $0x960] sm:$0xff]
        %v569 = vld [vmem:[%s1 + $0x968] sm:$0xf]
        %v570 = vld [vmem:[%s1 + $0x96c] sm:$0xff]
        %v571 = vld [vmem:[%s1 + $0x974] sm:$0xff]
        %v572 = vld [vmem:[%s1 + $0x97c] sm:$0xff]
        %v573 = vld [vmem:[%s1 + $0x984] sm:$0xff]
        %v574 = vld [vmem:[%s1 + $0x98c] sm:$0xf]
        %v575 = vld [vmem:[%s1 + $0x990] sm:$0xff]
        %v576 = vld [vmem:[%s1 + $0x998] sm:$0xff]
        %v577 = vld [vmem:[%s1 + $0x9a0] sm:$0xff]
        %v578 = vld [vmem:[%s1 + $0x9a8] sm:$0xff]
        %v579 = vld [vmem:[%s1 + $0x9b0] sm:$0xf]
        %v580 = vld [vmem:[%s1 + $0x9b4] sm:$0xff]
        %v581 = vld [vmem:[%s1 + $0x9bc] sm:$0xff]
        %v582 = vld [vmem:[%s1 + $0x9c4] sm:$0xff]
        %v583 = vld [vmem:[%s1 + $0x9cc] sm:$0xff]
        %v584 = vld [vmem:[%s1 + $0x9d4] sm:$0xf]
        %v585 = vld [vmem:[%s1 + $0x9d8] sm:$0xff]
        %v586 = vld [vmem:[%s1 + $0x9e0] sm:$0xff]
        %v587 = vld [vmem:[%s1 + $0x9e8] sm:$0xff]
        %v588 = vld [vmem:[%s1 + $0x9f0] sm:$0xff]
        %v589 = vld [vmem:[%s1 + $0x9f8] sm:$0xf]
        %v590 = vld [vmem:[%s1 + $0x9fc] sm:$0xff]
        %v591 = vld [vmem:[%s1 + $0xa04] sm:$0xff]
        %v592 = vld [vmem:[%s1 + $0xa0c] sm:$0xff]
        %v593 = vld [vmem:[%s1 + $0xa14] sm:$0xff]
        %v594 = vld [vmem:[%s1 + $0xa1c] sm:$0xf]
        %v595 = vld [vmem:[%s1 + $0xa20] sm:$0xff]
        %v596 = vld [vmem:[%s1 + $0xa28] sm:$0xff]
        %v597 = vld [vmem:[%s1 + $0xa30] sm:$0xff]
        %v598 = vld [vmem:[%s1 + $0xa38] sm:$0xff]
        %v599 = vld [vmem:[%s1 + $0xa40] sm:$0xf]
        %v600 = vld [vmem:[%s1 + $0xa44] sm:$0xff]
        %v601 = vld [vmem:[%s1 + $0xa4c] sm:$0xff]
        %v602 = vld [vmem:[%s1 + $0xa54] sm:$0xff]
        %v603 = vld [vmem:[%s1 + $0xa5c] sm:$0xff]
        %v604 = vld [vmem:[%s1 + $0xa64] sm:$0xf]
        %v605 = vld [vmem:[%s1 + $0xa68] sm:$0xff]
        %v606 = vld [vmem:[%s1 + $0xa70] sm:$0xff]
        %v607 = vld [vmem:[%s1 + $0xa78] sm:$0xff]
        %v608 = vld [vmem:[%s1 + $0xa80] sm:$0xff]
        %v609 = vld [vmem:[%s1 + $0xa88] sm:$0xf]
        %v610 = vld [vmem:[%s1 + $0xa8c] sm:$0xff]
        %v611 = vld [vmem:[%s1 + $0xa94] sm:$0xff]
        %v612 = vld [vmem:[%s1 + $0xa9c] sm:$0xff]
        %v613 = vld [vmem:[%s1 + $0xaa4] sm:$0xff]
        %v614 = vld [vmem:[%s1 + $0xaac] sm:$0xf]
        %v615 = vld [vmem:[%s1 + $0xab0] sm:$0xff]
        %v616 = vld [vmem:[%s1 + $0xab8] sm:$0xff]
        %v617 = vld [vmem:[%s1 + $0xac0] sm:$0xff]
        %v618 = vld [vmem:[%s1 + $0xac8] sm:$0xff]
        %v619 = vld [vmem:[%s1 + $0xad0] sm:$0xf]
        %v620 = vld [vmem:[%s1 + $0xad4] sm:$0xff]
        %v621 = vld [vmem:[%s1 + $0xadc] sm:$0xff]
        %v622 = vld [vmem:[%s1 + $0xae4] sm:$0xff]
        %v623 = vld [vmem:[%s1 + $0xaec] sm:$0xff]
        %v624 = vld [vmem:[%s1 + $0xaf4] sm:$0xf]
        %v625 = vld [vmem:[%s1 + $0xaf8] sm:$0xff]
        %v626 = vld [vmem:[%s1 + $0xb00] sm:$0xff]
        %v627 = vld [vmem:[%s1 + $0xb08] sm:$0xff]
        %v628 = vld [vmem:[%s1 + $0xb10] sm:$0xff]
        %v629 = vld [vmem:[%s1 + $0xb18] sm:$0xf]
        %v630 = vld [vmem:[%s1 + $0xb1c] sm:$0xff]
        %v631 = vld [vmem:[%s1 + $0xb24] sm:$0xff]
        %v632 = vld [vmem:[%s1 + $0xb2c] sm:$0xff]
        %v633 = vld [vmem:[%s1 + $0xb34] sm:$0xff]
        %v634 = vld [vmem:[%s1 + $0xb3c] sm:$0xf]
        %v635 = vld [vmem:[%s1 + $0xb40] sm:$0xff]
        %v636 = vld [vmem:[%s1 + $0xb48] sm:$0xff]
        %v637 = vld [vmem:[%s1 + $0xb50] sm:$0xff]
        %v638 = vld [vmem:[%s1 + $0xb58] sm:$0xff]
        %v639 = vld [vmem:[%s1 + $0xb60] sm:$0xf]
        %v640 = vld [vmem:[%s1 + $0xb64] sm:$0xff]
        %v641 = vld [vmem:[%s1 + $0xb6c] sm:$0xff]
        %v642 = vld [vmem:[%s1 + $0xb74] sm:$0xff]
        %v643 = vld [vmem:[%s1 + $0xb7c] sm:$0xff]
        %v644 = vld [vmem:[%s1 + $0xb84] sm:$0xf]
        %v645 = vld [vmem:[%s1 + $0xb88] sm:$0xff]
        %v646 = vld [vmem:[%s1 + $0xb90] sm:$0xff]
        %v647 = vld [vmem:[%s1 + $0xb98] sm:$0xff]
        %v648 = vld [vmem:[%s1 + $0xba0] sm:$0xff]
        %v649 = vld [vmem:[%s1 + $0xba8] sm:$0xf]
        %v650 = vld [vmem:[%s1 + $0xbac] sm:$0xff]
        %v651 = vld [vmem:[%s1 + $0xbb4] sm:$0xff]
        %v652 = vld [vmem:[%s1 + $0xbbc] sm:$0xff]
        %v653 = vld [vmem:[%s1 + $0xbc4] sm:$0xff]
        %v654 = vld [vmem:[%s1 + $0xbcc] sm:$0xf]
        %v655 = vld [vmem:[%s1 + $0xbd0] sm:$0xff]
        %v656 = vld [vmem:[%s1 + $0xbd8] sm:$0xff]
        %v657 = vld [vmem:[%s1 + $0xbe0] sm:$0xff]
        %v658 = vld [vmem:[%s1 + $0xbe8] sm:$0xff]
        %v659 = vld [vmem:[%s1 + $0xbf0] sm:$0xf]
        %v660 = vld [vmem:[%s1 + $0xbf4] sm:$0xff]
        %v661 = vld [vmem:[%s1 + $0xbfc] sm:$0xff]
        %v662 = vld [vmem:[%s1 + $0xc04] sm:$0xff]
        %v663 = vld [vmem:[%s1 + $0xc0c] sm:$0xff]
        %v664 = vld [vmem:[%s1 + $0xc14] sm:$0xf]
        %v665 = vld [vmem:[%s1 + $0xc18] sm:$0xff]
        %v666 = vld [vmem:[%s1 + $0xc20] sm:$0xff]
        %v667 = vld [vmem:[%s1 + $0xc28] sm:$0xff]
        %v668 = vld [vmem:[%s1 + $0xc30] sm:$0xff]
        %v669 = vld [vmem:[%s1 + $0xc38] sm:$0xf]
        %v670 = vld [vmem:[%s1 + $0xc3c] sm:$0xff]
        %v671 = vld [vmem:[%s1 + $0xc44] sm:$0xff]
        %v672 = vld [vmem:[%s1 + $0xc4c] sm:$0xff]
        %v673 = vld [vmem:[%s1 + $0xc54] sm:$0xff]
        %v674 = vld [vmem:[%s1 + $0xc5c] sm:$0xf]
        %v675 = vld [vmem:[%s1 + $0xc60] sm:$0xff]
        %v676 = vld [vmem:[%s1 + $0xc68] sm:$0xff]
        %v677 = vld [vmem:[%s1 + $0xc70] sm:$0xff]
        %v678 = vld [vmem:[%s1 + $0xc78] sm:$0xff]
        %v679 = vld [vmem:[%s1 + $0xc80] sm:$0xf]
        %v680 = vld [vmem:[%s1 + $0xc84] sm:$0xff]
        %v681 = vld [vmem:[%s1 + $0xc8c] sm:$0xff]
        %v682 = vld [vmem:[%s1 + $0xc94] sm:$0xff]
        %v683 = vld [vmem:[%s1 + $0xc9c] sm:$0xff]
        %v684 = vld [vmem:[%s1 + $0xca4] sm:$0xf]
        %v685 = vld [vmem:[%s1 + $0xca8] sm:$0xff]
        %v686 = vld [vmem:[%s1 + $0xcb0] sm:$0xff]
        %v687 = vld [vmem:[%s1 + $0xcb8] sm:$0xff]
        %v688 = vld [vmem:[%s1 + $0xcc0] sm:$0xff]
        %v689 = vld [vmem:[%s1 + $0xcc8] sm:$0xf]
        %v690 = vld [vmem:[%s1 + $0xccc] sm:$0xff]
        %v691 = vld [vmem:[%s1 + $0xcd4] sm:$0xff]
        %v692 = vld [vmem:[%s1 + $0xcdc] sm:$0xff]
        %v693 = vld [vmem:[%s1 + $0xce4] sm:$0xff]
        %v694 = vld [vmem:[%s1 + $0xcec] sm:$0xf]
        %v695 = vld [vmem:[%s1 + $0xcf0] sm:$0xff]
        %v696 = vld [vmem:[%s1 + $0xcf8] sm:$0xff]
        %v697 = vld [vmem:[%s1 + $0xd00] sm:$0xff]
        %v698 = vld [vmem:[%s1 + $0xd08] sm:$0xff]
        %v699 = vld [vmem:[%s1 + $0xd10] sm:$0xf]
        %v700 = vld [vmem:[%s1 + $0xd14] sm:$0xff]
        %v701 = vld [vmem:[%s1 + $0xd1c] sm:$0xff]
        %v702 = vld [vmem:[%s1 + $0xd24] sm:$0xff]
        %v703 = vld [vmem:[%s1 + $0xd2c] sm:$0xff]
        %v704 = vld [vmem:[%s1 + $0xd34] sm:$0xf]
        %v705 = vld [vmem:[%s1 + $0xd38] sm:$0xff]
        %v706 = vld [vmem:[%s1 + $0xd40] sm:$0xff]
        %v707 = vld [vmem:[%s1 + $0xd48] sm:$0xff]
        %v708 = vld [vmem:[%s1 + $0xd50] sm:$0xff]
        %v709 = vld [vmem:[%s1 + $0xd58] sm:$0xf]
        %v710 = vld [vmem:[%s1 + $0xd5c] sm:$0xff]
        %v711 = vld [vmem:[%s1 + $0xd64] sm:$0xff]
        %v712 = vld [vmem:[%s1 + $0xd6c] sm:$0xff]
        %v713 = vld [vmem:[%s1 + $0xd74] sm:$0xff]
        %v714 = vld [vmem:[%s1 + $0xd7c] sm:$0xf]
        %v715 = vld [vmem:[%s2] sm:$0xff]
        %v716 = vld [vmem:[%s2 + $0x8] sm:$0x1]
        %v719 = vlaneseq
        %v720 = vshrl.u32 %v719, 7
        %v721 = vsub.s32 0, %v720
        %v722 = vrot.slane %v715, %v721
        %v723 = vlaneseq
        %v724 = vshrl.u32 %v723, 7
        %v725 = vsub.s32 1, %v724
        %v726 = vrot.slane %v715, %v725
        %v727 = vlaneseq
        %v728 = vshrl.u32 %v727, 7
        %v729 = vsub.s32 2, %v728
        %v730 = vrot.slane %v715, %v729
        %v731 = vlaneseq
        %v732 = vshrl.u32 %v731, 7
        %v733 = vsub.s32 3, %v732
        %v734 = vrot.slane %v715, %v733
        %v735 = vlaneseq
        %v736 = vshrl.u32 %v735, 7
        %v737 = vsub.s32 4, %v736
        %v738 = vrot.slane %v715, %v737
        %v739 = vlaneseq
        %v740 = vshrl.u32 %v739, 7
        %v741 = vsub.s32 5, %v740
        %v742 = vrot.slane %v715, %v741
        %v743 = vlaneseq
        %v744 = vshrl.u32 %v743, 7
        %v745 = vsub.s32 6, %v744
        %v746 = vrot.slane %v715, %v745
        %v747 = vlaneseq
        %v748 = vshrl.u32 %v747, 7
        %v749 = vsub.s32 7, %v748
        %v750 = vrot.slane %v715, %v749
        %v751 = vlaneseq
        %v752 = vshrl.u32 %v751, 7
        %v753 = vsub.s32 0, %v752
        %v754 = vrot.slane %v716, %v753
        %v770 = vunpack.c.l.b16 %v229
        %v771 = vunpack.c.h.b16 %v229
        %v772 = vunpack.c.l.b16 %v230
        %v773 = vunpack.c.h.b16 %v230
        %v774 = vunpack.c.l.b16 %v231
        %v775 = vunpack.c.h.b16 %v231
        %v776 = vunpack.c.l.b16 %v232
        %v777 = vunpack.c.h.b16 %v232
        %v778 = vunpack.c.l.b16 %v233
        %v779 = vunpack.c.h.b16 %v233
        %v780 = vunpack.c.l.b16 %v234
        %v781 = vunpack.c.h.b16 %v234
        %v782 = vpack.c.b16 %v776, %v770
        %v783 = vpack.c.b16 %v777, %v771
        %v784 = vpack.c.b16 %v778, %v772
        %v785 = vpack.c.b16 %v779, %v773
        %v786 = vpack.c.b16 %v780, %v774
        %v787 = vpack.c.b16 %v781, %v775
        %v1274 = vunpack.c.l.b16 %v235
        %v1275 = vunpack.c.h.b16 %v235
        %v1276 = vunpack.c.l.b16 %v236
        %v1277 = vunpack.c.h.b16 %v236
        %v1278 = vunpack.c.l.b16 %v237
        %v1279 = vunpack.c.h.b16 %v237
        %v1280 = vunpack.c.l.b16 %v238
        %v1281 = vunpack.c.h.b16 %v238
        %v1282 = vunpack.c.l.b16 %v239
        %v1283 = vunpack.c.l.b16 %v240
        %v1284 = vunpack.c.h.b16 %v240
        %v1285 = vunpack.c.l.b16 %v241
        %v1286 = vunpack.c.h.b16 %v241
        %v1287 = vunpack.c.l.b16 %v242
        %v1288 = vunpack.c.h.b16 %v242
        %v1289 = vunpack.c.l.b16 %v243
        %v1290 = vunpack.c.h.b16 %v243
        %v1291 = vunpack.c.l.b16 %v244
        %v1292 = vunpack.c.l.b16 %v245
        %v1293 = vunpack.c.h.b16 %v245
        %v1294 = vunpack.c.l.b16 %v246
        %v1295 = vunpack.c.h.b16 %v246
        %v1296 = vunpack.c.l.b16 %v247
        %v1297 = vunpack.c.h.b16 %v247
        %v1298 = vunpack.c.l.b16 %v248
        %v1299 = vunpack.c.h.b16 %v248
        %v1300 = vunpack.c.l.b16 %v249
        %v1301 = vunpack.c.l.b16 %v250
        %v1302 = vunpack.c.h.b16 %v250
        %v1303 = vunpack.c.l.b16 %v251
        %v1304 = vunpack.c.h.b16 %v251
        %v1305 = vunpack.c.l.b16 %v252
        %v1306 = vunpack.c.h.b16 %v252
        %v1307 = vunpack.c.l.b16 %v253
        %v1308 = vunpack.c.h.b16 %v253
        %v1309 = vunpack.c.l.b16 %v254
        %v1310 = vunpack.c.l.b16 %v255
        %v1311 = vunpack.c.h.b16 %v255
        %v1312 = vunpack.c.l.b16 %v256
        %v1313 = vunpack.c.h.b16 %v256
        %v1314 = vunpack.c.l.b16 %v257
        %v1315 = vunpack.c.h.b16 %v257
        %v1316 = vunpack.c.l.b16 %v258
        %v1317 = vunpack.c.h.b16 %v258
        %v1318 = vunpack.c.l.b16 %v259
        %v1319 = vunpack.c.l.b16 %v260
        %v1320 = vunpack.c.h.b16 %v260
        %v1321 = vunpack.c.l.b16 %v261
        %v1322 = vunpack.c.h.b16 %v261
        %v1323 = vunpack.c.l.b16 %v262
        %v1324 = vunpack.c.h.b16 %v262
        %v1325 = vunpack.c.l.b16 %v263
        %v1326 = vunpack.c.h.b16 %v263
        %v1327 = vunpack.c.l.b16 %v264
        %v1328 = vunpack.c.l.b16 %v265
        %v1329 = vunpack.c.h.b16 %v265
        %v1330 = vunpack.c.l.b16 %v266
        %v1331 = vunpack.c.h.b16 %v266
        %v1332 = vunpack.c.l.b16 %v267
        %v1333 = vunpack.c.h.b16 %v267
        %v1334 = vunpack.c.l.b16 %v268
        %v1335 = vunpack.c.h.b16 %v268
        %v1336 = vunpack.c.l.b16 %v269
        %v1337 = vunpack.c.l.b16 %v270
        %v1338 = vunpack.c.h.b16 %v270
        %v1339 = vunpack.c.l.b16 %v271
        %v1340 = vunpack.c.h.b16 %v271
        %v1341 = vunpack.c.l.b16 %v272
        %v1342 = vunpack.c.h.b16 %v272
        %v1343 = vunpack.c.l.b16 %v273
        %v1344 = vunpack.c.h.b16 %v273
        %v1345 = vunpack.c.l.b16 %v274
        %v1346 = vunpack.c.l.b16 %v275
        %v1347 = vunpack.c.h.b16 %v275
        %v1348 = vunpack.c.l.b16 %v276
        %v1349 = vunpack.c.h.b16 %v276
        %v1350 = vunpack.c.l.b16 %v277
        %v1351 = vunpack.c.h.b16 %v277
        %v1352 = vunpack.c.l.b16 %v278
        %v1353 = vunpack.c.h.b16 %v278
        %v1354 = vunpack.c.l.b16 %v279
        %v1355 = vunpack.c.l.b16 %v280
        %v1356 = vunpack.c.h.b16 %v280
        %v1357 = vunpack.c.l.b16 %v281
        %v1358 = vunpack.c.h.b16 %v281
        %v1359 = vunpack.c.l.b16 %v282
        %v1360 = vunpack.c.h.b16 %v282
        %v1361 = vunpack.c.l.b16 %v283
        %v1362 = vunpack.c.h.b16 %v283
        %v1363 = vunpack.c.l.b16 %v284
        %v1364 = vunpack.c.l.b16 %v285
        %v1365 = vunpack.c.h.b16 %v285
        %v1366 = vunpack.c.l.b16 %v286
        %v1367 = vunpack.c.h.b16 %v286
        %v1368 = vunpack.c.l.b16 %v287
        %v1369 = vunpack.c.h.b16 %v287
        %v1370 = vunpack.c.l.b16 %v288
        %v1371 = vunpack.c.h.b16 %v288
        %v1372 = vunpack.c.l.b16 %v289
        %v1373 = vunpack.c.l.b16 %v290
        %v1374 = vunpack.c.h.b16 %v290
        %v1375 = vunpack.c.l.b16 %v291
        %v1376 = vunpack.c.h.b16 %v291
        %v1377 = vunpack.c.l.b16 %v292
        %v1378 = vunpack.c.h.b16 %v292
        %v1379 = vunpack.c.l.b16 %v293
        %v1380 = vunpack.c.h.b16 %v293
        %v1381 = vunpack.c.l.b16 %v294
        %v1382 = vunpack.c.l.b16 %v295
        %v1383 = vunpack.c.h.b16 %v295
        %v1384 = vunpack.c.l.b16 %v296
        %v1385 = vunpack.c.h.b16 %v296
        %v1386 = vunpack.c.l.b16 %v297
        %v1387 = vunpack.c.h.b16 %v297
        %v1388 = vunpack.c.l.b16 %v298
        %v1389 = vunpack.c.h.b16 %v298
        %v1390 = vunpack.c.l.b16 %v299
        %v1391 = vunpack.c.l.b16 %v300
        %v1392 = vunpack.c.h.b16 %v300
        %v1393 = vunpack.c.l.b16 %v301
        %v1394 = vunpack.c.h.b16 %v301
        %v1395 = vunpack.c.l.b16 %v302
        %v1396 = vunpack.c.h.b16 %v302
        %v1397 = vunpack.c.l.b16 %v303
        %v1398 = vunpack.c.h.b16 %v303
        %v1399 = vunpack.c.l.b16 %v304
        %v1400 = vunpack.c.l.b16 %v305
        %v1401 = vunpack.c.h.b16 %v305
        %v1402 = vunpack.c.l.b16 %v306
        %v1403 = vunpack.c.h.b16 %v306
        %v1404 = vunpack.c.l.b16 %v307
        %v1405 = vunpack.c.h.b16 %v307
        %v1406 = vunpack.c.l.b16 %v308
        %v1407 = vunpack.c.h.b16 %v308
        %v1408 = vunpack.c.l.b16 %v309
        %v1409 = vunpack.c.l.b16 %v310
        %v1410 = vunpack.c.h.b16 %v310
        %v1411 = vunpack.c.l.b16 %v311
        %v1412 = vunpack.c.h.b16 %v311
        %v1413 = vunpack.c.l.b16 %v312
        %v1414 = vunpack.c.h.b16 %v312
        %v1415 = vunpack.c.l.b16 %v313
        %v1416 = vunpack.c.h.b16 %v313
        %v1417 = vunpack.c.l.b16 %v314
        %v1418 = vunpack.c.l.b16 %v315
        %v1419 = vunpack.c.h.b16 %v315
        %v1420 = vunpack.c.l.b16 %v316
        %v1421 = vunpack.c.h.b16 %v316
        %v1422 = vunpack.c.l.b16 %v317
        %v1423 = vunpack.c.h.b16 %v317
        %v1424 = vunpack.c.l.b16 %v318
        %v1425 = vunpack.c.h.b16 %v318
        %v1426 = vunpack.c.l.b16 %v319
        %v1427 = vunpack.c.l.b16 %v320
        %v1428 = vunpack.c.h.b16 %v320
        %v1429 = vunpack.c.l.b16 %v321
        %v1430 = vunpack.c.h.b16 %v321
        %v1431 = vunpack.c.l.b16 %v322
        %v1432 = vunpack.c.h.b16 %v322
        %v1433 = vunpack.c.l.b16 %v323
        %v1434 = vunpack.c.h.b16 %v323
        %v1435 = vunpack.c.l.b16 %v324
        %v1436 = vunpack.c.l.b16 %v325
        %v1437 = vunpack.c.h.b16 %v325
        %v1438 = vunpack.c.l.b16 %v326
        %v1439 = vunpack.c.h.b16 %v326
        %v1440 = vunpack.c.l.b16 %v327
        %v1441 = vunpack.c.h.b16 %v327
        %v1442 = vunpack.c.l.b16 %v328
        %v1443 = vunpack.c.h.b16 %v328
        %v1444 = vunpack.c.l.b16 %v329
        %v1445 = vunpack.c.l.b16 %v330
        %v1446 = vunpack.c.h.b16 %v330
        %v1447 = vunpack.c.l.b16 %v331
        %v1448 = vunpack.c.h.b16 %v331
        %v1449 = vunpack.c.l.b16 %v332
        %v1450 = vunpack.c.h.b16 %v332
        %v1451 = vunpack.c.l.b16 %v333
        %v1452 = vunpack.c.h.b16 %v333
        %v1453 = vunpack.c.l.b16 %v334
        %v1454 = vunpack.c.l.b16 %v335
        %v1455 = vunpack.c.h.b16 %v335
        %v1456 = vunpack.c.l.b16 %v336
        %v1457 = vunpack.c.h.b16 %v336
        %v1458 = vunpack.c.l.b16 %v337
        %v1459 = vunpack.c.h.b16 %v337
        %v1460 = vunpack.c.l.b16 %v338
        %v1461 = vunpack.c.h.b16 %v338
        %v1462 = vunpack.c.l.b16 %v339
        %v1463 = vunpack.c.l.b16 %v340
        %v1464 = vunpack.c.h.b16 %v340
        %v1465 = vunpack.c.l.b16 %v341
        %v1466 = vunpack.c.h.b16 %v341
        %v1467 = vunpack.c.l.b16 %v342
        %v1468 = vunpack.c.h.b16 %v342
        %v1469 = vunpack.c.l.b16 %v343
        %v1470 = vunpack.c.h.b16 %v343
        %v1471 = vunpack.c.l.b16 %v344
        %v1472 = vunpack.c.l.b16 %v345
        %v1473 = vunpack.c.h.b16 %v345
        %v1474 = vunpack.c.l.b16 %v346
        %v1475 = vunpack.c.h.b16 %v346
        %v1476 = vunpack.c.l.b16 %v347
        %v1477 = vunpack.c.h.b16 %v347
        %v1478 = vunpack.c.l.b16 %v348
        %v1479 = vunpack.c.h.b16 %v348
        %v1480 = vunpack.c.l.b16 %v349
        %v1481 = vunpack.c.l.b16 %v350
        %v1482 = vunpack.c.h.b16 %v350
        %v1483 = vunpack.c.l.b16 %v351
        %v1484 = vunpack.c.h.b16 %v351
        %v1485 = vunpack.c.l.b16 %v352
        %v1486 = vunpack.c.h.b16 %v352
        %v1487 = vunpack.c.l.b16 %v353
        %v1488 = vunpack.c.h.b16 %v353
        %v1489 = vunpack.c.l.b16 %v354
        %v1490 = vunpack.c.l.b16 %v355
        %v1491 = vunpack.c.h.b16 %v355
        %v1492 = vunpack.c.l.b16 %v356
        %v1493 = vunpack.c.h.b16 %v356
        %v1494 = vunpack.c.l.b16 %v357
        %v1495 = vunpack.c.h.b16 %v357
        %v1496 = vunpack.c.l.b16 %v358
        %v1497 = vunpack.c.h.b16 %v358
        %v1498 = vunpack.c.l.b16 %v359
        %v1499 = vunpack.c.l.b16 %v360
        %v1500 = vunpack.c.h.b16 %v360
        %v1501 = vunpack.c.l.b16 %v361
        %v1502 = vunpack.c.h.b16 %v361
        %v1503 = vunpack.c.l.b16 %v362
        %v1504 = vunpack.c.h.b16 %v362
        %v1505 = vunpack.c.l.b16 %v363
        %v1506 = vunpack.c.h.b16 %v363
        %v1507 = vunpack.c.l.b16 %v364
        %v1508 = vunpack.c.l.b16 %v365
        %v1509 = vunpack.c.h.b16 %v365
        %v1510 = vunpack.c.l.b16 %v366
        %v1511 = vunpack.c.h.b16 %v366
        %v1512 = vunpack.c.l.b16 %v367
        %v1513 = vunpack.c.h.b16 %v367
        %v1514 = vunpack.c.l.b16 %v368
        %v1515 = vunpack.c.h.b16 %v368
        %v1516 = vunpack.c.l.b16 %v369
        %v1517 = vunpack.c.l.b16 %v370
        %v1518 = vunpack.c.h.b16 %v370
        %v1519 = vunpack.c.l.b16 %v371
        %v1520 = vunpack.c.h.b16 %v371
        %v1521 = vunpack.c.l.b16 %v372
        %v1522 = vunpack.c.h.b16 %v372
        %v1523 = vunpack.c.l.b16 %v373
        %v1524 = vunpack.c.h.b16 %v373
        %v1525 = vunpack.c.l.b16 %v374
        %v1526 = vunpack.c.l.b16 %v375
        %v1527 = vunpack.c.h.b16 %v375
        %v1528 = vunpack.c.l.b16 %v376
        %v1529 = vunpack.c.h.b16 %v376
        %v1530 = vunpack.c.l.b16 %v377
        %v1531 = vunpack.c.h.b16 %v377
        %v1532 = vunpack.c.l.b16 %v378
        %v1533 = vunpack.c.h.b16 %v378
        %v1534 = vunpack.c.l.b16 %v379
        %v1535 = vunpack.c.l.b16 %v380
        %v1536 = vunpack.c.h.b16 %v380
        %v1537 = vunpack.c.l.b16 %v381
        %v1538 = vunpack.c.h.b16 %v381
        %v1539 = vunpack.c.l.b16 %v382
        %v1540 = vunpack.c.h.b16 %v382
        %v1541 = vunpack.c.l.b16 %v383
        %v1542 = vunpack.c.h.b16 %v383
        %v1543 = vunpack.c.l.b16 %v384
        %v1544 = vunpack.c.l.b16 %v385
        %v1545 = vunpack.c.h.b16 %v385
        %v1546 = vunpack.c.l.b16 %v386
        %v1547 = vunpack.c.h.b16 %v386
        %v1548 = vunpack.c.l.b16 %v387
        %v1549 = vunpack.c.h.b16 %v387
        %v1550 = vunpack.c.l.b16 %v388
        %v1551 = vunpack.c.h.b16 %v388
        %v1552 = vunpack.c.l.b16 %v389
        %v1553 = vunpack.c.l.b16 %v390
        %v1554 = vunpack.c.h.b16 %v390
        %v1555 = vunpack.c.l.b16 %v391
        %v1556 = vunpack.c.h.b16 %v391
        %v1557 = vunpack.c.l.b16 %v392
        %v1558 = vunpack.c.h.b16 %v392
        %v1559 = vunpack.c.l.b16 %v393
        %v1560 = vunpack.c.h.b16 %v393
        %v1561 = vunpack.c.l.b16 %v394
        %v1562 = vunpack.c.l.b16 %v395
        %v1563 = vunpack.c.h.b16 %v395
        %v1564 = vunpack.c.l.b16 %v396
        %v1565 = vunpack.c.h.b16 %v396
        %v1566 = vunpack.c.l.b16 %v397
        %v1567 = vunpack.c.h.b16 %v397
        %v1568 = vunpack.c.l.b16 %v398
        %v1569 = vunpack.c.h.b16 %v398
        %v1570 = vunpack.c.l.b16 %v399
        %v1571 = vunpack.c.l.b16 %v400
        %v1572 = vunpack.c.h.b16 %v400
        %v1573 = vunpack.c.l.b16 %v401
        %v1574 = vunpack.c.h.b16 %v401
        %v1575 = vunpack.c.l.b16 %v402
        %v1576 = vunpack.c.h.b16 %v402
        %v1577 = vunpack.c.l.b16 %v403
        %v1578 = vunpack.c.h.b16 %v403
        %v1579 = vunpack.c.l.b16 %v404
        %v1580 = vunpack.c.l.b16 %v405
        %v1581 = vunpack.c.h.b16 %v405
        %v1582 = vunpack.c.l.b16 %v406
        %v1583 = vunpack.c.h.b16 %v406
        %v1584 = vunpack.c.l.b16 %v407
        %v1585 = vunpack.c.h.b16 %v407
        %v1586 = vunpack.c.l.b16 %v408
        %v1587 = vunpack.c.h.b16 %v408
        %v1588 = vunpack.c.l.b16 %v409
        %v1589 = vunpack.c.l.b16 %v410
        %v1590 = vunpack.c.h.b16 %v410
        %v1591 = vunpack.c.l.b16 %v411
        %v1592 = vunpack.c.h.b16 %v411
        %v1593 = vunpack.c.l.b16 %v412
        %v1594 = vunpack.c.h.b16 %v412
        %v1595 = vunpack.c.l.b16 %v413
        %v1596 = vunpack.c.h.b16 %v413
        %v1597 = vunpack.c.l.b16 %v414
        %v1598 = vunpack.c.l.b16 %v415
        %v1599 = vunpack.c.h.b16 %v415
        %v1600 = vunpack.c.l.b16 %v416
        %v1601 = vunpack.c.h.b16 %v416
        %v1602 = vunpack.c.l.b16 %v417
        %v1603 = vunpack.c.h.b16 %v417
        %v1604 = vunpack.c.l.b16 %v418
        %v1605 = vunpack.c.h.b16 %v418
        %v1606 = vunpack.c.l.b16 %v419
        %v1607 = vunpack.c.l.b16 %v420
        %v1608 = vunpack.c.h.b16 %v420
        %v1609 = vunpack.c.l.b16 %v421
        %v1610 = vunpack.c.h.b16 %v421
        %v1611 = vunpack.c.l.b16 %v422
        %v1612 = vunpack.c.h.b16 %v422
        %v1613 = vunpack.c.l.b16 %v423
        %v1614 = vunpack.c.h.b16 %v423
        %v1615 = vunpack.c.l.b16 %v424
        %v1616 = vunpack.c.l.b16 %v425
        %v1617 = vunpack.c.h.b16 %v425
        %v1618 = vunpack.c.l.b16 %v426
        %v1619 = vunpack.c.h.b16 %v426
        %v1620 = vunpack.c.l.b16 %v427
        %v1621 = vunpack.c.h.b16 %v427
        %v1622 = vunpack.c.l.b16 %v428
        %v1623 = vunpack.c.h.b16 %v428
        %v1624 = vunpack.c.l.b16 %v429
        %v1625 = vunpack.c.l.b16 %v430
        %v1626 = vunpack.c.h.b16 %v430
        %v1627 = vunpack.c.l.b16 %v431
        %v1628 = vunpack.c.h.b16 %v431
        %v1629 = vunpack.c.l.b16 %v432
        %v1630 = vunpack.c.h.b16 %v432
        %v1631 = vunpack.c.l.b16 %v433
        %v1632 = vunpack.c.h.b16 %v433
        %v1633 = vunpack.c.l.b16 %v434
        %v1634 = vunpack.c.l.b16 %v435
        %v1635 = vunpack.c.h.b16 %v435
        %v1636 = vunpack.c.l.b16 %v436
        %v1637 = vunpack.c.h.b16 %v436
        %v1638 = vunpack.c.l.b16 %v437
        %v1639 = vunpack.c.h.b16 %v437
        %v1640 = vunpack.c.l.b16 %v438
        %v1641 = vunpack.c.h.b16 %v438
        %v1642 = vunpack.c.l.b16 %v439
        %v1643 = vunpack.c.l.b16 %v440
        %v1644 = vunpack.c.h.b16 %v440
        %v1645 = vunpack.c.l.b16 %v441
        %v1646 = vunpack.c.h.b16 %v441
        %v1647 = vunpack.c.l.b16 %v442
        %v1648 = vunpack.c.h.b16 %v442
        %v1649 = vunpack.c.l.b16 %v443
        %v1650 = vunpack.c.h.b16 %v443
        %v1651 = vunpack.c.l.b16 %v444
        %v1652 = vunpack.c.l.b16 %v445
        %v1653 = vunpack.c.h.b16 %v445
        %v1654 = vunpack.c.l.b16 %v446
        %v1655 = vunpack.c.h.b16 %v446
        %v1656 = vunpack.c.l.b16 %v447
        %v1657 = vunpack.c.h.b16 %v447
        %v1658 = vunpack.c.l.b16 %v448
        %v1659 = vunpack.c.h.b16 %v448
        %v1660 = vunpack.c.l.b16 %v449
        %v1661 = vunpack.c.l.b16 %v450
        %v1662 = vunpack.c.h.b16 %v450
        %v1663 = vunpack.c.l.b16 %v451
        %v1664 = vunpack.c.h.b16 %v451
        %v1665 = vunpack.c.l.b16 %v452
        %v1666 = vunpack.c.h.b16 %v452
        %v1667 = vunpack.c.l.b16 %v453
        %v1668 = vunpack.c.h.b16 %v453
        %v1669 = vunpack.c.l.b16 %v454
        %v1670 = vunpack.c.l.b16 %v455
        %v1671 = vunpack.c.h.b16 %v455
        %v1672 = vunpack.c.l.b16 %v456
        %v1673 = vunpack.c.h.b16 %v456
        %v1674 = vunpack.c.l.b16 %v457
        %v1675 = vunpack.c.h.b16 %v457
        %v1676 = vunpack.c.l.b16 %v458
        %v1677 = vunpack.c.h.b16 %v458
        %v1678 = vunpack.c.l.b16 %v459
        %v1679 = vunpack.c.l.b16 %v460
        %v1680 = vunpack.c.h.b16 %v460
        %v1681 = vunpack.c.l.b16 %v461
        %v1682 = vunpack.c.h.b16 %v461
        %v1683 = vunpack.c.l.b16 %v462
        %v1684 = vunpack.c.h.b16 %v462
        %v1685 = vunpack.c.l.b16 %v463
        %v1686 = vunpack.c.h.b16 %v463
        %v1687 = vunpack.c.l.b16 %v464
        %v1688 = vunpack.c.l.b16 %v465
        %v1689 = vunpack.c.h.b16 %v465
        %v1690 = vunpack.c.l.b16 %v466
        %v1691 = vunpack.c.h.b16 %v466
        %v1692 = vunpack.c.l.b16 %v467
        %v1693 = vunpack.c.h.b16 %v467
        %v1694 = vunpack.c.l.b16 %v468
        %v1695 = vunpack.c.h.b16 %v468
        %v1696 = vunpack.c.l.b16 %v469
        %v1697 = vunpack.c.l.b16 %v470
        %v1698 = vunpack.c.h.b16 %v470
        %v1699 = vunpack.c.l.b16 %v471
        %v1700 = vunpack.c.h.b16 %v471
        %v1701 = vunpack.c.l.b16 %v472
        %v1702 = vunpack.c.h.b16 %v472
        %v1703 = vunpack.c.l.b16 %v473
        %v1704 = vunpack.c.h.b16 %v473
        %v1705 = vunpack.c.l.b16 %v474
        %v1706 = vunpack.c.l.b16 %v475
        %v1707 = vunpack.c.h.b16 %v475
        %v1708 = vunpack.c.l.b16 %v476
        %v1709 = vunpack.c.h.b16 %v476
        %v1710 = vunpack.c.l.b16 %v477
        %v1711 = vunpack.c.h.b16 %v477
        %v1712 = vunpack.c.l.b16 %v478
        %v1713 = vunpack.c.h.b16 %v478
        %v1714 = vunpack.c.l.b16 %v479
        %v1715 = vunpack.c.l.b16 %v480
        %v1716 = vunpack.c.h.b16 %v480
        %v1717 = vunpack.c.l.b16 %v481
        %v1718 = vunpack.c.h.b16 %v481
        %v1719 = vunpack.c.l.b16 %v482
        %v1720 = vunpack.c.h.b16 %v482
        %v1721 = vunpack.c.l.b16 %v483
        %v1722 = vunpack.c.h.b16 %v483
        %v1723 = vunpack.c.l.b16 %v484
        %v1724 = vunpack.c.l.b16 %v485
        %v1725 = vunpack.c.h.b16 %v485
        %v1726 = vunpack.c.l.b16 %v486
        %v1727 = vunpack.c.h.b16 %v486
        %v1728 = vunpack.c.l.b16 %v487
        %v1729 = vunpack.c.h.b16 %v487
        %v1730 = vunpack.c.l.b16 %v488
        %v1731 = vunpack.c.h.b16 %v488
        %v1732 = vunpack.c.l.b16 %v489
        %v1733 = vunpack.c.l.b16 %v490
        %v1734 = vunpack.c.h.b16 %v490
        %v1735 = vunpack.c.l.b16 %v491
        %v1736 = vunpack.c.h.b16 %v491
        %v1737 = vunpack.c.l.b16 %v492
        %v1738 = vunpack.c.h.b16 %v492
        %v1739 = vunpack.c.l.b16 %v493
        %v1740 = vunpack.c.h.b16 %v493
        %v1741 = vunpack.c.l.b16 %v494
        %v1742 = vunpack.c.l.b16 %v495
        %v1743 = vunpack.c.h.b16 %v495
        %v1744 = vunpack.c.l.b16 %v496
        %v1745 = vunpack.c.h.b16 %v496
        %v1746 = vunpack.c.l.b16 %v497
        %v1747 = vunpack.c.h.b16 %v497
        %v1748 = vunpack.c.l.b16 %v498
        %v1749 = vunpack.c.h.b16 %v498
        %v1750 = vunpack.c.l.b16 %v499
        %v1751 = vunpack.c.l.b16 %v500
        %v1752 = vunpack.c.h.b16 %v500
        %v1753 = vunpack.c.l.b16 %v501
        %v1754 = vunpack.c.h.b16 %v501
        %v1755 = vunpack.c.l.b16 %v502
        %v1756 = vunpack.c.h.b16 %v502
        %v1757 = vunpack.c.l.b16 %v503
        %v1758 = vunpack.c.h.b16 %v503
        %v1759 = vunpack.c.l.b16 %v504
        %v1760 = vunpack.c.l.b16 %v505
        %v1761 = vunpack.c.h.b16 %v505
        %v1762 = vunpack.c.l.b16 %v506
        %v1763 = vunpack.c.h.b16 %v506
        %v1764 = vunpack.c.l.b16 %v507
        %v1765 = vunpack.c.h.b16 %v507
        %v1766 = vunpack.c.l.b16 %v508
        %v1767 = vunpack.c.h.b16 %v508
        %v1768 = vunpack.c.l.b16 %v509
        %v1769 = vunpack.c.l.b16 %v510
        %v1770 = vunpack.c.h.b16 %v510
        %v1771 = vunpack.c.l.b16 %v511
        %v1772 = vunpack.c.h.b16 %v511
        %v1773 = vunpack.c.l.b16 %v512
        %v1774 = vunpack.c.h.b16 %v512
        %v1775 = vunpack.c.l.b16 %v513
        %v1776 = vunpack.c.h.b16 %v513
        %v1777 = vunpack.c.l.b16 %v514
        %v1778 = vunpack.c.l.b16 %v515
        %v1779 = vunpack.c.h.b16 %v515
        %v1780 = vunpack.c.l.b16 %v516
        %v1781 = vunpack.c.h.b16 %v516
        %v1782 = vunpack.c.l.b16 %v517
        %v1783 = vunpack.c.h.b16 %v517
        %v1784 = vunpack.c.l.b16 %v518
        %v1785 = vunpack.c.h.b16 %v518
        %v1786 = vunpack.c.l.b16 %v519
        %v1787 = vunpack.c.l.b16 %v520
        %v1788 = vunpack.c.h.b16 %v520
        %v1789 = vunpack.c.l.b16 %v521
        %v1790 = vunpack.c.h.b16 %v521
        %v1791 = vunpack.c.l.b16 %v522
        %v1792 = vunpack.c.h.b16 %v522
        %v1793 = vunpack.c.l.b16 %v523
        %v1794 = vunpack.c.h.b16 %v523
        %v1795 = vunpack.c.l.b16 %v524
        %v1796 = vunpack.c.l.b16 %v525
        %v1797 = vunpack.c.h.b16 %v525
        %v1798 = vunpack.c.l.b16 %v526
        %v1799 = vunpack.c.h.b16 %v526
        %v1800 = vunpack.c.l.b16 %v527
        %v1801 = vunpack.c.h.b16 %v527
        %v1802 = vunpack.c.l.b16 %v528
        %v1803 = vunpack.c.h.b16 %v528
        %v1804 = vunpack.c.l.b16 %v529
        %v1805 = vunpack.c.l.b16 %v530
        %v1806 = vunpack.c.h.b16 %v530
        %v1807 = vunpack.c.l.b16 %v531
        %v1808 = vunpack.c.h.b16 %v531
        %v1809 = vunpack.c.l.b16 %v532
        %v1810 = vunpack.c.h.b16 %v532
        %v1811 = vunpack.c.l.b16 %v533
        %v1812 = vunpack.c.h.b16 %v533
        %v1813 = vunpack.c.l.b16 %v534
        %v1814 = vunpack.c.l.b16 %v535
        %v1815 = vunpack.c.h.b16 %v535
        %v1816 = vunpack.c.l.b16 %v536
        %v1817 = vunpack.c.h.b16 %v536
        %v1818 = vunpack.c.l.b16 %v537
        %v1819 = vunpack.c.h.b16 %v537
        %v1820 = vunpack.c.l.b16 %v538
        %v1821 = vunpack.c.h.b16 %v538
        %v1822 = vunpack.c.l.b16 %v539
        %v1823 = vunpack.c.l.b16 %v540
        %v1824 = vunpack.c.h.b16 %v540
        %v1825 = vunpack.c.l.b16 %v541
        %v1826 = vunpack.c.h.b16 %v541
        %v1827 = vunpack.c.l.b16 %v542
        %v1828 = vunpack.c.h.b16 %v542
        %v1829 = vunpack.c.l.b16 %v543
        %v1830 = vunpack.c.h.b16 %v543
        %v1831 = vunpack.c.l.b16 %v544
        %v1832 = vunpack.c.l.b16 %v545
        %v1833 = vunpack.c.h.b16 %v545
        %v1834 = vunpack.c.l.b16 %v546
        %v1835 = vunpack.c.h.b16 %v546
        %v1836 = vunpack.c.l.b16 %v547
        %v1837 = vunpack.c.h.b16 %v547
        %v1838 = vunpack.c.l.b16 %v548
        %v1839 = vunpack.c.h.b16 %v548
        %v1840 = vunpack.c.l.b16 %v549
        %v1841 = vunpack.c.l.b16 %v550
        %v1842 = vunpack.c.h.b16 %v550
        %v1843 = vunpack.c.l.b16 %v551
        %v1844 = vunpack.c.h.b16 %v551
        %v1845 = vunpack.c.l.b16 %v552
        %v1846 = vunpack.c.h.b16 %v552
        %v1847 = vunpack.c.l.b16 %v553
        %v1848 = vunpack.c.h.b16 %v553
        %v1849 = vunpack.c.l.b16 %v554
        %v1850 = vunpack.c.l.b16 %v555
        %v1851 = vunpack.c.h.b16 %v555
        %v1852 = vunpack.c.l.b16 %v556
        %v1853 = vunpack.c.h.b16 %v556
        %v1854 = vunpack.c.l.b16 %v557
        %v1855 = vunpack.c.h.b16 %v557
        %v1856 = vunpack.c.l.b16 %v558
        %v1857 = vunpack.c.h.b16 %v558
        %v1858 = vunpack.c.l.b16 %v559
        %v1859 = vunpack.c.l.b16 %v560
        %v1860 = vunpack.c.h.b16 %v560
        %v1861 = vunpack.c.l.b16 %v561
        %v1862 = vunpack.c.h.b16 %v561
        %v1863 = vunpack.c.l.b16 %v562
        %v1864 = vunpack.c.h.b16 %v562
        %v1865 = vunpack.c.l.b16 %v563
        %v1866 = vunpack.c.h.b16 %v563
        %v1867 = vunpack.c.l.b16 %v564
        %v1868 = vunpack.c.l.b16 %v565
        %v1869 = vunpack.c.h.b16 %v565
        %v1870 = vunpack.c.l.b16 %v566
        %v1871 = vunpack.c.h.b16 %v566
        %v1872 = vunpack.c.l.b16 %v567
        %v1873 = vunpack.c.h.b16 %v567
        %v1874 = vunpack.c.l.b16 %v568
        %v1875 = vunpack.c.h.b16 %v568
        %v1876 = vunpack.c.l.b16 %v569
        %v1877 = vunpack.c.l.b16 %v570
        %v1878 = vunpack.c.h.b16 %v570
        %v1879 = vunpack.c.l.b16 %v571
        %v1880 = vunpack.c.h.b16 %v571
        %v1881 = vunpack.c.l.b16 %v572
        %v1882 = vunpack.c.h.b16 %v572
        %v1883 = vunpack.c.l.b16 %v573
        %v1884 = vunpack.c.h.b16 %v573
        %v1885 = vunpack.c.l.b16 %v574
        %v1886 = vunpack.c.l.b16 %v575
        %v1887 = vunpack.c.h.b16 %v575
        %v1888 = vunpack.c.l.b16 %v576
        %v1889 = vunpack.c.h.b16 %v576
        %v1890 = vunpack.c.l.b16 %v577
        %v1891 = vunpack.c.h.b16 %v577
        %v1892 = vunpack.c.l.b16 %v578
        %v1893 = vunpack.c.h.b16 %v578
        %v1894 = vunpack.c.l.b16 %v579
        %v1895 = vunpack.c.l.b16 %v580
        %v1896 = vunpack.c.h.b16 %v580
        %v1897 = vunpack.c.l.b16 %v581
        %v1898 = vunpack.c.h.b16 %v581
        %v1899 = vunpack.c.l.b16 %v582
        %v1900 = vunpack.c.h.b16 %v582
        %v1901 = vunpack.c.l.b16 %v583
        %v1902 = vunpack.c.h.b16 %v583
        %v1903 = vunpack.c.l.b16 %v584
        %v1904 = vunpack.c.l.b16 %v585
        %v1905 = vunpack.c.h.b16 %v585
        %v1906 = vunpack.c.l.b16 %v586
        %v1907 = vunpack.c.h.b16 %v586
        %v1908 = vunpack.c.l.b16 %v587
        %v1909 = vunpack.c.h.b16 %v587
        %v1910 = vunpack.c.l.b16 %v588
        %v1911 = vunpack.c.h.b16 %v588
        %v1912 = vunpack.c.l.b16 %v589
        %v1913 = vunpack.c.l.b16 %v590
        %v1914 = vunpack.c.h.b16 %v590
        %v1915 = vunpack.c.l.b16 %v591
        %v1916 = vunpack.c.h.b16 %v591
        %v1917 = vunpack.c.l.b16 %v592
        %v1918 = vunpack.c.h.b16 %v592
        %v1919 = vunpack.c.l.b16 %v593
        %v1920 = vunpack.c.h.b16 %v593
        %v1921 = vunpack.c.l.b16 %v594
        %v1922 = vunpack.c.l.b16 %v595
        %v1923 = vunpack.c.h.b16 %v595
        %v1924 = vunpack.c.l.b16 %v596
        %v1925 = vunpack.c.h.b16 %v596
        %v1926 = vunpack.c.l.b16 %v597
        %v1927 = vunpack.c.h.b16 %v597
        %v1928 = vunpack.c.l.b16 %v598
        %v1929 = vunpack.c.h.b16 %v598
        %v1930 = vunpack.c.l.b16 %v599
        %v1931 = vunpack.c.l.b16 %v600
        %v1932 = vunpack.c.h.b16 %v600
        %v1933 = vunpack.c.l.b16 %v601
        %v1934 = vunpack.c.h.b16 %v601
        %v1935 = vunpack.c.l.b16 %v602
        %v1936 = vunpack.c.h.b16 %v602
        %v1937 = vunpack.c.l.b16 %v603
        %v1938 = vunpack.c.h.b16 %v603
        %v1939 = vunpack.c.l.b16 %v604
        %v1940 = vunpack.c.l.b16 %v605
        %v1941 = vunpack.c.h.b16 %v605
        %v1942 = vunpack.c.l.b16 %v606
        %v1943 = vunpack.c.h.b16 %v606
        %v1944 = vunpack.c.l.b16 %v607
        %v1945 = vunpack.c.h.b16 %v607
        %v1946 = vunpack.c.l.b16 %v608
        %v1947 = vunpack.c.h.b16 %v608
        %v1948 = vunpack.c.l.b16 %v609
        %v1949 = vunpack.c.l.b16 %v610
        %v1950 = vunpack.c.h.b16 %v610
        %v1951 = vunpack.c.l.b16 %v611
        %v1952 = vunpack.c.h.b16 %v611
        %v1953 = vunpack.c.l.b16 %v612
        %v1954 = vunpack.c.h.b16 %v612
        %v1955 = vunpack.c.l.b16 %v613
        %v1956 = vunpack.c.h.b16 %v613
        %v1957 = vunpack.c.l.b16 %v614
        %v1958 = vunpack.c.l.b16 %v615
        %v1959 = vunpack.c.h.b16 %v615
        %v1960 = vunpack.c.l.b16 %v616
        %v1961 = vunpack.c.h.b16 %v616
        %v1962 = vunpack.c.l.b16 %v617
        %v1963 = vunpack.c.h.b16 %v617
        %v1964 = vunpack.c.l.b16 %v618
        %v1965 = vunpack.c.h.b16 %v618
        %v1966 = vunpack.c.l.b16 %v619
        %v1967 = vunpack.c.l.b16 %v620
        %v1968 = vunpack.c.h.b16 %v620
        %v1969 = vunpack.c.l.b16 %v621
        %v1970 = vunpack.c.h.b16 %v621
        %v1971 = vunpack.c.l.b16 %v622
        %v1972 = vunpack.c.h.b16 %v622
        %v1973 = vunpack.c.l.b16 %v623
        %v1974 = vunpack.c.h.b16 %v623
        %v1975 = vunpack.c.l.b16 %v624
        %v1976 = vunpack.c.l.b16 %v625
        %v1977 = vunpack.c.h.b16 %v625
        %v1978 = vunpack.c.l.b16 %v626
        %v1979 = vunpack.c.h.b16 %v626
        %v1980 = vunpack.c.l.b16 %v627
        %v1981 = vunpack.c.h.b16 %v627
        %v1982 = vunpack.c.l.b16 %v628
        %v1983 = vunpack.c.h.b16 %v628
        %v1984 = vunpack.c.l.b16 %v629
        %v1985 = vunpack.c.l.b16 %v630
        %v1986 = vunpack.c.h.b16 %v630
        %v1987 = vunpack.c.l.b16 %v631
        %v1988 = vunpack.c.h.b16 %v631
        %v1989 = vunpack.c.l.b16 %v632
        %v1990 = vunpack.c.h.b16 %v632
        %v1991 = vunpack.c.l.b16 %v633
        %v1992 = vunpack.c.h.b16 %v633
        %v1993 = vunpack.c.l.b16 %v634
        %v1994 = vunpack.c.l.b16 %v635
        %v1995 = vunpack.c.h.b16 %v635
        %v1996 = vunpack.c.l.b16 %v636
        %v1997 = vunpack.c.h.b16 %v636
        %v1998 = vunpack.c.l.b16 %v637
        %v1999 = vunpack.c.h.b16 %v637
        %v2000 = vunpack.c.l.b16 %v638
        %v2001 = vunpack.c.h.b16 %v638
        %v2002 = vunpack.c.l.b16 %v639
        %v2003 = vunpack.c.l.b16 %v640
        %v2004 = vunpack.c.h.b16 %v640
        %v2005 = vunpack.c.l.b16 %v641
        %v2006 = vunpack.c.h.b16 %v641
        %v2007 = vunpack.c.l.b16 %v642
        %v2008 = vunpack.c.h.b16 %v642
        %v2009 = vunpack.c.l.b16 %v643
        %v2010 = vunpack.c.h.b16 %v643
        %v2011 = vunpack.c.l.b16 %v644
        %v2012 = vunpack.c.l.b16 %v645
        %v2013 = vunpack.c.h.b16 %v645
        %v2014 = vunpack.c.l.b16 %v646
        %v2015 = vunpack.c.h.b16 %v646
        %v2016 = vunpack.c.l.b16 %v647
        %v2017 = vunpack.c.h.b16 %v647
        %v2018 = vunpack.c.l.b16 %v648
        %v2019 = vunpack.c.h.b16 %v648
        %v2020 = vunpack.c.l.b16 %v649
        %v2021 = vunpack.c.l.b16 %v650
        %v2022 = vunpack.c.h.b16 %v650
        %v2023 = vunpack.c.l.b16 %v651
        %v2024 = vunpack.c.h.b16 %v651
        %v2025 = vunpack.c.l.b16 %v652
        %v2026 = vunpack.c.h.b16 %v652
        %v2027 = vunpack.c.l.b16 %v653
        %v2028 = vunpack.c.h.b16 %v653
        %v2029 = vunpack.c.l.b16 %v654
        %v2030 = vunpack.c.l.b16 %v655
        %v2031 = vunpack.c.h.b16 %v655
        %v2032 = vunpack.c.l.b16 %v656
        %v2033 = vunpack.c.h.b16 %v656
        %v2034 = vunpack.c.l.b16 %v657
        %v2035 = vunpack.c.h.b16 %v657
        %v2036 = vunpack.c.l.b16 %v658
        %v2037 = vunpack.c.h.b16 %v658
        %v2038 = vunpack.c.l.b16 %v659
        %v2039 = vunpack.c.l.b16 %v660
        %v2040 = vunpack.c.h.b16 %v660
        %v2041 = vunpack.c.l.b16 %v661
        %v2042 = vunpack.c.h.b16 %v661
        %v2043 = vunpack.c.l.b16 %v662
        %v2044 = vunpack.c.h.b16 %v662
        %v2045 = vunpack.c.l.b16 %v663
        %v2046 = vunpack.c.h.b16 %v663
        %v2047 = vunpack.c.l.b16 %v664
        %v2048 = vunpack.c.l.b16 %v665
        %v2049 = vunpack.c.h.b16 %v665
        %v2050 = vunpack.c.l.b16 %v666
        %v2051 = vunpack.c.h.b16 %v666
        %v2052 = vunpack.c.l.b16 %v667
        %v2053 = vunpack.c.h.b16 %v667
        %v2054 = vunpack.c.l.b16 %v668
        %v2055 = vunpack.c.h.b16 %v668
        %v2056 = vunpack.c.l.b16 %v669
        %v2057 = vunpack.c.l.b16 %v670
        %v2058 = vunpack.c.h.b16 %v670
        %v2059 = vunpack.c.l.b16 %v671
        %v2060 = vunpack.c.h.b16 %v671
        %v2061 = vunpack.c.l.b16 %v672
        %v2062 = vunpack.c.h.b16 %v672
        %v2063 = vunpack.c.l.b16 %v673
        %v2064 = vunpack.c.h.b16 %v673
        %v2065 = vunpack.c.l.b16 %v674
        %v2066 = vunpack.c.l.b16 %v675
        %v2067 = vunpack.c.h.b16 %v675
        %v2068 = vunpack.c.l.b16 %v676
        %v2069 = vunpack.c.h.b16 %v676
        %v2070 = vunpack.c.l.b16 %v677
        %v2071 = vunpack.c.h.b16 %v677
        %v2072 = vunpack.c.l.b16 %v678
        %v2073 = vunpack.c.h.b16 %v678
        %v2074 = vunpack.c.l.b16 %v679
        %v2075 = vunpack.c.l.b16 %v680
        %v2076 = vunpack.c.h.b16 %v680
        %v2077 = vunpack.c.l.b16 %v681
        %v2078 = vunpack.c.h.b16 %v681
        %v2079 = vunpack.c.l.b16 %v682
        %v2080 = vunpack.c.h.b16 %v682
        %v2081 = vunpack.c.l.b16 %v683
        %v2082 = vunpack.c.h.b16 %v683
        %v2083 = vunpack.c.l.b16 %v684
        %v2084 = vunpack.c.l.b16 %v685
        %v2085 = vunpack.c.h.b16 %v685
        %v2086 = vunpack.c.l.b16 %v686
        %v2087 = vunpack.c.h.b16 %v686
        %v2088 = vunpack.c.l.b16 %v687
        %v2089 = vunpack.c.h.b16 %v687
        %v2090 = vunpack.c.l.b16 %v688
        %v2091 = vunpack.c.h.b16 %v688
        %v2092 = vunpack.c.l.b16 %v689
        %v2093 = vunpack.c.l.b16 %v690
        %v2094 = vunpack.c.h.b16 %v690
        %v2095 = vunpack.c.l.b16 %v691
        %v2096 = vunpack.c.h.b16 %v691
        %v2097 = vunpack.c.l.b16 %v692
        %v2098 = vunpack.c.h.b16 %v692
        %v2099 = vunpack.c.l.b16 %v693
        %v2100 = vunpack.c.h.b16 %v693
        %v2101 = vunpack.c.l.b16 %v694
        %v2102 = vunpack.c.l.b16 %v695
        %v2103 = vunpack.c.h.b16 %v695
        %v2104 = vunpack.c.l.b16 %v696
        %v2105 = vunpack.c.h.b16 %v696
        %v2106 = vunpack.c.l.b16 %v697
        %v2107 = vunpack.c.h.b16 %v697
        %v2108 = vunpack.c.l.b16 %v698
        %v2109 = vunpack.c.h.b16 %v698
        %v2110 = vunpack.c.l.b16 %v699
        %v2111 = vunpack.c.l.b16 %v700
        %v2112 = vunpack.c.h.b16 %v700
        %v2113 = vunpack.c.l.b16 %v701
        %v2114 = vunpack.c.h.b16 %v701
        %v2115 = vunpack.c.l.b16 %v702
        %v2116 = vunpack.c.h.b16 %v702
        %v2117 = vunpack.c.l.b16 %v703
        %v2118 = vunpack.c.h.b16 %v703
        %v2119 = vunpack.c.l.b16 %v704
        %v2120 = vunpack.c.l.b16 %v705
        %v2121 = vunpack.c.h.b16 %v705
        %v2122 = vunpack.c.l.b16 %v706
        %v2123 = vunpack.c.h.b16 %v706
        %v2124 = vunpack.c.l.b16 %v707
        %v2125 = vunpack.c.h.b16 %v707
        %v2126 = vunpack.c.l.b16 %v708
        %v2127 = vunpack.c.h.b16 %v708
        %v2128 = vunpack.c.l.b16 %v709
        %v2129 = vunpack.c.l.b16 %v710
        %v2130 = vunpack.c.h.b16 %v710
        %v2131 = vunpack.c.l.b16 %v711
        %v2132 = vunpack.c.h.b16 %v711
        %v2133 = vunpack.c.l.b16 %v712
        %v2134 = vunpack.c.h.b16 %v712
        %v2135 = vunpack.c.l.b16 %v713
        %v2136 = vunpack.c.h.b16 %v713
        %v2137 = vunpack.c.l.b16 %v714
        %v2138 = vpack.c.b16 %v1283, %v1274
        %v2139 = vpack.c.b16 %v1284, %v1275
        %v2140 = vpack.c.b16 %v1285, %v1276
        %v2141 = vpack.c.b16 %v1286, %v1277
        %v2142 = vpack.c.b16 %v1287, %v1278
        %v2143 = vpack.c.b16 %v1288, %v1279
        %v2144 = vpack.c.b16 %v1289, %v1280
        %v2145 = vpack.c.b16 %v1290, %v1281
        %v2146 = vpack.c.b16 %v1291, %v1282
        %v2147 = vpack.c.b16 %v1301, %v1292
        %v2148 = vpack.c.b16 %v1302, %v1293
        %v2149 = vpack.c.b16 %v1303, %v1294
        %v2150 = vpack.c.b16 %v1304, %v1295
        %v2151 = vpack.c.b16 %v1305, %v1296
        %v2152 = vpack.c.b16 %v1306, %v1297
        %v2153 = vpack.c.b16 %v1307, %v1298
        %v2154 = vpack.c.b16 %v1308, %v1299
        %v2155 = vpack.c.b16 %v1309, %v1300
        %v2156 = vpack.c.b16 %v1319, %v1310
        %v2157 = vpack.c.b16 %v1320, %v1311
        %v2158 = vpack.c.b16 %v1321, %v1312
        %v2159 = vpack.c.b16 %v1322, %v1313
        %v2160 = vpack.c.b16 %v1323, %v1314
        %v2161 = vpack.c.b16 %v1324, %v1315
        %v2162 = vpack.c.b16 %v1325, %v1316
        %v2163 = vpack.c.b16 %v1326, %v1317
        %v2164 = vpack.c.b16 %v1327, %v1318
        %v2165 = vpack.c.b16 %v1337, %v1328
        %v2166 = vpack.c.b16 %v1338, %v1329
        %v2167 = vpack.c.b16 %v1339, %v1330
        %v2168 = vpack.c.b16 %v1340, %v1331
        %v2169 = vpack.c.b16 %v1341, %v1332
        %v2170 = vpack.c.b16 %v1342, %v1333
        %v2171 = vpack.c.b16 %v1343, %v1334
        %v2172 = vpack.c.b16 %v1344, %v1335
        %v2173 = vpack.c.b16 %v1345, %v1336
        %v2174 = vpack.c.b16 %v1355, %v1346
        %v2175 = vpack.c.b16 %v1356, %v1347
        %v2176 = vpack.c.b16 %v1357, %v1348
        %v2177 = vpack.c.b16 %v1358, %v1349
        %v2178 = vpack.c.b16 %v1359, %v1350
        %v2179 = vpack.c.b16 %v1360, %v1351
        %v2180 = vpack.c.b16 %v1361, %v1352
        %v2181 = vpack.c.b16 %v1362, %v1353
        %v2182 = vpack.c.b16 %v1363, %v1354
        %v2183 = vpack.c.b16 %v1373, %v1364
        %v2184 = vpack.c.b16 %v1374, %v1365
        %v2185 = vpack.c.b16 %v1375, %v1366
        %v2186 = vpack.c.b16 %v1376, %v1367
        %v2187 = vpack.c.b16 %v1377, %v1368
        %v2188 = vpack.c.b16 %v1378, %v1369
        %v2189 = vpack.c.b16 %v1379, %v1370
        %v2190 = vpack.c.b16 %v1380, %v1371
        %v2191 = vpack.c.b16 %v1381, %v1372
        %v2192 = vpack.c.b16 %v1391, %v1382
        %v2193 = vpack.c.b16 %v1392, %v1383
        %v2194 = vpack.c.b16 %v1393, %v1384
        %v2195 = vpack.c.b16 %v1394, %v1385
        %v2196 = vpack.c.b16 %v1395, %v1386
        %v2197 = vpack.c.b16 %v1396, %v1387
        %v2198 = vpack.c.b16 %v1397, %v1388
        %v2199 = vpack.c.b16 %v1398, %v1389
        %v2200 = vpack.c.b16 %v1399, %v1390
        %v2201 = vpack.c.b16 %v1409, %v1400
        %v2202 = vpack.c.b16 %v1410, %v1401
        %v2203 = vpack.c.b16 %v1411, %v1402
        %v2204 = vpack.c.b16 %v1412, %v1403
        %v2205 = vpack.c.b16 %v1413, %v1404
        %v2206 = vpack.c.b16 %v1414, %v1405
        %v2207 = vpack.c.b16 %v1415, %v1406
        %v2208 = vpack.c.b16 %v1416, %v1407
        %v2209 = vpack.c.b16 %v1417, %v1408
        %v2210 = vpack.c.b16 %v1427, %v1418
        %v2211 = vpack.c.b16 %v1428, %v1419
        %v2212 = vpack.c.b16 %v1429, %v1420
        %v2213 = vpack.c.b16 %v1430, %v1421
        %v2214 = vpack.c.b16 %v1431, %v1422
        %v2215 = vpack.c.b16 %v1432, %v1423
        %v2216 = vpack.c.b16 %v1433, %v1424
        %v2217 = vpack.c.b16 %v1434, %v1425
        %v2218 = vpack.c.b16 %v1435, %v1426
        %v2219 = vpack.c.b16 %v1445, %v1436
        %v2220 = vpack.c.b16 %v1446, %v1437
        %v2221 = vpack.c.b16 %v1447, %v1438
        %v2222 = vpack.c.b16 %v1448, %v1439
        %v2223 = vpack.c.b16 %v1449, %v1440
        %v2224 = vpack.c.b16 %v1450, %v1441
        %v2225 = vpack.c.b16 %v1451, %v1442
        %v2226 = vpack.c.b16 %v1452, %v1443
        %v2227 = vpack.c.b16 %v1453, %v1444
        %v2228 = vpack.c.b16 %v1463, %v1454
        %v2229 = vpack.c.b16 %v1464, %v1455
        %v2230 = vpack.c.b16 %v1465, %v1456
        %v2231 = vpack.c.b16 %v1466, %v1457
        %v2232 = vpack.c.b16 %v1467, %v1458
        %v2233 = vpack.c.b16 %v1468, %v1459
        %v2234 = vpack.c.b16 %v1469, %v1460
        %v2235 = vpack.c.b16 %v1470, %v1461
        %v2236 = vpack.c.b16 %v1471, %v1462
        %v2237 = vpack.c.b16 %v1481, %v1472
        %v2238 = vpack.c.b16 %v1482, %v1473
        %v2239 = vpack.c.b16 %v1483, %v1474
        %v2240 = vpack.c.b16 %v1484, %v1475
        %v2241 = vpack.c.b16 %v1485, %v1476
        %v2242 = vpack.c.b16 %v1486, %v1477
        %v2243 = vpack.c.b16 %v1487, %v1478
        %v2244 = vpack.c.b16 %v1488, %v1479
        %v2245 = vpack.c.b16 %v1489, %v1480
        %v2246 = vpack.c.b16 %v1499, %v1490
        %v2247 = vpack.c.b16 %v1500, %v1491
        %v2248 = vpack.c.b16 %v1501, %v1492
        %v2249 = vpack.c.b16 %v1502, %v1493
        %v2250 = vpack.c.b16 %v1503, %v1494
        %v2251 = vpack.c.b16 %v1504, %v1495
        %v2252 = vpack.c.b16 %v1505, %v1496
        %v2253 = vpack.c.b16 %v1506, %v1497
        %v2254 = vpack.c.b16 %v1507, %v1498
        %v2255 = vpack.c.b16 %v1517, %v1508
        %v2256 = vpack.c.b16 %v1518, %v1509
        %v2257 = vpack.c.b16 %v1519, %v1510
        %v2258 = vpack.c.b16 %v1520, %v1511
        %v2259 = vpack.c.b16 %v1521, %v1512
        %v2260 = vpack.c.b16 %v1522, %v1513
        %v2261 = vpack.c.b16 %v1523, %v1514
        %v2262 = vpack.c.b16 %v1524, %v1515
        %v2263 = vpack.c.b16 %v1525, %v1516
        %v2264 = vpack.c.b16 %v1535, %v1526
        %v2265 = vpack.c.b16 %v1536, %v1527
        %v2266 = vpack.c.b16 %v1537, %v1528
        %v2267 = vpack.c.b16 %v1538, %v1529
        %v2268 = vpack.c.b16 %v1539, %v1530
        %v2269 = vpack.c.b16 %v1540, %v1531
        %v2270 = vpack.c.b16 %v1541, %v1532
        %v2271 = vpack.c.b16 %v1542, %v1533
        %v2272 = vpack.c.b16 %v1543, %v1534
        %v2273 = vpack.c.b16 %v1553, %v1544
        %v2274 = vpack.c.b16 %v1554, %v1545
        %v2275 = vpack.c.b16 %v1555, %v1546
        %v2276 = vpack.c.b16 %v1556, %v1547
        %v2277 = vpack.c.b16 %v1557, %v1548
        %v2278 = vpack.c.b16 %v1558, %v1549
        %v2279 = vpack.c.b16 %v1559, %v1550
        %v2280 = vpack.c.b16 %v1560, %v1551
        %v2281 = vpack.c.b16 %v1561, %v1552
        %v2282 = vpack.c.b16 %v1571, %v1562
        %v2283 = vpack.c.b16 %v1572, %v1563
        %v2284 = vpack.c.b16 %v1573, %v1564
        %v2285 = vpack.c.b16 %v1574, %v1565
        %v2286 = vpack.c.b16 %v1575, %v1566
        %v2287 = vpack.c.b16 %v1576, %v1567
        %v2288 = vpack.c.b16 %v1577, %v1568
        %v2289 = vpack.c.b16 %v1578, %v1569
        %v2290 = vpack.c.b16 %v1579, %v1570
        %v2291 = vpack.c.b16 %v1589, %v1580
        %v2292 = vpack.c.b16 %v1590, %v1581
        %v2293 = vpack.c.b16 %v1591, %v1582
        %v2294 = vpack.c.b16 %v1592, %v1583
        %v2295 = vpack.c.b16 %v1593, %v1584
        %v2296 = vpack.c.b16 %v1594, %v1585
        %v2297 = vpack.c.b16 %v1595, %v1586
        %v2298 = vpack.c.b16 %v1596, %v1587
        %v2299 = vpack.c.b16 %v1597, %v1588
        %v2300 = vpack.c.b16 %v1607, %v1598
        %v2301 = vpack.c.b16 %v1608, %v1599
        %v2302 = vpack.c.b16 %v1609, %v1600
        %v2303 = vpack.c.b16 %v1610, %v1601
        %v2304 = vpack.c.b16 %v1611, %v1602
        %v2305 = vpack.c.b16 %v1612, %v1603
        %v2306 = vpack.c.b16 %v1613, %v1604
        %v2307 = vpack.c.b16 %v1614, %v1605
        %v2308 = vpack.c.b16 %v1615, %v1606
        %v2309 = vpack.c.b16 %v1625, %v1616
        %v2310 = vpack.c.b16 %v1626, %v1617
        %v2311 = vpack.c.b16 %v1627, %v1618
        %v2312 = vpack.c.b16 %v1628, %v1619
        %v2313 = vpack.c.b16 %v1629, %v1620
        %v2314 = vpack.c.b16 %v1630, %v1621
        %v2315 = vpack.c.b16 %v1631, %v1622
        %v2316 = vpack.c.b16 %v1632, %v1623
        %v2317 = vpack.c.b16 %v1633, %v1624
        %v2318 = vpack.c.b16 %v1643, %v1634
        %v2319 = vpack.c.b16 %v1644, %v1635
        %v2320 = vpack.c.b16 %v1645, %v1636
        %v2321 = vpack.c.b16 %v1646, %v1637
        %v2322 = vpack.c.b16 %v1647, %v1638
        %v2323 = vpack.c.b16 %v1648, %v1639
        %v2324 = vpack.c.b16 %v1649, %v1640
        %v2325 = vpack.c.b16 %v1650, %v1641
        %v2326 = vpack.c.b16 %v1651, %v1642
        %v2327 = vpack.c.b16 %v1661, %v1652
        %v2328 = vpack.c.b16 %v1662, %v1653
        %v2329 = vpack.c.b16 %v1663, %v1654
        %v2330 = vpack.c.b16 %v1664, %v1655
        %v2331 = vpack.c.b16 %v1665, %v1656
        %v2332 = vpack.c.b16 %v1666, %v1657
        %v2333 = vpack.c.b16 %v1667, %v1658
        %v2334 = vpack.c.b16 %v1668, %v1659
        %v2335 = vpack.c.b16 %v1669, %v1660
        %v2336 = vpack.c.b16 %v1679, %v1670
        %v2337 = vpack.c.b16 %v1680, %v1671
        %v2338 = vpack.c.b16 %v1681, %v1672
        %v2339 = vpack.c.b16 %v1682, %v1673
        %v2340 = vpack.c.b16 %v1683, %v1674
        %v2341 = vpack.c.b16 %v1684, %v1675
        %v2342 = vpack.c.b16 %v1685, %v1676
        %v2343 = vpack.c.b16 %v1686, %v1677
        %v2344 = vpack.c.b16 %v1687, %v1678
        %v2345 = vpack.c.b16 %v1697, %v1688
        %v2346 = vpack.c.b16 %v1698, %v1689
        %v2347 = vpack.c.b16 %v1699, %v1690
        %v2348 = vpack.c.b16 %v1700, %v1691
        %v2349 = vpack.c.b16 %v1701, %v1692
        %v2350 = vpack.c.b16 %v1702, %v1693
        %v2351 = vpack.c.b16 %v1703, %v1694
        %v2352 = vpack.c.b16 %v1704, %v1695
        %v2353 = vpack.c.b16 %v1705, %v1696
        %v2354 = vpack.c.b16 %v1715, %v1706
        %v2355 = vpack.c.b16 %v1716, %v1707
        %v2356 = vpack.c.b16 %v1717, %v1708
        %v2357 = vpack.c.b16 %v1718, %v1709
        %v2358 = vpack.c.b16 %v1719, %v1710
        %v2359 = vpack.c.b16 %v1720, %v1711
        %v2360 = vpack.c.b16 %v1721, %v1712
        %v2361 = vpack.c.b16 %v1722, %v1713
        %v2362 = vpack.c.b16 %v1723, %v1714
        %v2363 = vpack.c.b16 %v1733, %v1724
        %v2364 = vpack.c.b16 %v1734, %v1725
        %v2365 = vpack.c.b16 %v1735, %v1726
        %v2366 = vpack.c.b16 %v1736, %v1727
        %v2367 = vpack.c.b16 %v1737, %v1728
        %v2368 = vpack.c.b16 %v1738, %v1729
        %v2369 = vpack.c.b16 %v1739, %v1730
        %v2370 = vpack.c.b16 %v1740, %v1731
        %v2371 = vpack.c.b16 %v1741, %v1732
        %v2372 = vpack.c.b16 %v1751, %v1742
        %v2373 = vpack.c.b16 %v1752, %v1743
        %v2374 = vpack.c.b16 %v1753, %v1744
        %v2375 = vpack.c.b16 %v1754, %v1745
        %v2376 = vpack.c.b16 %v1755, %v1746
        %v2377 = vpack.c.b16 %v1756, %v1747
        %v2378 = vpack.c.b16 %v1757, %v1748
        %v2379 = vpack.c.b16 %v1758, %v1749
        %v2380 = vpack.c.b16 %v1759, %v1750
        %v2381 = vpack.c.b16 %v1769, %v1760
        %v2382 = vpack.c.b16 %v1770, %v1761
        %v2383 = vpack.c.b16 %v1771, %v1762
        %v2384 = vpack.c.b16 %v1772, %v1763
        %v2385 = vpack.c.b16 %v1773, %v1764
        %v2386 = vpack.c.b16 %v1774, %v1765
        %v2387 = vpack.c.b16 %v1775, %v1766
        %v2388 = vpack.c.b16 %v1776, %v1767
        %v2389 = vpack.c.b16 %v1777, %v1768
        %v2390 = vpack.c.b16 %v1787, %v1778
        %v2391 = vpack.c.b16 %v1788, %v1779
        %v2392 = vpack.c.b16 %v1789, %v1780
        %v2393 = vpack.c.b16 %v1790, %v1781
        %v2394 = vpack.c.b16 %v1791, %v1782
        %v2395 = vpack.c.b16 %v1792, %v1783
        %v2396 = vpack.c.b16 %v1793, %v1784
        %v2397 = vpack.c.b16 %v1794, %v1785
        %v2398 = vpack.c.b16 %v1795, %v1786
        %v2399 = vpack.c.b16 %v1805, %v1796
        %v2400 = vpack.c.b16 %v1806, %v1797
        %v2401 = vpack.c.b16 %v1807, %v1798
        %v2402 = vpack.c.b16 %v1808, %v1799
        %v2403 = vpack.c.b16 %v1809, %v1800
        %v2404 = vpack.c.b16 %v1810, %v1801
        %v2405 = vpack.c.b16 %v1811, %v1802
        %v2406 = vpack.c.b16 %v1812, %v1803
        %v2407 = vpack.c.b16 %v1813, %v1804
        %v2408 = vpack.c.b16 %v1823, %v1814
        %v2409 = vpack.c.b16 %v1824, %v1815
        %v2410 = vpack.c.b16 %v1825, %v1816
        %v2411 = vpack.c.b16 %v1826, %v1817
        %v2412 = vpack.c.b16 %v1827, %v1818
        %v2413 = vpack.c.b16 %v1828, %v1819
        %v2414 = vpack.c.b16 %v1829, %v1820
        %v2415 = vpack.c.b16 %v1830, %v1821
        %v2416 = vpack.c.b16 %v1831, %v1822
        %v2417 = vpack.c.b16 %v1841, %v1832
        %v2418 = vpack.c.b16 %v1842, %v1833
        %v2419 = vpack.c.b16 %v1843, %v1834
        %v2420 = vpack.c.b16 %v1844, %v1835
        %v2421 = vpack.c.b16 %v1845, %v1836
        %v2422 = vpack.c.b16 %v1846, %v1837
        %v2423 = vpack.c.b16 %v1847, %v1838
        %v2424 = vpack.c.b16 %v1848, %v1839
        %v2425 = vpack.c.b16 %v1849, %v1840
        %v2426 = vpack.c.b16 %v1859, %v1850
        %v2427 = vpack.c.b16 %v1860, %v1851
        %v2428 = vpack.c.b16 %v1861, %v1852
        %v2429 = vpack.c.b16 %v1862, %v1853
        %v2430 = vpack.c.b16 %v1863, %v1854
        %v2431 = vpack.c.b16 %v1864, %v1855
        %v2432 = vpack.c.b16 %v1865, %v1856
        %v2433 = vpack.c.b16 %v1866, %v1857
        %v2434 = vpack.c.b16 %v1867, %v1858
        %v2435 = vpack.c.b16 %v1877, %v1868
        %v2436 = vpack.c.b16 %v1878, %v1869
        %v2437 = vpack.c.b16 %v1879, %v1870
        %v2438 = vpack.c.b16 %v1880, %v1871
        %v2439 = vpack.c.b16 %v1881, %v1872
        %v2440 = vpack.c.b16 %v1882, %v1873
        %v2441 = vpack.c.b16 %v1883, %v1874
        %v2442 = vpack.c.b16 %v1884, %v1875
        %v2443 = vpack.c.b16 %v1885, %v1876
        %v2444 = vpack.c.b16 %v1895, %v1886
        %v2445 = vpack.c.b16 %v1896, %v1887
        %v2446 = vpack.c.b16 %v1897, %v1888
        %v2447 = vpack.c.b16 %v1898, %v1889
        %v2448 = vpack.c.b16 %v1899, %v1890
        %v2449 = vpack.c.b16 %v1900, %v1891
        %v2450 = vpack.c.b16 %v1901, %v1892
        %v2451 = vpack.c.b16 %v1902, %v1893
        %v2452 = vpack.c.b16 %v1903, %v1894
        %v2453 = vpack.c.b16 %v1913, %v1904
        %v2454 = vpack.c.b16 %v1914, %v1905
        %v2455 = vpack.c.b16 %v1915, %v1906
        %v2456 = vpack.c.b16 %v1916, %v1907
        %v2457 = vpack.c.b16 %v1917, %v1908
        %v2458 = vpack.c.b16 %v1918, %v1909
        %v2459 = vpack.c.b16 %v1919, %v1910
        %v2460 = vpack.c.b16 %v1920, %v1911
        %v2461 = vpack.c.b16 %v1921, %v1912
        %v2462 = vpack.c.b16 %v1931, %v1922
        %v2463 = vpack.c.b16 %v1932, %v1923
        %v2464 = vpack.c.b16 %v1933, %v1924
        %v2465 = vpack.c.b16 %v1934, %v1925
        %v2466 = vpack.c.b16 %v1935, %v1926
        %v2467 = vpack.c.b16 %v1936, %v1927
        %v2468 = vpack.c.b16 %v1937, %v1928
        %v2469 = vpack.c.b16 %v1938, %v1929
        %v2470 = vpack.c.b16 %v1939, %v1930
        %v2471 = vpack.c.b16 %v1949, %v1940
        %v2472 = vpack.c.b16 %v1950, %v1941
        %v2473 = vpack.c.b16 %v1951, %v1942
        %v2474 = vpack.c.b16 %v1952, %v1943
        %v2475 = vpack.c.b16 %v1953, %v1944
        %v2476 = vpack.c.b16 %v1954, %v1945
        %v2477 = vpack.c.b16 %v1955, %v1946
        %v2478 = vpack.c.b16 %v1956, %v1947
        %v2479 = vpack.c.b16 %v1957, %v1948
        %v2480 = vpack.c.b16 %v1967, %v1958
        %v2481 = vpack.c.b16 %v1968, %v1959
        %v2482 = vpack.c.b16 %v1969, %v1960
        %v2483 = vpack.c.b16 %v1970, %v1961
        %v2484 = vpack.c.b16 %v1971, %v1962
        %v2485 = vpack.c.b16 %v1972, %v1963
        %v2486 = vpack.c.b16 %v1973, %v1964
        %v2487 = vpack.c.b16 %v1974, %v1965
        %v2488 = vpack.c.b16 %v1975, %v1966
        %v2489 = vpack.c.b16 %v1985, %v1976
        %v2490 = vpack.c.b16 %v1986, %v1977
        %v2491 = vpack.c.b16 %v1987, %v1978
        %v2492 = vpack.c.b16 %v1988, %v1979
        %v2493 = vpack.c.b16 %v1989, %v1980
        %v2494 = vpack.c.b16 %v1990, %v1981
        %v2495 = vpack.c.b16 %v1991, %v1982
        %v2496 = vpack.c.b16 %v1992, %v1983
        %v2497 = vpack.c.b16 %v1993, %v1984
        %v2498 = vpack.c.b16 %v2003, %v1994
        %v2499 = vpack.c.b16 %v2004, %v1995
        %v2500 = vpack.c.b16 %v2005, %v1996
        %v2501 = vpack.c.b16 %v2006, %v1997
        %v2502 = vpack.c.b16 %v2007, %v1998
        %v2503 = vpack.c.b16 %v2008, %v1999
        %v2504 = vpack.c.b16 %v2009, %v2000
        %v2505 = vpack.c.b16 %v2010, %v2001
        %v2506 = vpack.c.b16 %v2011, %v2002
        %v2507 = vpack.c.b16 %v2021, %v2012
        %v2508 = vpack.c.b16 %v2022, %v2013
        %v2509 = vpack.c.b16 %v2023, %v2014
        %v2510 = vpack.c.b16 %v2024, %v2015
        %v2511 = vpack.c.b16 %v2025, %v2016
        %v2512 = vpack.c.b16 %v2026, %v2017
        %v2513 = vpack.c.b16 %v2027, %v2018
        %v2514 = vpack.c.b16 %v2028, %v2019
        %v2515 = vpack.c.b16 %v2029, %v2020
        %v2516 = vpack.c.b16 %v2039, %v2030
        %v2517 = vpack.c.b16 %v2040, %v2031
        %v2518 = vpack.c.b16 %v2041, %v2032
        %v2519 = vpack.c.b16 %v2042, %v2033
        %v2520 = vpack.c.b16 %v2043, %v2034
        %v2521 = vpack.c.b16 %v2044, %v2035
        %v2522 = vpack.c.b16 %v2045, %v2036
        %v2523 = vpack.c.b16 %v2046, %v2037
        %v2524 = vpack.c.b16 %v2047, %v2038
        %v2525 = vpack.c.b16 %v2057, %v2048
        %v2526 = vpack.c.b16 %v2058, %v2049
        %v2527 = vpack.c.b16 %v2059, %v2050
        %v2528 = vpack.c.b16 %v2060, %v2051
        %v2529 = vpack.c.b16 %v2061, %v2052
        %v2530 = vpack.c.b16 %v2062, %v2053
        %v2531 = vpack.c.b16 %v2063, %v2054
        %v2532 = vpack.c.b16 %v2064, %v2055
        %v2533 = vpack.c.b16 %v2065, %v2056
        %v2534 = vpack.c.b16 %v2075, %v2066
        %v2535 = vpack.c.b16 %v2076, %v2067
        %v2536 = vpack.c.b16 %v2077, %v2068
        %v2537 = vpack.c.b16 %v2078, %v2069
        %v2538 = vpack.c.b16 %v2079, %v2070
        %v2539 = vpack.c.b16 %v2080, %v2071
        %v2540 = vpack.c.b16 %v2081, %v2072
        %v2541 = vpack.c.b16 %v2082, %v2073
        %v2542 = vpack.c.b16 %v2083, %v2074
        %v2543 = vpack.c.b16 %v2093, %v2084
        %v2544 = vpack.c.b16 %v2094, %v2085
        %v2545 = vpack.c.b16 %v2095, %v2086
        %v2546 = vpack.c.b16 %v2096, %v2087
        %v2547 = vpack.c.b16 %v2097, %v2088
        %v2548 = vpack.c.b16 %v2098, %v2089
        %v2549 = vpack.c.b16 %v2099, %v2090
        %v2550 = vpack.c.b16 %v2100, %v2091
        %v2551 = vpack.c.b16 %v2101, %v2092
        %v2552 = vpack.c.b16 %v2111, %v2102
        %v2553 = vpack.c.b16 %v2112, %v2103
        %v2554 = vpack.c.b16 %v2113, %v2104
        %v2555 = vpack.c.b16 %v2114, %v2105
        %v2556 = vpack.c.b16 %v2115, %v2106
        %v2557 = vpack.c.b16 %v2116, %v2107
        %v2558 = vpack.c.b16 %v2117, %v2108
        %v2559 = vpack.c.b16 %v2118, %v2109
        %v2560 = vpack.c.b16 %v2119, %v2110
        %v2561 = vpack.c.b16 %v2129, %v2120
        %v2562 = vpack.c.b16 %v2130, %v2121
        %v2563 = vpack.c.b16 %v2131, %v2122
        %v2564 = vpack.c.b16 %v2132, %v2123
        %v2565 = vpack.c.b16 %v2133, %v2124
        %v2566 = vpack.c.b16 %v2134, %v2125
        %v2567 = vpack.c.b16 %v2135, %v2126
        %v2568 = vpack.c.b16 %v2136, %v2127
        %v2569 = vpack.c.b16 %v2137, %v2128
        %3002 = vmatprep.subr.bf16.mxu0 %v2202
        %3003 = vmatpush1.bf16.msra.mxu0 %v2201
        %3004 = vmatprep.subr.bf16.mxu0 %v2193
        %3005 = vmatpush1.bf16.msra.mxu0 %v2192
        %3006 = vmatprep.subr.bf16.mxu0 %v2184
        %3007 = vmatpush1.bf16.msra.mxu0 %v2183
        %3008 = vmatprep.subr.bf16.mxu0 %v2175
        %3009 = vmatpush1.bf16.msra.mxu0 %v2174
        %3010 = vmatprep.subr.bf16.mxu0 %v2166
        %3011 = vmatpush1.bf16.msra.mxu0 %v2165
        %3012 = vmatprep.subr.bf16.mxu0 %v2157
        %3013 = vmatpush1.bf16.msra.mxu0 %v2156
        %3014 = vmatprep.subr.bf16.mxu0 %v2148
        %3015 = vmatpush1.bf16.msra.mxu0 %v2147
        %3016 = vmatprep.subr.bf16.mxu0 %v2139
        %3017 = vmatpush1.bf16.msra.mxu0 %v2138
        %3018 = vmatprep.subr.bf16.mxu0 %v2274
        %3019 = vmatpush2.bf16.msra.mxu0 %v2273
        %3020 = vmatprep.subr.bf16.mxu0 %v2265
        %3021 = vmatpush2.bf16.msra.mxu0 %v2264
        %3022 = vmatprep.subr.bf16.mxu0 %v2256
        %3023 = vmatpush2.bf16.msra.mxu0 %v2255
        %3024 = vmatprep.subr.bf16.mxu0 %v2247
        %3025 = vmatpush2.bf16.msra.mxu0 %v2246
        %3026 = vmatprep.subr.bf16.mxu0 %v2238
        %3027 = vmatpush2.bf16.msra.mxu0 %v2237
        %3028 = vmatprep.subr.bf16.mxu0 %v2229
        %3029 = vmatpush2.bf16.msra.mxu0 %v2228
        %3030 = vmatprep.subr.bf16.mxu0 %v2220
        %3031 = vmatpush2.bf16.msra.mxu0 %v2219
        %3032 = vmatprep.subr.bf16.mxu0 %v2211
        %3033 = vmatpush2.bf16.msra.mxu0 %v2210
        %3034 = vmatprep.mubr.bf16.mxu0 %v783
        %3035 = vmatmul.mubr.bf16.gmra.mxu0 %v782
        %v3036 = vpop.f32.mrf.mxu0
        %v3037 = vadd.f32 %v722, %v3036
        %v3038 = vpop.f32.mrf.mxu0
        %v3039 = vadd.f32 %v726, %v3038
        %v3040 = vpop.f32.mrf.mxu0
        %v3041 = vadd.f32 %v722, %v3040
        %v3042 = vpop.f32.mrf.mxu0
        %v3043 = vadd.f32 %v726, %v3042
        %3044 = vdwg.mxu0
        %3045 = vmatprep.subr.bf16.mxu0 %v2346
        %3046 = vmatpush1.bf16.msra.mxu0 %v2345
        %3047 = vmatprep.subr.bf16.mxu0 %v2337
        %3048 = vmatpush1.bf16.msra.mxu0 %v2336
        %3049 = vmatprep.subr.bf16.mxu0 %v2328
        %3050 = vmatpush1.bf16.msra.mxu0 %v2327
        %3051 = vmatprep.subr.bf16.mxu0 %v2319
        %3052 = vmatpush1.bf16.msra.mxu0 %v2318
        %3053 = vmatprep.subr.bf16.mxu0 %v2310
        %3054 = vmatpush1.bf16.msra.mxu0 %v2309
        %3055 = vmatprep.subr.bf16.mxu0 %v2301
        %3056 = vmatpush1.bf16.msra.mxu0 %v2300
        %3057 = vmatprep.subr.bf16.mxu0 %v2292
        %3058 = vmatpush1.bf16.msra.mxu0 %v2291
        %3059 = vmatprep.subr.bf16.mxu0 %v2283
        %3060 = vmatpush1.bf16.msra.mxu0 %v2282
        %3061 = vmatprep.subr.bf16.mxu0 %v2418
        %3062 = vmatpush2.bf16.msra.mxu0 %v2417
        %3063 = vmatprep.subr.bf16.mxu0 %v2409
        %3064 = vmatpush2.bf16.msra.mxu0 %v2408
        %3065 = vmatprep.subr.bf16.mxu0 %v2400
        %3066 = vmatpush2.bf16.msra.mxu0 %v2399
        %3067 = vmatprep.subr.bf16.mxu0 %v2391
        %3068 = vmatpush2.bf16.msra.mxu0 %v2390
        %3069 = vmatprep.subr.bf16.mxu0 %v2382
        %3070 = vmatpush2.bf16.msra.mxu0 %v2381
        %3071 = vmatprep.subr.bf16.mxu0 %v2373
        %3072 = vmatpush2.bf16.msra.mxu0 %v2372
        %3073 = vmatprep.subr.bf16.mxu0 %v2364
        %3074 = vmatpush2.bf16.msra.mxu0 %v2363
        %3075 = vmatprep.subr.bf16.mxu0 %v2355
        %3076 = vmatpush2.bf16.msra.mxu0 %v2354
        %3077 = vmatprep.mubr.bf16.mxu0 %v785
        %3078 = vmatmul.mubr.bf16.gmra.mxu0 %v784
        %v3079 = vpop.f32.mrf.mxu0
        %v3080 = vadd.f32 %v3037, %v3079
        %v3081 = vpop.f32.mrf.mxu0
        %v3082 = vadd.f32 %v3039, %v3081
        %v3083 = vpop.f32.mrf.mxu0
        %v3084 = vadd.f32 %v3041, %v3083
        %v3085 = vpop.f32.mrf.mxu0
        %v3086 = vadd.f32 %v3043, %v3085
        %3087 = vdwg.mxu0
        %3088 = vmatprep.subr.bf16.mxu0 %v2490
        %3089 = vmatpush1.bf16.msra.mxu0 %v2489
        %3090 = vmatprep.subr.bf16.mxu0 %v2481
        %3091 = vmatpush1.bf16.msra.mxu0 %v2480
        %3092 = vmatprep.subr.bf16.mxu0 %v2472
        %3093 = vmatpush1.bf16.msra.mxu0 %v2471
        %3094 = vmatprep.subr.bf16.mxu0 %v2463
        %3095 = vmatpush1.bf16.msra.mxu0 %v2462
        %3096 = vmatprep.subr.bf16.mxu0 %v2454
        %3097 = vmatpush1.bf16.msra.mxu0 %v2453
        %3098 = vmatprep.subr.bf16.mxu0 %v2445
        %3099 = vmatpush1.bf16.msra.mxu0 %v2444
        %3100 = vmatprep.subr.bf16.mxu0 %v2436
        %3101 = vmatpush1.bf16.msra.mxu0 %v2435
        %3102 = vmatprep.subr.bf16.mxu0 %v2427
        %3103 = vmatpush1.bf16.msra.mxu0 %v2426
        %3104 = vmatprep.subr.bf16.mxu0 %v2562
        %3105 = vmatpush2.bf16.msra.mxu0 %v2561
        %3106 = vmatprep.subr.bf16.mxu0 %v2553
        %3107 = vmatpush2.bf16.msra.mxu0 %v2552
        %3108 = vmatprep.subr.bf16.mxu0 %v2544
        %3109 = vmatpush2.bf16.msra.mxu0 %v2543
        %3110 = vmatprep.subr.bf16.mxu0 %v2535
        %3111 = vmatpush2.bf16.msra.mxu0 %v2534
        %3112 = vmatprep.subr.bf16.mxu0 %v2526
        %3113 = vmatpush2.bf16.msra.mxu0 %v2525
        %3114 = vmatprep.subr.bf16.mxu0 %v2517
        %3115 = vmatpush2.bf16.msra.mxu0 %v2516
        %3116 = vmatprep.subr.bf16.mxu0 %v2508
        %3117 = vmatpush2.bf16.msra.mxu0 %v2507
        %3118 = vmatprep.subr.bf16.mxu0 %v2499
        %3119 = vmatpush2.bf16.msra.mxu0 %v2498
        %3120 = vmatprep.mubr.bf16.mxu0 %v787
        %3121 = vmatmul.mubr.bf16.gmra.mxu0 %v786
        %v3122 = vpop.f32.mrf.mxu0
        %v3123 = vadd.f32 %v3080, %v3122
        %v3124 = vpop.f32.mrf.mxu0
        %v3125 = vadd.f32 %v3082, %v3124
        %v3126 = vpop.f32.mrf.mxu0
        %v3127 = vadd.f32 %v3084, %v3126
        %v3128 = vpop.f32.mrf.mxu0
        %v3129 = vadd.f32 %v3086, %v3128
        %3130 = vdwg.mxu0
        %3131 = vmatprep.subr.bf16.mxu0 %v2204
        %3132 = vmatpush1.bf16.msra.mxu0 %v2203
        %3133 = vmatprep.subr.bf16.mxu0 %v2195
        %3134 = vmatpush1.bf16.msra.mxu0 %v2194
        %3135 = vmatprep.subr.bf16.mxu0 %v2186
        %3136 = vmatpush1.bf16.msra.mxu0 %v2185
        %3137 = vmatprep.subr.bf16.mxu0 %v2177
        %3138 = vmatpush1.bf16.msra.mxu0 %v2176
        %3139 = vmatprep.subr.bf16.mxu0 %v2168
        %3140 = vmatpush1.bf16.msra.mxu0 %v2167
        %3141 = vmatprep.subr.bf16.mxu0 %v2159
        %3142 = vmatpush1.bf16.msra.mxu0 %v2158
        %3143 = vmatprep.subr.bf16.mxu0 %v2150
        %3144 = vmatpush1.bf16.msra.mxu0 %v2149
        %3145 = vmatprep.subr.bf16.mxu0 %v2141
        %3146 = vmatpush1.bf16.msra.mxu0 %v2140
        %3147 = vmatprep.subr.bf16.mxu0 %v2276
        %3148 = vmatpush2.bf16.msra.mxu0 %v2275
        %3149 = vmatprep.subr.bf16.mxu0 %v2267
        %3150 = vmatpush2.bf16.msra.mxu0 %v2266
        %3151 = vmatprep.subr.bf16.mxu0 %v2258
        %3152 = vmatpush2.bf16.msra.mxu0 %v2257
        %3153 = vmatprep.subr.bf16.mxu0 %v2249
        %3154 = vmatpush2.bf16.msra.mxu0 %v2248
        %3155 = vmatprep.subr.bf16.mxu0 %v2240
        %3156 = vmatpush2.bf16.msra.mxu0 %v2239
        %3157 = vmatprep.subr.bf16.mxu0 %v2231
        %3158 = vmatpush2.bf16.msra.mxu0 %v2230
        %3159 = vmatprep.subr.bf16.mxu0 %v2222
        %3160 = vmatpush2.bf16.msra.mxu0 %v2221
        %3161 = vmatprep.subr.bf16.mxu0 %v2213
        %3162 = vmatpush2.bf16.msra.mxu0 %v2212
        %3163 = vmatprep.mubr.bf16.mxu0 %v783
        %3164 = vmatmul.mubr.bf16.gmra.mxu0 %v782
        %v3165 = vpop.f32.mrf.mxu0
        %v3166 = vadd.f32 %v730, %v3165
        %v3167 = vpop.f32.mrf.mxu0
        %v3168 = vadd.f32 %v734, %v3167
        %v3169 = vpop.f32.mrf.mxu0
        %v3170 = vadd.f32 %v730, %v3169
        %v3171 = vpop.f32.mrf.mxu0
        %v3172 = vadd.f32 %v734, %v3171
        %3173 = vdwg.mxu0
        %3174 = vmatprep.subr.bf16.mxu0 %v2348
        %3175 = vmatpush1.bf16.msra.mxu0 %v2347
        %3176 = vmatprep.subr.bf16.mxu0 %v2339
        %3177 = vmatpush1.bf16.msra.mxu0 %v2338
        %3178 = vmatprep.subr.bf16.mxu0 %v2330
        %3179 = vmatpush1.bf16.msra.mxu0 %v2329
        %3180 = vmatprep.subr.bf16.mxu0 %v2321
        %3181 = vmatpush1.bf16.msra.mxu0 %v2320
        %3182 = vmatprep.subr.bf16.mxu0 %v2312
        %3183 = vmatpush1.bf16.msra.mxu0 %v2311
        %3184 = vmatprep.subr.bf16.mxu0 %v2303
        %3185 = vmatpush1.bf16.msra.mxu0 %v2302
        %3186 = vmatprep.subr.bf16.mxu0 %v2294
        %3187 = vmatpush1.bf16.msra.mxu0 %v2293
        %3188 = vmatprep.subr.bf16.mxu0 %v2285
        %3189 = vmatpush1.bf16.msra.mxu0 %v2284
        %3190 = vmatprep.subr.bf16.mxu0 %v2420
        %3191 = vmatpush2.bf16.msra.mxu0 %v2419
        %3192 = vmatprep.subr.bf16.mxu0 %v2411
        %3193 = vmatpush2.bf16.msra.mxu0 %v2410
        %3194 = vmatprep.subr.bf16.mxu0 %v2402
        %3195 = vmatpush2.bf16.msra.mxu0 %v2401
        %3196 = vmatprep.subr.bf16.mxu0 %v2393
        %3197 = vmatpush2.bf16.msra.mxu0 %v2392
        %3198 = vmatprep.subr.bf16.mxu0 %v2384
        %3199 = vmatpush2.bf16.msra.mxu0 %v2383
        %3200 = vmatprep.subr.bf16.mxu0 %v2375
        %3201 = vmatpush2.bf16.msra.mxu0 %v2374
        %3202 = vmatprep.subr.bf16.mxu0 %v2366
        %3203 = vmatpush2.bf16.msra.mxu0 %v2365
        %3204 = vmatprep.subr.bf16.mxu0 %v2357
        %3205 = vmatpush2.bf16.msra.mxu0 %v2356
        %3206 = vmatprep.mubr.bf16.mxu0 %v785
        %3207 = vmatmul.mubr.bf16.gmra.mxu0 %v784
        %v3208 = vpop.f32.mrf.mxu0
        %v3209 = vadd.f32 %v3166, %v3208
        %v3210 = vpop.f32.mrf.mxu0
        %v3211 = vadd.f32 %v3168, %v3210
        %v3212 = vpop.f32.mrf.mxu0
        %v3213 = vadd.f32 %v3170, %v3212
        %v3214 = vpop.f32.mrf.mxu0
        %v3215 = vadd.f32 %v3172, %v3214
        %3216 = vdwg.mxu0
        %3217 = vmatprep.subr.bf16.mxu0 %v2492
        %3218 = vmatpush1.bf16.msra.mxu0 %v2491
        %3219 = vmatprep.subr.bf16.mxu0 %v2483
        %3220 = vmatpush1.bf16.msra.mxu0 %v2482
        %3221 = vmatprep.subr.bf16.mxu0 %v2474
        %3222 = vmatpush1.bf16.msra.mxu0 %v2473
        %3223 = vmatprep.subr.bf16.mxu0 %v2465
        %3224 = vmatpush1.bf16.msra.mxu0 %v2464
        %3225 = vmatprep.subr.bf16.mxu0 %v2456
        %3226 = vmatpush1.bf16.msra.mxu0 %v2455
        %3227 = vmatprep.subr.bf16.mxu0 %v2447
        %3228 = vmatpush1.bf16.msra.mxu0 %v2446
        %3229 = vmatprep.subr.bf16.mxu0 %v2438
        %3230 = vmatpush1.bf16.msra.mxu0 %v2437
        %3231 = vmatprep.subr.bf16.mxu0 %v2429
        %3232 = vmatpush1.bf16.msra.mxu0 %v2428
        %3233 = vmatprep.subr.bf16.mxu0 %v2564
        %3234 = vmatpush2.bf16.msra.mxu0 %v2563
        %3235 = vmatprep.subr.bf16.mxu0 %v2555
        %3236 = vmatpush2.bf16.msra.mxu0 %v2554
        %3237 = vmatprep.subr.bf16.mxu0 %v2546
        %3238 = vmatpush2.bf16.msra.mxu0 %v2545
        %3239 = vmatprep.subr.bf16.mxu0 %v2537
        %3240 = vmatpush2.bf16.msra.mxu0 %v2536
        %3241 = vmatprep.subr.bf16.mxu0 %v2528
        %3242 = vmatpush2.bf16.msra.mxu0 %v2527
        %3243 = vmatprep.subr.bf16.mxu0 %v2519
        %3244 = vmatpush2.bf16.msra.mxu0 %v2518
        %3245 = vmatprep.subr.bf16.mxu0 %v2510
        %3246 = vmatpush2.bf16.msra.mxu0 %v2509
        %3247 = vmatprep.subr.bf16.mxu0 %v2501
        %3248 = vmatpush2.bf16.msra.mxu0 %v2500
        %3249 = vmatprep.mubr.bf16.mxu0 %v787
        %3250 = vmatmul.mubr.bf16.gmra.mxu0 %v786
        %v3251 = vpop.f32.mrf.mxu0
        %v3252 = vadd.f32 %v3209, %v3251
        %v3253 = vpop.f32.mrf.mxu0
        %v3254 = vadd.f32 %v3211, %v3253
        %v3255 = vpop.f32.mrf.mxu0
        %v3256 = vadd.f32 %v3213, %v3255
        %v3257 = vpop.f32.mrf.mxu0
        %v3258 = vadd.f32 %v3215, %v3257
        %3259 = vdwg.mxu0
        %3260 = vmatprep.subr.bf16.mxu0 %v2206
        %3261 = vmatpush1.bf16.msra.mxu0 %v2205
        %3262 = vmatprep.subr.bf16.mxu0 %v2197
        %3263 = vmatpush1.bf16.msra.mxu0 %v2196
        %3264 = vmatprep.subr.bf16.mxu0 %v2188
        %3265 = vmatpush1.bf16.msra.mxu0 %v2187
        %3266 = vmatprep.subr.bf16.mxu0 %v2179
        %3267 = vmatpush1.bf16.msra.mxu0 %v2178
        %3268 = vmatprep.subr.bf16.mxu0 %v2170
        %3269 = vmatpush1.bf16.msra.mxu0 %v2169
        %3270 = vmatprep.subr.bf16.mxu0 %v2161
        %3271 = vmatpush1.bf16.msra.mxu0 %v2160
        %3272 = vmatprep.subr.bf16.mxu0 %v2152
        %3273 = vmatpush1.bf16.msra.mxu0 %v2151
        %3274 = vmatprep.subr.bf16.mxu0 %v2143
        %3275 = vmatpush1.bf16.msra.mxu0 %v2142
        %3276 = vmatprep.subr.bf16.mxu0 %v2278
        %3277 = vmatpush2.bf16.msra.mxu0 %v2277
        %3278 = vmatprep.subr.bf16.mxu0 %v2269
        %3279 = vmatpush2.bf16.msra.mxu0 %v2268
        %3280 = vmatprep.subr.bf16.mxu0 %v2260
        %3281 = vmatpush2.bf16.msra.mxu0 %v2259
        %3282 = vmatprep.subr.bf16.mxu0 %v2251
        %3283 = vmatpush2.bf16.msra.mxu0 %v2250
        %3284 = vmatprep.subr.bf16.mxu0 %v2242
        %3285 = vmatpush2.bf16.msra.mxu0 %v2241
        %3286 = vmatprep.subr.bf16.mxu0 %v2233
        %3287 = vmatpush2.bf16.msra.mxu0 %v2232
        %3288 = vmatprep.subr.bf16.mxu0 %v2224
        %3289 = vmatpush2.bf16.msra.mxu0 %v2223
        %3290 = vmatprep.subr.bf16.mxu0 %v2215
        %3291 = vmatpush2.bf16.msra.mxu0 %v2214
        %3292 = vmatprep.mubr.bf16.mxu0 %v783
        %3293 = vmatmul.mubr.bf16.gmra.mxu0 %v782
        %v3294 = vpop.f32.mrf.mxu0
        %v3295 = vadd.f32 %v738, %v3294
        %v3296 = vpop.f32.mrf.mxu0
        %v3297 = vadd.f32 %v742, %v3296
        %v3298 = vpop.f32.mrf.mxu0
        %v3299 = vadd.f32 %v738, %v3298
        %v3300 = vpop.f32.mrf.mxu0
        %v3301 = vadd.f32 %v742, %v3300
        %3302 = vdwg.mxu0
        %3303 = vmatprep.subr.bf16.mxu0 %v2350
        %3304 = vmatpush1.bf16.msra.mxu0 %v2349
        %3305 = vmatprep.subr.bf16.mxu0 %v2341
        %3306 = vmatpush1.bf16.msra.mxu0 %v2340
        %3307 = vmatprep.subr.bf16.mxu0 %v2332
        %3308 = vmatpush1.bf16.msra.mxu0 %v2331
        %3309 = vmatprep.subr.bf16.mxu0 %v2323
        %3310 = vmatpush1.bf16.msra.mxu0 %v2322
        %3311 = vmatprep.subr.bf16.mxu0 %v2314
        %3312 = vmatpush1.bf16.msra.mxu0 %v2313
        %3313 = vmatprep.subr.bf16.mxu0 %v2305
        %3314 = vmatpush1.bf16.msra.mxu0 %v2304
        %3315 = vmatprep.subr.bf16.mxu0 %v2296
        %3316 = vmatpush1.bf16.msra.mxu0 %v2295
        %3317 = vmatprep.subr.bf16.mxu0 %v2287
        %3318 = vmatpush1.bf16.msra.mxu0 %v2286
        %3319 = vmatprep.subr.bf16.mxu0 %v2422
        %3320 = vmatpush2.bf16.msra.mxu0 %v2421
        %3321 = vmatprep.subr.bf16.mxu0 %v2413
        %3322 = vmatpush2.bf16.msra.mxu0 %v2412
        %3323 = vmatprep.subr.bf16.mxu0 %v2404
        %3324 = vmatpush2.bf16.msra.mxu0 %v2403
        %3325 = vmatprep.subr.bf16.mxu0 %v2395
        %3326 = vmatpush2.bf16.msra.mxu0 %v2394
        %3327 = vmatprep.subr.bf16.mxu0 %v2386
        %3328 = vmatpush2.bf16.msra.mxu0 %v2385
        %3329 = vmatprep.subr.bf16.mxu0 %v2377
        %3330 = vmatpush2.bf16.msra.mxu0 %v2376
        %3331 = vmatprep.subr.bf16.mxu0 %v2368
        %3332 = vmatpush2.bf16.msra.mxu0 %v2367
        %3333 = vmatprep.subr.bf16.mxu0 %v2359
        %3334 = vmatpush2.bf16.msra.mxu0 %v2358
        %3335 = vmatprep.mubr.bf16.mxu0 %v785
        %3336 = vmatmul.mubr.bf16.gmra.mxu0 %v784
        %v3337 = vpop.f32.mrf.mxu0
        %v3338 = vadd.f32 %v3295, %v3337
        %v3339 = vpop.f32.mrf.mxu0
        %v3340 = vadd.f32 %v3297, %v3339
        %v3341 = vpop.f32.mrf.mxu0
        %v3342 = vadd.f32 %v3299, %v3341
        %v3343 = vpop.f32.mrf.mxu0
        %v3344 = vadd.f32 %v3301, %v3343
        %3345 = vdwg.mxu0
        %3346 = vmatprep.subr.bf16.mxu0 %v2494
        %3347 = vmatpush1.bf16.msra.mxu0 %v2493
        %3348 = vmatprep.subr.bf16.mxu0 %v2485
        %3349 = vmatpush1.bf16.msra.mxu0 %v2484
        %3350 = vmatprep.subr.bf16.mxu0 %v2476
        %3351 = vmatpush1.bf16.msra.mxu0 %v2475
        %3352 = vmatprep.subr.bf16.mxu0 %v2467
        %3353 = vmatpush1.bf16.msra.mxu0 %v2466
        %3354 = vmatprep.subr.bf16.mxu0 %v2458
        %3355 = vmatpush1.bf16.msra.mxu0 %v2457
        %3356 = vmatprep.subr.bf16.mxu0 %v2449
        %3357 = vmatpush1.bf16.msra.mxu0 %v2448
        %3358 = vmatprep.subr.bf16.mxu0 %v2440
        %3359 = vmatpush1.bf16.msra.mxu0 %v2439
        %3360 = vmatprep.subr.bf16.mxu0 %v2431
        %3361 = vmatpush1.bf16.msra.mxu0 %v2430
        %3362 = vmatprep.subr.bf16.mxu0 %v2566
        %3363 = vmatpush2.bf16.msra.mxu0 %v2565
        %3364 = vmatprep.subr.bf16.mxu0 %v2557
        %3365 = vmatpush2.bf16.msra.mxu0 %v2556
        %3366 = vmatprep.subr.bf16.mxu0 %v2548
        %3367 = vmatpush2.bf16.msra.mxu0 %v2547
        %3368 = vmatprep.subr.bf16.mxu0 %v2539
        %3369 = vmatpush2.bf16.msra.mxu0 %v2538
        %3370 = vmatprep.subr.bf16.mxu0 %v2530
        %3371 = vmatpush2.bf16.msra.mxu0 %v2529
        %3372 = vmatprep.subr.bf16.mxu0 %v2521
        %3373 = vmatpush2.bf16.msra.mxu0 %v2520
        %3374 = vmatprep.subr.bf16.mxu0 %v2512
        %3375 = vmatpush2.bf16.msra.mxu0 %v2511
        %3376 = vmatprep.subr.bf16.mxu0 %v2503
        %3377 = vmatpush2.bf16.msra.mxu0 %v2502
        %3378 = vmatprep.mubr.bf16.mxu0 %v787
        %3379 = vmatmul.mubr.bf16.gmra.mxu0 %v786
        %v3380 = vpop.f32.mrf.mxu0
        %v3381 = vadd.f32 %v3338, %v3380
        %v3382 = vpop.f32.mrf.mxu0
        %v3383 = vadd.f32 %v3340, %v3382
        %v3384 = vpop.f32.mrf.mxu0
        %v3385 = vadd.f32 %v3342, %v3384
        %v3386 = vpop.f32.mrf.mxu0
        %v3387 = vadd.f32 %v3344, %v3386
        %3388 = vdwg.mxu0
        %3389 = vmatprep.subr.bf16.mxu0 %v2208
        %3390 = vmatpush1.bf16.msra.mxu0 %v2207
        %3391 = vmatprep.subr.bf16.mxu0 %v2199
        %3392 = vmatpush1.bf16.msra.mxu0 %v2198
        %3393 = vmatprep.subr.bf16.mxu0 %v2190
        %3394 = vmatpush1.bf16.msra.mxu0 %v2189
        %3395 = vmatprep.subr.bf16.mxu0 %v2181
        %3396 = vmatpush1.bf16.msra.mxu0 %v2180
        %3397 = vmatprep.subr.bf16.mxu0 %v2172
        %3398 = vmatpush1.bf16.msra.mxu0 %v2171
        %3399 = vmatprep.subr.bf16.mxu0 %v2163
        %3400 = vmatpush1.bf16.msra.mxu0 %v2162
        %3401 = vmatprep.subr.bf16.mxu0 %v2154
        %3402 = vmatpush1.bf16.msra.mxu0 %v2153
        %3403 = vmatprep.subr.bf16.mxu0 %v2145
        %3404 = vmatpush1.bf16.msra.mxu0 %v2144
        %3405 = vmatprep.subr.bf16.mxu0 %v2280
        %3406 = vmatpush2.bf16.msra.mxu0 %v2279
        %3407 = vmatprep.subr.bf16.mxu0 %v2271
        %3408 = vmatpush2.bf16.msra.mxu0 %v2270
        %3409 = vmatprep.subr.bf16.mxu0 %v2262
        %3410 = vmatpush2.bf16.msra.mxu0 %v2261
        %3411 = vmatprep.subr.bf16.mxu0 %v2253
        %3412 = vmatpush2.bf16.msra.mxu0 %v2252
        %3413 = vmatprep.subr.bf16.mxu0 %v2244
        %3414 = vmatpush2.bf16.msra.mxu0 %v2243
        %3415 = vmatprep.subr.bf16.mxu0 %v2235
        %3416 = vmatpush2.bf16.msra.mxu0 %v2234
        %3417 = vmatprep.subr.bf16.mxu0 %v2226
        %3418 = vmatpush2.bf16.msra.mxu0 %v2225
        %3419 = vmatprep.subr.bf16.mxu0 %v2217
        %3420 = vmatpush2.bf16.msra.mxu0 %v2216
        %3421 = vmatprep.mubr.bf16.mxu0 %v783
        %3422 = vmatmul.mubr.bf16.gmra.mxu0 %v782
        %v3423 = vpop.f32.mrf.mxu0
        %v3424 = vadd.f32 %v746, %v3423
        %v3425 = vpop.f32.mrf.mxu0
        %v3426 = vadd.f32 %v750, %v3425
        %v3427 = vpop.f32.mrf.mxu0
        %v3428 = vadd.f32 %v746, %v3427
        %v3429 = vpop.f32.mrf.mxu0
        %v3430 = vadd.f32 %v750, %v3429
        %3431 = vdwg.mxu0
        %3432 = vmatprep.subr.bf16.mxu0 %v2352
        %3433 = vmatpush1.bf16.msra.mxu0 %v2351
        %3434 = vmatprep.subr.bf16.mxu0 %v2343
        %3435 = vmatpush1.bf16.msra.mxu0 %v2342
        %3436 = vmatprep.subr.bf16.mxu0 %v2334
        %3437 = vmatpush1.bf16.msra.mxu0 %v2333
        %3438 = vmatprep.subr.bf16.mxu0 %v2325
        %3439 = vmatpush1.bf16.msra.mxu0 %v2324
        %3440 = vmatprep.subr.bf16.mxu0 %v2316
        %3441 = vmatpush1.bf16.msra.mxu0 %v2315
        %3442 = vmatprep.subr.bf16.mxu0 %v2307
        %3443 = vmatpush1.bf16.msra.mxu0 %v2306
        %3444 = vmatprep.subr.bf16.mxu0 %v2298
        %3445 = vmatpush1.bf16.msra.mxu0 %v2297
        %3446 = vmatprep.subr.bf16.mxu0 %v2289
        %3447 = vmatpush1.bf16.msra.mxu0 %v2288
        %3448 = vmatprep.subr.bf16.mxu0 %v2424
        %3449 = vmatpush2.bf16.msra.mxu0 %v2423
        %3450 = vmatprep.subr.bf16.mxu0 %v2415
        %3451 = vmatpush2.bf16.msra.mxu0 %v2414
        %3452 = vmatprep.subr.bf16.mxu0 %v2406
        %3453 = vmatpush2.bf16.msra.mxu0 %v2405
        %3454 = vmatprep.subr.bf16.mxu0 %v2397
        %3455 = vmatpush2.bf16.msra.mxu0 %v2396
        %3456 = vmatprep.subr.bf16.mxu0 %v2388
        %3457 = vmatpush2.bf16.msra.mxu0 %v2387
        %3458 = vmatprep.subr.bf16.mxu0 %v2379
        %3459 = vmatpush2.bf16.msra.mxu0 %v2378
        %3460 = vmatprep.subr.bf16.mxu0 %v2370
        %3461 = vmatpush2.bf16.msra.mxu0 %v2369
        %3462 = vmatprep.subr.bf16.mxu0 %v2361
        %3463 = vmatpush2.bf16.msra.mxu0 %v2360
        %3464 = vmatprep.mubr.bf16.mxu0 %v785
        %3465 = vmatmul.mubr.bf16.gmra.mxu0 %v784
        %v3466 = vpop.f32.mrf.mxu0
        %v3467 = vadd.f32 %v3424, %v3466
        %v3468 = vpop.f32.mrf.mxu0
        %v3469 = vadd.f32 %v3426, %v3468
        %v3470 = vpop.f32.mrf.mxu0
        %v3471 = vadd.f32 %v3428, %v3470
        %v3472 = vpop.f32.mrf.mxu0
        %v3473 = vadd.f32 %v3430, %v3472
        %3474 = vdwg.mxu0
        %3475 = vmatprep.subr.bf16.mxu0 %v2496
        %3476 = vmatpush1.bf16.msra.mxu0 %v2495
        %3477 = vmatprep.subr.bf16.mxu0 %v2487
        %3478 = vmatpush1.bf16.msra.mxu0 %v2486
        %3479 = vmatprep.subr.bf16.mxu0 %v2478
        %3480 = vmatpush1.bf16.msra.mxu0 %v2477
        %3481 = vmatprep.subr.bf16.mxu0 %v2469
        %3482 = vmatpush1.bf16.msra.mxu0 %v2468
        %3483 = vmatprep.subr.bf16.mxu0 %v2460
        %3484 = vmatpush1.bf16.msra.mxu0 %v2459
        %3485 = vmatprep.subr.bf16.mxu0 %v2451
        %3486 = vmatpush1.bf16.msra.mxu0 %v2450
        %3487 = vmatprep.subr.bf16.mxu0 %v2442
        %3488 = vmatpush1.bf16.msra.mxu0 %v2441
        %3489 = vmatprep.subr.bf16.mxu0 %v2433
        %3490 = vmatpush1.bf16.msra.mxu0 %v2432
        %3491 = vmatprep.subr.bf16.mxu0 %v2568
        %3492 = vmatpush2.bf16.msra.mxu0 %v2567
        %3493 = vmatprep.subr.bf16.mxu0 %v2559
        %3494 = vmatpush2.bf16.msra.mxu0 %v2558
        %3495 = vmatprep.subr.bf16.mxu0 %v2550
        %3496 = vmatpush2.bf16.msra.mxu0 %v2549
        %3497 = vmatprep.subr.bf16.mxu0 %v2541
        %3498 = vmatpush2.bf16.msra.mxu0 %v2540
        %3499 = vmatprep.subr.bf16.mxu0 %v2532
        %3500 = vmatpush2.bf16.msra.mxu0 %v2531
        %3501 = vmatprep.subr.bf16.mxu0 %v2523
        %3502 = vmatpush2.bf16.msra.mxu0 %v2522
        %3503 = vmatprep.subr.bf16.mxu0 %v2514
        %3504 = vmatpush2.bf16.msra.mxu0 %v2513
        %3505 = vmatprep.subr.bf16.mxu0 %v2505
        %3506 = vmatpush2.bf16.msra.mxu0 %v2504
        %3507 = vmatprep.mubr.bf16.mxu0 %v787
        %3508 = vmatmul.mubr.bf16.gmra.mxu0 %v786
        %v3509 = vpop.f32.mrf.mxu0
        %v3510 = vadd.f32 %v3467, %v3509
        %v3511 = vpop.f32.mrf.mxu0
        %v3512 = vadd.f32 %v3469, %v3511
        %v3513 = vpop.f32.mrf.mxu0
        %v3514 = vadd.f32 %v3471, %v3513
        %v3515 = vpop.f32.mrf.mxu0
        %v3516 = vadd.f32 %v3473, %v3515
        %3517 = vdwg.mxu0
        %3518 = vmatprep.subr.bf16.mxu0 0
        %3519 = vmatpush1.bf16.msra.mxu0 %v2209
        %3520 = vmatprep.subr.bf16.mxu0 0
        %3521 = vmatpush1.bf16.msra.mxu0 %v2200
        %3522 = vmatprep.subr.bf16.mxu0 0
        %3523 = vmatpush1.bf16.msra.mxu0 %v2191
        %3524 = vmatprep.subr.bf16.mxu0 0
        %3525 = vmatpush1.bf16.msra.mxu0 %v2182
        %3526 = vmatprep.subr.bf16.mxu0 0
        %3527 = vmatpush1.bf16.msra.mxu0 %v2173
        %3528 = vmatprep.subr.bf16.mxu0 0
        %3529 = vmatpush1.bf16.msra.mxu0 %v2164
        %3530 = vmatprep.subr.bf16.mxu0 0
        %3531 = vmatpush1.bf16.msra.mxu0 %v2155
        %3532 = vmatprep.subr.bf16.mxu0 0
        %3533 = vmatpush1.bf16.msra.mxu0 %v2146
        %3534 = vmatprep.subr.bf16.mxu0 0
        %3535 = vmatpush2.bf16.msra.mxu0 %v2281
        %3536 = vmatprep.subr.bf16.mxu0 0
        %3537 = vmatpush2.bf16.msra.mxu0 %v2272
        %3538 = vmatprep.subr.bf16.mxu0 0
        %3539 = vmatpush2.bf16.msra.mxu0 %v2263
        %3540 = vmatprep.subr.bf16.mxu0 0
        %3541 = vmatpush2.bf16.msra.mxu0 %v2254
        %3542 = vmatprep.subr.bf16.mxu0 0
        %3543 = vmatpush2.bf16.msra.mxu0 %v2245
        %3544 = vmatprep.subr.bf16.mxu0 0
        %3545 = vmatpush2.bf16.msra.mxu0 %v2236
        %3546 = vmatprep.subr.bf16.mxu0 0
        %3547 = vmatpush2.bf16.msra.mxu0 %v2227
        %3548 = vmatprep.subr.bf16.mxu0 0
        %3549 = vmatpush2.bf16.msra.mxu0 %v2218
        %3550 = vmatprep.mubr.bf16.mxu0 %v783
        %3551 = vmatmul.mubr.bf16.gmra.mxu0 %v782
        %v3552 = vpop.f32.mrf.mxu0
        %v3553 = vadd.f32 %v754, %v3552
        %v3554 = vpop.f32.mrf.mxu0
        %v3555 = vpop.f32.mrf.mxu0
        %v3556 = vadd.f32 %v754, %v3555
        %v3557 = vpop.f32.mrf.mxu0
        %3558 = vdwg.mxu0
        %3559 = vmatprep.subr.bf16.mxu0 0
        %3560 = vmatpush1.bf16.msra.mxu0 %v2353
        %3561 = vmatprep.subr.bf16.mxu0 0
        %3562 = vmatpush1.bf16.msra.mxu0 %v2344
        %3563 = vmatprep.subr.bf16.mxu0 0
        %3564 = vmatpush1.bf16.msra.mxu0 %v2335
        %3565 = vmatprep.subr.bf16.mxu0 0
        %3566 = vmatpush1.bf16.msra.mxu0 %v2326
        %3567 = vmatprep.subr.bf16.mxu0 0
        %3568 = vmatpush1.bf16.msra.mxu0 %v2317
        %3569 = vmatprep.subr.bf16.mxu0 0
        %3570 = vmatpush1.bf16.msra.mxu0 %v2308
        %3571 = vmatprep.subr.bf16.mxu0 0
        %3572 = vmatpush1.bf16.msra.mxu0 %v2299
        %3573 = vmatprep.subr.bf16.mxu0 0
        %3574 = vmatpush1.bf16.msra.mxu0 %v2290
        %3575 = vmatprep.subr.bf16.mxu0 0
        %3576 = vmatpush2.bf16.msra.mxu0 %v2425
        %3577 = vmatprep.subr.bf16.mxu0 0
        %3578 = vmatpush2.bf16.msra.mxu0 %v2416
        %3579 = vmatprep.subr.bf16.mxu0 0
        %3580 = vmatpush2.bf16.msra.mxu0 %v2407
        %3581 = vmatprep.subr.bf16.mxu0 0
        %3582 = vmatpush2.bf16.msra.mxu0 %v2398
        %3583 = vmatprep.subr.bf16.mxu0 0
        %3584 = vmatpush2.bf16.msra.mxu0 %v2389
        %3585 = vmatprep.subr.bf16.mxu0 0
        %3586 = vmatpush2.bf16.msra.mxu0 %v2380
        %3587 = vmatprep.subr.bf16.mxu0 0
        %3588 = vmatpush2.bf16.msra.mxu0 %v2371
        %3589 = vmatprep.subr.bf16.mxu0 0
        %3590 = vmatpush2.bf16.msra.mxu0 %v2362
        %3591 = vmatprep.mubr.bf16.mxu0 %v785
        %3592 = vmatmul.mubr.bf16.gmra.mxu0 %v784
        %v3593 = vpop.f32.mrf.mxu0
        %v3594 = vadd.f32 %v3553, %v3593
        %v3595 = vpop.f32.mrf.mxu0
        %v3596 = vpop.f32.mrf.mxu0
        %v3597 = vadd.f32 %v3556, %v3596
        %v3598 = vpop.f32.mrf.mxu0
        %3599 = vdwg.mxu0
        %3600 = vmatprep.subr.bf16.mxu0 0
        %3601 = vmatpush1.bf16.msra.mxu0 %v2497
        %3602 = vmatprep.subr.bf16.mxu0 0
        %3603 = vmatpush1.bf16.msra.mxu0 %v2488
        %3604 = vmatprep.subr.bf16.mxu0 0
        %3605 = vmatpush1.bf16.msra.mxu0 %v2479
        %3606 = vmatprep.subr.bf16.mxu0 0
        %3607 = vmatpush1.bf16.msra.mxu0 %v2470
        %3608 = vmatprep.subr.bf16.mxu0 0
        %3609 = vmatpush1.bf16.msra.mxu0 %v2461
        %3610 = vmatprep.subr.bf16.mxu0 0
        %3611 = vmatpush1.bf16.msra.mxu0 %v2452
        %3612 = vmatprep.subr.bf16.mxu0 0
        %3613 = vmatpush1.bf16.msra.mxu0 %v2443
        %3614 = vmatprep.subr.bf16.mxu0 0
        %3615 = vmatpush1.bf16.msra.mxu0 %v2434
        %3616 = vmatprep.subr.bf16.mxu0 0
        %3617 = vmatpush2.bf16.msra.mxu0 %v2569
        %3618 = vmatprep.subr.bf16.mxu0 0
        %3619 = vmatpush2.bf16.msra.mxu0 %v2560
        %3620 = vmatprep.subr.bf16.mxu0 0
        %3621 = vmatpush2.bf16.msra.mxu0 %v2551
        %3622 = vmatprep.subr.bf16.mxu0 0
        %3623 = vmatpush2.bf16.msra.mxu0 %v2542
        %3624 = vmatprep.subr.bf16.mxu0 0
        %3625 = vmatpush2.bf16.msra.mxu0 %v2533
        %3626 = vmatprep.subr.bf16.mxu0 0
        %3627 = vmatpush2.bf16.msra.mxu0 %v2524
        %3628 = vmatprep.subr.bf16.mxu0 0
        %3629 = vmatpush2.bf16.msra.mxu0 %v2515
        %3630 = vmatprep.subr.bf16.mxu0 0
        %3631 = vmatpush2.bf16.msra.mxu0 %v2506
        %3632 = vmatprep.mubr.bf16.mxu0 %v787
        %3633 = vmatmul.mubr.bf16.gmra.mxu0 %v786
        %v3634 = vpop.f32.mrf.mxu0
        %v3635 = vadd.f32 %v3594, %v3634
        %v3636 = vpop.f32.mrf.mxu0
        %v3637 = vpop.f32.mrf.mxu0
        %v3638 = vadd.f32 %v3597, %v3637
        %v3639 = vpop.f32.mrf.mxu0
        %3640 = vdwg.mxu0
        %v3641 = vpack.c.bf16 %v3123, %v3123
        %v3642 = vpack.c.bf16 %v3125, %v3125
        %v3643 = vpack.c.bf16 %v3252, %v3252
        %v3644 = vpack.c.bf16 %v3127, %v3127
        %v3645 = vpack.c.bf16 %v3129, %v3129
        %v3646 = vpack.c.bf16 %v3256, %v3256
        %v3647 = vpack.c.bf16 %v3254, %v3254
        %v3648 = vpack.c.bf16 %v3381, %v3381
        %v3649 = vpack.c.bf16 %v3383, %v3383
        %v3650 = vpack.c.bf16 %v3258, %v3258
        %v3651 = vpack.c.bf16 %v3385, %v3385
        %v3652 = vpack.c.bf16 %v3387, %v3387
        %3653 = vmatprep.subr.bf16.mxu0 0
        %3654 = vmatpush1.bf16.xpose.msra.mxu0 0
        %3655 = vmatprep.subr.bf16.mxu0 0
        %3656 = vmatpush1.bf16.xpose.msra.mxu0 0
        %3657 = vmatprep.subr.bf16.mxu0 0
        %3658 = vmatpush1.bf16.xpose.msra.mxu0 0
        %3659 = vmatprep.subr.bf16.mxu0 0
        %3660 = vmatpush1.bf16.xpose.msra.mxu0 0
        %3661 = vmatprep.subr.bf16.mxu0 0
        %3662 = vmatpush1.bf16.xpose.msra.mxu0 0
        %3663 = vmatprep.subr.bf16.mxu0 0
        %3664 = vmatpush1.bf16.xpose.msra.mxu0 0
        %3665 = vmatprep.subr.bf16.mxu0 0
        %3666 = vmatpush1.bf16.xpose.msra.mxu0 0
        %3667 = vmatprep.subr.bf16.mxu0 %v3648
        %3668 = vmatpush1.bf16.xpose.msra.mxu0 %v3647
        %3669 = vmatprep.subr.bf16.mxu0 0
        %3670 = vmatpush2.bf16.xpose.msra.mxu0 0
        %3671 = vmatprep.subr.bf16.mxu0 0
        %3672 = vmatpush2.bf16.xpose.msra.mxu0 0
        %3673 = vmatprep.subr.bf16.mxu0 0
        %3674 = vmatpush2.bf16.xpose.msra.mxu0 0
        %3675 = vmatprep.subr.bf16.mxu0 0
        %3676 = vmatpush2.bf16.xpose.msra.mxu0 0
        %3677 = vmatprep.subr.bf16.mxu0 0
        %3678 = vmatpush2.bf16.xpose.msra.mxu0 0
        %3679 = vmatprep.subr.bf16.mxu0 0
        %3680 = vmatpush2.bf16.xpose.msra.mxu0 0
        %3681 = vmatprep.subr.bf16.mxu0 0
        %3682 = vmatpush2.bf16.xpose.msra.mxu0 0
        %3683 = vmatprep.subr.bf16.mxu0 0
        %3684 = vmatpush2.bf16.xpose.msra.mxu0 0
        %3685 = vmatprep.mubr.bf16.mxu0 %v3642
        %3686 = vmatmul.mubr.bf16.gmra.mxu0 %v3641
        %v3687 = vpop.f32.mrf.mxu0
        %v3688 = vadd.f32 0.0, %v3687
        %v3689 = vpop.f32.mrf.mxu0
        %v3690 = vpop.f32.mrf.mxu0
        %v3691 = vpop.f32.mrf.mxu0
        %3692 = vdwg.mxu0
        %3693 = vmatprep.subr.bf16.mxu0 0
        %3694 = vmatpush1.bf16.xpose.msra.mxu0 0
        %3695 = vmatprep.subr.bf16.mxu0 0
        %3696 = vmatpush1.bf16.xpose.msra.mxu0 0
        %3697 = vmatprep.subr.bf16.mxu0 0
        %3698 = vmatpush1.bf16.xpose.msra.mxu0 0
        %3699 = vmatprep.subr.bf16.mxu0 0
        %3700 = vmatpush1.bf16.xpose.msra.mxu0 0
        %3701 = vmatprep.subr.bf16.mxu0 0
        %3702 = vmatpush1.bf16.xpose.msra.mxu0 0
        %3703 = vmatprep.subr.bf16.mxu0 0
        %3704 = vmatpush1.bf16.xpose.msra.mxu0 0
        %3705 = vmatprep.subr.bf16.mxu0 0
        %3706 = vmatpush1.bf16.xpose.msra.mxu0 0
        %3707 = vmatprep.subr.bf16.mxu0 0
        %3708 = vmatpush1.bf16.xpose.msra.mxu0 %v3649
        %3709 = vmatprep.subr.bf16.mxu0 0
        %3710 = vmatpush2.bf16.xpose.msra.mxu0 0
        %3711 = vmatprep.subr.bf16.mxu0 0
        %3712 = vmatpush2.bf16.xpose.msra.mxu0 0
        %3713 = vmatprep.subr.bf16.mxu0 0
        %3714 = vmatpush2.bf16.xpose.msra.mxu0 0
        %3715 = vmatprep.subr.bf16.mxu0 0
        %3716 = vmatpush2.bf16.xpose.msra.mxu0 0
        %3717 = vmatprep.subr.bf16.mxu0 0
        %3718 = vmatpush2.bf16.xpose.msra.mxu0 0
        %3719 = vmatprep.subr.bf16.mxu0 0
        %3720 = vmatpush2.bf16.xpose.msra.mxu0 0
        %3721 = vmatprep.subr.bf16.mxu0 0
        %3722 = vmatpush2.bf16.xpose.msra.mxu0 0
        %3723 = vmatprep.subr.bf16.mxu0 0
        %3724 = vmatpush2.bf16.xpose.msra.mxu0 0
        %3725 = vmatprep.mubr.bf16.mxu0 0
        %3726 = vmatmul.mubr.bf16.gmra.mxu0 %v3643
        %v3727 = vpop.f32.mrf.mxu0
        %v3728 = vadd.f32 %v3688, %v3727
        %v3729 = vpop.f32.mrf.mxu0
        %v3730 = vpop.f32.mrf.mxu0
        %v3731 = vpop.f32.mrf.mxu0
        %3732 = vdwg.mxu0
        %3733 = vmatprep.subr.bf16.mxu0 0
        %3734 = vmatpush1.bf16.xpose.msra.mxu0 0
        %3735 = vmatprep.subr.bf16.mxu0 0
        %3736 = vmatpush1.bf16.xpose.msra.mxu0 0
        %3737 = vmatprep.subr.bf16.mxu0 0
        %3738 = vmatpush1.bf16.xpose.msra.mxu0 0
        %3739 = vmatprep.subr.bf16.mxu0 0
        %3740 = vmatpush1.bf16.xpose.msra.mxu0 0
        %3741 = vmatprep.subr.bf16.mxu0 0
        %3742 = vmatpush1.bf16.xpose.msra.mxu0 0
        %3743 = vmatprep.subr.bf16.mxu0 0
        %3744 = vmatpush1.bf16.xpose.msra.mxu0 0
        %3745 = vmatprep.subr.bf16.mxu0 0
        %3746 = vmatpush1.bf16.xpose.msra.mxu0 0
        %3747 = vmatprep.subr.bf16.mxu0 %v3651
        %3748 = vmatpush1.bf16.xpose.msra.mxu0 %v3650
        %3749 = vmatprep.subr.bf16.mxu0 0
        %3750 = vmatpush2.bf16.xpose.msra.mxu0 0
        %3751 = vmatprep.subr.bf16.mxu0 0
        %3752 = vmatpush2.bf16.xpose.msra.mxu0 0
        %3753 = vmatprep.subr.bf16.mxu0 0
        %3754 = vmatpush2.bf16.xpose.msra.mxu0 0
        %3755 = vmatprep.subr.bf16.mxu0 0
        %3756 = vmatpush2.bf16.xpose.msra.mxu0 0
        %3757 = vmatprep.subr.bf16.mxu0 0
        %3758 = vmatpush2.bf16.xpose.msra.mxu0 0
        %3759 = vmatprep.subr.bf16.mxu0 0
        %3760 = vmatpush2.bf16.xpose.msra.mxu0 0
        %3761 = vmatprep.subr.bf16.mxu0 0
        %3762 = vmatpush2.bf16.xpose.msra.mxu0 0
        %3763 = vmatprep.subr.bf16.mxu0 0
        %3764 = vmatpush2.bf16.xpose.msra.mxu0 0
        %3765 = vmatprep.mubr.bf16.mxu0 %v3645
        %3766 = vmatmul.mubr.bf16.gmra.mxu0 %v3644
        %v3767 = vpop.f32.mrf.mxu0
        %v3768 = vadd.f32 0.0, %v3767
        %v3769 = vpop.f32.mrf.mxu0
        %v3770 = vpop.f32.mrf.mxu0
        %v3771 = vpop.f32.mrf.mxu0
        %3772 = vdwg.mxu0
        %3773 = vmatprep.subr.bf16.mxu0 0
        %3774 = vmatpush1.bf16.xpose.msra.mxu0 0
        %3775 = vmatprep.subr.bf16.mxu0 0
        %3776 = vmatpush1.bf16.xpose.msra.mxu0 0
        %3777 = vmatprep.subr.bf16.mxu0 0
        %3778 = vmatpush1.bf16.xpose.msra.mxu0 0
        %3779 = vmatprep.subr.bf16.mxu0 0
        %3780 = vmatpush1.bf16.xpose.msra.mxu0 0
        %3781 = vmatprep.subr.bf16.mxu0 0
        %3782 = vmatpush1.bf16.xpose.msra.mxu0 0
        %3783 = vmatprep.subr.bf16.mxu0 0
        %3784 = vmatpush1.bf16.xpose.msra.mxu0 0
        %3785 = vmatprep.subr.bf16.mxu0 0
        %3786 = vmatpush1.bf16.xpose.msra.mxu0 0
        %3787 = vmatprep.subr.bf16.mxu0 0
        %3788 = vmatpush1.bf16.xpose.msra.mxu0 %v3652
        %3789 = vmatprep.subr.bf16.mxu0 0
        %3790 = vmatpush2.bf16.xpose.msra.mxu0 0
        %3791 = vmatprep.subr.bf16.mxu0 0
        %3792 = vmatpush2.bf16.xpose.msra.mxu0 0
        %3793 = vmatprep.subr.bf16.mxu0 0
        %3794 = vmatpush2.bf16.xpose.msra.mxu0 0
        %3795 = vmatprep.subr.bf16.mxu0 0
        %3796 = vmatpush2.bf16.xpose.msra.mxu0 0
        %3797 = vmatprep.subr.bf16.mxu0 0
        %3798 = vmatpush2.bf16.xpose.msra.mxu0 0
        %3799 = vmatprep.subr.bf16.mxu0 0
        %3800 = vmatpush2.bf16.xpose.msra.mxu0 0
        %3801 = vmatprep.subr.bf16.mxu0 0
        %3802 = vmatpush2.bf16.xpose.msra.mxu0 0
        %3803 = vmatprep.subr.bf16.mxu0 0
        %3804 = vmatpush2.bf16.xpose.msra.mxu0 0
        %3805 = vmatprep.mubr.bf16.mxu0 0
        %3806 = vmatmul.mubr.bf16.gmra.mxu0 %v3646
        %v3807 = vpop.f32.mrf.mxu0
        %v3808 = vadd.f32 %v3768, %v3807
        %v3809 = vpop.f32.mrf.mxu0
        %v3810 = vpop.f32.mrf.mxu0
        %v3811 = vpop.f32.mrf.mxu0
        %3812 = vdwg.mxu0
        %vm3813 = vcmask 64512
        %v3814 = vsel %vm3813, %v3728, -inf
        %3815 = vmax.xlane.f32.xlu0 %v3814
        %v3816 = vpop.xlane.xlu0 %3815
        %v3817 = vsel %vm3813, %v3808, -inf
        %3818 = vmax.xlane.f32.xlu0 %v3817
        %v3819 = vpop.xlane.xlu0 %3818
        %v3820 = vrot.slane %v3816, 4
        %v3821 = vmax.f32 %v3816, %v3820
        %v3822 = vrot.slane %v3821, 2
        %v3823 = vmax.f32 %v3821, %v3822
        %v3824 = vrot.slane %v3823, 1
        %v3825 = vmax.f32 %v3823, %v3824
        %v3826 = vrot.slane %v3819, 4
        %v3827 = vmax.f32 %v3819, %v3826
        %v3828 = vrot.slane %v3827, 2
        %v3829 = vmax.f32 %v3827, %v3828
        %v3830 = vrot.slane %v3829, 1
        %v3831 = vmax.f32 %v3829, %v3830
        %v3832 = vsub.f32 %v3816, %v3825
        %v3833 = vsub.f32 %v3819, %v3831
        %v3834 = vmul.f32 %v3832, 1.442695
        %v3835 = vpow.pop %v3834
        %v3836 = vmul.f32 %v3833, 1.442695
        %v3837 = vpow.pop %v3836
        %v3838 = vrot.slane %v3835, 4
        %v3839 = vadd.f32 %v3835, %v3838
        %v3840 = vrot.slane %v3839, 2
        %v3841 = vadd.f32 %v3839, %v3840
        %v3842 = vrot.slane %v3841, 1
        %v3843 = vadd.f32 %v3841, %v3842
        %v3844 = vrot.slane %v3837, 4
        %v3845 = vadd.f32 %v3837, %v3844
        %v3846 = vrot.slane %v3845, 2
        %v3847 = vadd.f32 %v3845, %v3846
        %v3848 = vrot.slane %v3847, 1
        %v3849 = vadd.f32 %v3847, %v3848
        %v3850 = vrcp.pop %v3843
        %v3851 = vrcp.pop %v3849
        %v3852 = vmul.f32 %v3835, %v3850
        %v3853 = vmul.f32 %v3837, %v3851
        %v3854 = vmul.f32 %v3510, %v3852
        %v3855 = vmul.f32 %v3512, %v3852
        %v3856 = vmul.f32 %v3635, %v3852
        %v3857 = vmul.f32 %v3514, %v3853
        %v3858 = vmul.f32 %v3516, %v3853
        %v3859 = vmul.f32 %v3638, %v3853
        %v3860 = vrot.slane %v3854, 4
        %v3861 = vadd.f32 %v3854, %v3860
        %v3862 = vrot.slane %v3861, 2
        %v3863 = vadd.f32 %v3861, %v3862
        %v3864 = vrot.slane %v3863, 1
        %v3865 = vadd.f32 %v3863, %v3864
        %v3866 = vrot.slane %v3855, 4
        %v3867 = vadd.f32 %v3855, %v3866
        %v3868 = vrot.slane %v3867, 2
        %v3869 = vadd.f32 %v3867, %v3868
        %v3870 = vrot.slane %v3869, 1
        %v3871 = vadd.f32 %v3869, %v3870
        %v3872 = vrot.slane %v3856, 4
        %v3873 = vadd.f32 %v3856, %v3872
        %v3874 = vrot.slane %v3873, 2
        %v3875 = vadd.f32 %v3873, %v3874
        %v3876 = vrot.slane %v3875, 1
        %v3877 = vadd.f32 %v3875, %v3876
        %v3878 = vrot.slane %v3857, 4
        %v3879 = vadd.f32 %v3857, %v3878
        %v3880 = vrot.slane %v3879, 2
        %v3881 = vadd.f32 %v3879, %v3880
        %v3882 = vrot.slane %v3881, 1
        %v3883 = vadd.f32 %v3881, %v3882
        %v3884 = vrot.slane %v3858, 4
        %v3885 = vadd.f32 %v3858, %v3884
        %v3886 = vrot.slane %v3885, 2
        %v3887 = vadd.f32 %v3885, %v3886
        %v3888 = vrot.slane %v3887, 1
        %v3889 = vadd.f32 %v3887, %v3888
        %v3890 = vrot.slane %v3859, 4
        %v3891 = vadd.f32 %v3859, %v3890
        %v3892 = vrot.slane %v3891, 2
        %v3893 = vadd.f32 %v3891, %v3892
        %v3894 = vrot.slane %v3893, 1
        %v3895 = vadd.f32 %v3893, %v3894
        %v3896 = vpack.c.bf16 %v3865, %v3865
        %v3897 = vpack.c.bf16 %v3871, %v3871
        %v3898 = vpack.c.bf16 %v3877, %v3877
        %v3899 = vpack.c.bf16 %v3883, %v3883
        %v3900 = vpack.c.bf16 %v3889, %v3889
        %v3901 = vpack.c.bf16 %v3895, %v3895
        %v3902 = vld [vmem:[%s3] sm:$0xf]
        %v3903 = vld [vmem:[%s3 + $0x4] sm:$0xf]
        %v3904 = vld [vmem:[%s3 + $0x8] sm:$0xf]
        %v3905 = vld [vmem:[%s3 + $0xc] sm:$0xf]
        %v3906 = vld [vmem:[%s3 + $0x10] sm:$0xf]
        %v3907 = vld [vmem:[%s3 + $0x14] sm:$0xf]
        %v3908 = vld [vmem:[%s3 + $0x18] sm:$0xf]
        %v3909 = vld [vmem:[%s3 + $0x1c] sm:$0xf]
        %v3910 = vld [vmem:[%s3 + $0x20] sm:$0xf]
        %v3911 = vld [vmem:[%s3 + $0x24] sm:$0xf]
        %v3912 = vld [vmem:[%s3 + $0x28] sm:$0xf]
        %v3913 = vld [vmem:[%s3 + $0x2c] sm:$0xf]
        %v3914 = vld [vmem:[%s3 + $0x30] sm:$0xf]
        %v3915 = vld [vmem:[%s3 + $0x34] sm:$0xf]
        %v3916 = vld [vmem:[%s3 + $0x38] sm:$0xf]
        %v3917 = vld [vmem:[%s3 + $0x3c] sm:$0xf]
        %v3918 = vld [vmem:[%s3 + $0x40] sm:$0xf]
        %v3919 = vld [vmem:[%s3 + $0x44] sm:$0xf]
        %v3920 = vld [vmem:[%s3 + $0x48] sm:$0xf]
        %v3921 = vld [vmem:[%s3 + $0x4c] sm:$0xf]
        %v3922 = vld [vmem:[%s3 + $0x50] sm:$0xf]
        %v3923 = vld [vmem:[%s3 + $0x54] sm:$0xf]
        %v3924 = vld [vmem:[%s3 + $0x58] sm:$0xf]
        %v3925 = vld [vmem:[%s3 + $0x5c] sm:$0xf]
        %v3926 = vld [vmem:[%s3 + $0x60] sm:$0xf]
        %v3927 = vld [vmem:[%s3 + $0x64] sm:$0xf]
        %v3928 = vld [vmem:[%s3 + $0x68] sm:$0xf]
        %v3929 = vld [vmem:[%s3 + $0x6c] sm:$0xf]
        %v3930 = vld [vmem:[%s3 + $0x70] sm:$0xf]
        %v3931 = vld [vmem:[%s3 + $0x74] sm:$0xf]
        %v3932 = vld [vmem:[%s3 + $0x78] sm:$0xf]
        %v3933 = vld [vmem:[%s3 + $0x7c] sm:$0xf]
        %v3934 = vld [vmem:[%s3 + $0x80] sm:$0xf]
        %v3935 = vld [vmem:[%s3 + $0x84] sm:$0xf]
        %v3936 = vld [vmem:[%s3 + $0x88] sm:$0xf]
        %v3937 = vld [vmem:[%s3 + $0x8c] sm:$0xf]
        %v3938 = vld [vmem:[%s3 + $0x90] sm:$0xf]
        %v3939 = vld [vmem:[%s3 + $0x94] sm:$0xf]
        %v3940 = vld [vmem:[%s3 + $0x98] sm:$0xf]
        %v3941 = vld [vmem:[%s3 + $0x9c] sm:$0xf]
        %v3942 = vld [vmem:[%s3 + $0xa0] sm:$0xf]
        %v3943 = vld [vmem:[%s3 + $0xa4] sm:$0xf]
        %v3944 = vld [vmem:[%s3 + $0xa8] sm:$0xf]
        %v3945 = vld [vmem:[%s3 + $0xac] sm:$0xf]
        %v3946 = vld [vmem:[%s3 + $0xb0] sm:$0xf]
        %v3947 = vld [vmem:[%s3 + $0xb4] sm:$0xf]
        %v3948 = vld [vmem:[%s3 + $0xb8] sm:$0xf]
        %v3949 = vld [vmem:[%s3 + $0xbc] sm:$0xf]
        %v3950 = vld [vmem:[%s4] sm:$0x1]
        %v3952 = vlaneseq
        %v3953 = vshrl.u32 %v3952, 7
        %v3954 = vsub.s32 0, %v3953
        %v3955 = vrot.slane %v3950, %v3954
        %v3963 = vunpack.c.l.b16 %v3896
        %v3964 = vunpack.c.l.b16 %v3897
        %v3965 = vunpack.c.l.b16 %v3898
        %v3966 = vunpack.c.l.b16 %v3899
        %v3967 = vunpack.c.l.b16 %v3900
        %v3968 = vunpack.c.l.b16 %v3901
        %vm3969 = vcmask 1041409
        %v3970 = vsel %vm3969, %v3966, %v3963
        %v3971 = vsel %vm3969, %v3967, %v3964
        %v3972 = vsel %vm3969, %v3968, %v3965
        %v3973 = vpack.c.b16 %v3970, %v3970
        %v3974 = vpack.c.b16 %v3971, %v3971
        %v3975 = vpack.c.b16 %v3972, %v3972
        %v4027 = vunpack.c.l.b16 %v3902
        %v4028 = vunpack.c.l.b16 %v3903
        %v4029 = vunpack.c.l.b16 %v3904
        %v4030 = vunpack.c.l.b16 %v3905
        %v4031 = vunpack.c.l.b16 %v3906
        %v4032 = vunpack.c.l.b16 %v3907
        %v4033 = vunpack.c.l.b16 %v3908
        %v4034 = vunpack.c.l.b16 %v3909
        %v4035 = vunpack.c.l.b16 %v3910
        %v4036 = vunpack.c.l.b16 %v3911
        %v4037 = vunpack.c.l.b16 %v3912
        %v4038 = vunpack.c.l.b16 %v3913
        %v4039 = vunpack.c.l.b16 %v3914
        %v4040 = vunpack.c.l.b16 %v3915
        %v4041 = vunpack.c.l.b16 %v3916
        %v4042 = vunpack.c.l.b16 %v3917
        %v4043 = vunpack.c.l.b16 %v3918
        %v4044 = vunpack.c.l.b16 %v3919
        %v4045 = vunpack.c.l.b16 %v3920
        %v4046 = vunpack.c.l.b16 %v3921
        %v4047 = vunpack.c.l.b16 %v3922
        %v4048 = vunpack.c.l.b16 %v3923
        %v4049 = vunpack.c.l.b16 %v3924
        %v4050 = vunpack.c.l.b16 %v3925
        %v4051 = vunpack.c.l.b16 %v3926
        %v4052 = vunpack.c.l.b16 %v3927
        %v4053 = vunpack.c.l.b16 %v3928
        %v4054 = vunpack.c.l.b16 %v3929
        %v4055 = vunpack.c.l.b16 %v3930
        %v4056 = vunpack.c.l.b16 %v3931
        %v4057 = vunpack.c.l.b16 %v3932
        %v4058 = vunpack.c.l.b16 %v3933
        %v4059 = vunpack.c.l.b16 %v3934
        %v4060 = vunpack.c.l.b16 %v3935
        %v4061 = vunpack.c.l.b16 %v3936
        %v4062 = vunpack.c.l.b16 %v3937
        %v4063 = vunpack.c.l.b16 %v3938
        %v4064 = vunpack.c.l.b16 %v3939
        %v4065 = vunpack.c.l.b16 %v3940
        %v4066 = vunpack.c.l.b16 %v3941
        %v4067 = vunpack.c.l.b16 %v3942
        %v4068 = vunpack.c.l.b16 %v3943
        %v4069 = vunpack.c.l.b16 %v3944
        %v4070 = vunpack.c.l.b16 %v3945
        %v4071 = vunpack.c.l.b16 %v3946
        %v4072 = vunpack.c.l.b16 %v3947
        %v4073 = vunpack.c.l.b16 %v3948
        %v4074 = vunpack.c.l.b16 %v3949
        %v4075 = vpack.c.b16 %v4028, %v4027
        %v4076 = vpack.c.b16 %v4030, %v4029
        %v4077 = vpack.c.b16 %v4032, %v4031
        %v4078 = vpack.c.b16 %v4034, %v4033
        %v4079 = vpack.c.b16 %v4036, %v4035
        %v4080 = vpack.c.b16 %v4038, %v4037
        %v4081 = vpack.c.b16 %v4040, %v4039
        %v4082 = vpack.c.b16 %v4042, %v4041
        %v4083 = vpack.c.b16 %v4044, %v4043
        %v4084 = vpack.c.b16 %v4046, %v4045
        %v4085 = vpack.c.b16 %v4048, %v4047
        %v4086 = vpack.c.b16 %v4050, %v4049
        %v4087 = vpack.c.b16 %v4052, %v4051
        %v4088 = vpack.c.b16 %v4054, %v4053
        %v4089 = vpack.c.b16 %v4056, %v4055
        %v4090 = vpack.c.b16 %v4058, %v4057
        %v4091 = vpack.c.b16 %v4060, %v4059
        %v4092 = vpack.c.b16 %v4062, %v4061
        %v4093 = vpack.c.b16 %v4064, %v4063
        %v4094 = vpack.c.b16 %v4066, %v4065
        %v4095 = vpack.c.b16 %v4068, %v4067
        %v4096 = vpack.c.b16 %v4070, %v4069
        %v4097 = vpack.c.b16 %v4072, %v4071
        %v4098 = vpack.c.b16 %v4074, %v4073
        %4123 = vmatprep.subr.bf16.mxu0 0
        %4124 = vmatpush1.bf16.msra.mxu0 %v4082
        %4125 = vmatprep.subr.bf16.mxu0 0
        %4126 = vmatpush1.bf16.msra.mxu0 %v4081
        %4127 = vmatprep.subr.bf16.mxu0 0
        %4128 = vmatpush1.bf16.msra.mxu0 %v4080
        %4129 = vmatprep.subr.bf16.mxu0 0
        %4130 = vmatpush1.bf16.msra.mxu0 %v4079
        %4131 = vmatprep.subr.bf16.mxu0 0
        %4132 = vmatpush1.bf16.msra.mxu0 %v4078
        %4133 = vmatprep.subr.bf16.mxu0 0
        %4134 = vmatpush1.bf16.msra.mxu0 %v4077
        %4135 = vmatprep.subr.bf16.mxu0 0
        %4136 = vmatpush1.bf16.msra.mxu0 %v4076
        %4137 = vmatprep.subr.bf16.mxu0 0
        %4138 = vmatpush1.bf16.msra.mxu0 %v4075
        %4139 = vmatprep.subr.bf16.mxu0 0
        %4140 = vmatpush2.bf16.msra.mxu0 %v4090
        %4141 = vmatprep.subr.bf16.mxu0 0
        %4142 = vmatpush2.bf16.msra.mxu0 %v4089
        %4143 = vmatprep.subr.bf16.mxu0 0
        %4144 = vmatpush2.bf16.msra.mxu0 %v4088
        %4145 = vmatprep.subr.bf16.mxu0 0
        %4146 = vmatpush2.bf16.msra.mxu0 %v4087
        %4147 = vmatprep.subr.bf16.mxu0 0
        %4148 = vmatpush2.bf16.msra.mxu0 %v4086
        %4149 = vmatprep.subr.bf16.mxu0 0
        %4150 = vmatpush2.bf16.msra.mxu0 %v4085
        %4151 = vmatprep.subr.bf16.mxu0 0
        %4152 = vmatpush2.bf16.msra.mxu0 %v4084
        %4153 = vmatprep.subr.bf16.mxu0 0
        %4154 = vmatpush2.bf16.msra.mxu0 %v4083
        %4155 = vmatprep.mubr.bf16.mxu0 %v3974
        %4156 = vmatmul.mubr.bf16.gmra.mxu0 %v3973
        %v4157 = vpop.f32.mrf.mxu0
        %v4158 = vadd.f32 %v3955, %v4157
        %v4159 = vpop.f32.mrf.mxu0
        %v4160 = vpop.f32.mrf.mxu0
        %v4161 = vpop.f32.mrf.mxu0
        %4162 = vdwg.mxu0
        %4163 = vmatprep.subr.bf16.mxu0 0
        %4164 = vmatpush1.bf16.msra.mxu0 %v4098
        %4165 = vmatprep.subr.bf16.mxu0 0
        %4166 = vmatpush1.bf16.msra.mxu0 %v4097
        %4167 = vmatprep.subr.bf16.mxu0 0
        %4168 = vmatpush1.bf16.msra.mxu0 %v4096
        %4169 = vmatprep.subr.bf16.mxu0 0
        %4170 = vmatpush1.bf16.msra.mxu0 %v4095
        %4171 = vmatprep.subr.bf16.mxu0 0
        %4172 = vmatpush1.bf16.msra.mxu0 %v4094
        %4173 = vmatprep.subr.bf16.mxu0 0
        %4174 = vmatpush1.bf16.msra.mxu0 %v4093
        %4175 = vmatprep.subr.bf16.mxu0 0
        %4176 = vmatpush1.bf16.msra.mxu0 %v4092
        %4177 = vmatprep.subr.bf16.mxu0 0
        %4178 = vmatpush1.bf16.msra.mxu0 %v4091
        %4179 = vmatprep.subr.bf16.mxu0 0
        %4180 = vmatpush2.bf16.msra.mxu0 0
        %4181 = vmatprep.subr.bf16.mxu0 0
        %4182 = vmatpush2.bf16.msra.mxu0 0
        %4183 = vmatprep.subr.bf16.mxu0 0
        %4184 = vmatpush2.bf16.msra.mxu0 0
        %4185 = vmatprep.subr.bf16.mxu0 0
        %4186 = vmatpush2.bf16.msra.mxu0 0
        %4187 = vmatprep.subr.bf16.mxu0 0
        %4188 = vmatpush2.bf16.msra.mxu0 0
        %4189 = vmatprep.subr.bf16.mxu0 0
        %4190 = vmatpush2.bf16.msra.mxu0 0
        %4191 = vmatprep.subr.bf16.mxu0 0
        %4192 = vmatpush2.bf16.msra.mxu0 0
        %4193 = vmatprep.subr.bf16.mxu0 0
        %4194 = vmatpush2.bf16.msra.mxu0 0
        %4195 = vmatprep.mubr.bf16.mxu0 0
        %4196 = vmatmul.mubr.bf16.gmra.mxu0 %v3975
        %v4197 = vpop.f32.mrf.mxu0
        %v4198 = vadd.f32 %v4158, %v4197
        %v4199 = vpop.f32.mrf.mxu0
        %v4200 = vpop.f32.mrf.mxu0
        %v4201 = vpop.f32.mrf.mxu0
        %4202 = vdwg.mxu0
        %v4203 = vxor.u32 %v4198, 2147483648
        %v4204 = vmul.f32 %v4203, 1.442695
        %v4205 = vpow.pop %v4204
        %v4206 = vadd.f32 %v4205, 1.0
        %v4207 = vrcp.pop %v4206
        %v4208 = vmul.f32 1.0, %v4207
        %4209 = vst [vmem:[%s220] sm:$0x3] %v4208
        %s4210 = sand.u32 %s137, 1
        %s4211 = scalar_lea.sflag [#allocation3], %s4210
        %s4212 = sand.u32 %s137, 1
        %s4213 = smul.addr %s4212, 2
        %s4214 = scalar_lea.vmem [#allocation2], %s4213
        // Predicated region
        $region41: #{mllt_forward.1} parent=39 // pred_check
          %p4215 = pneg %p147
        $region42: #{mllt_forward.1} parent=39 // pred_check_branch
          %4217 = sbr.rel (%p4215) target = $region44
        $region43: #{mllt_forward.1} parent=39 // pred_region
          %s4219 = ssub.s32 32, 32
          %4220 = vsyncadd %s4211, %s4219
          %s4221 = smul.addr %s19, 32
          %s4222 = scalar_lea.hbm %s5, %s4221
          %s4224 = sshll.u32 %s4214, 4
          %s4225 = int_to_ptr.vmem [resolvable:$true] %s4224
          %4227 = dma.vmem_to_hbm [thread:$0]  %s4225, 32, %s4222, %s4211
        $region44: #{mllt_forward.1} parent=39 // pred_fallthru
          _
      $region40: #{mllt_forward.1} parent=5 // pred_fallthru
        _
      %p4228 = scmp.le.s32.totalorder 2, %s14
      // Predicated region
      $region45: #{mllt_forward.1} parent=5 // pred_check
        %p4229 = pneg %p4228
      $region46: #{mllt_forward.1} parent=5 // pred_check_branch
        %4231 = sbr.rel (%p4229) target = $region48
      $region47: #{mllt_forward.1} parent=5 // pred_region
        %s4232 = ssub.s32 %s14, 2
        // Predicated region
        $region49: #{mllt_forward.1} parent=47 // pred_check
          %p4233 = pneg %p153
        $region50: #{mllt_forward.1} parent=47 // pred_check_branch
          %4235 = sbr.rel (%p4233) target = $region52
        $region51: #{mllt_forward.1} parent=47 // pred_region
          %s4236 = sand.u32 %s138, 1
          %s4237 = scalar_lea.sflag [#allocation3], %s4236
          %s4238 = sand.u32 %s138, 1
          %s4239 = smul.addr %s4238, 2
          %s4240 = scalar_lea.vmem [#allocation2], %s4239
          %4241 = dma.done %s4237, 32
        $region52: #{mllt_forward.1} parent=47 // pred_fallthru
          _
      $region48: #{mllt_forward.1} parent=5 // pred_fallthru
        _
    $region6: #{mllt_forward.1} parent=1 // loop_footer
      %s18 = sadd.s32 1, %s14
    $region7: #{mllt_forward.1} parent=1 // loop_footer_branch
      %13 = sbr.rel target = $region3
    $region8: #{mllt_forward.1} parent=1 // loop_exit
      _
    %4242 = vsyncpa [#allocation3], 1
    %s4243 = scalar_lea.sflag [#allocation3], 1
    %4244 = vsyncpa %s4243, 1

</llo_original>
